<compile_context>
chip_gen: v5e
topology: v5e:2x2
jax: 0.10.0
libtpu: 0.0.40
codegen_flags: <defaults>
</compile_context>

<pallas_src>
import functools

import jax
import jax.numpy as jnp
from jax.experimental import pallas as pl
from jax.experimental.pallas import tpu as pltpu


# ----------------------------- in-kernel math ---------------------------------

def _ln(x, g, b):
    """LayerNorm over the last dim. x: (R, D) f32, g/b: (1, D)."""
    mean = jnp.mean(x, axis=-1, keepdims=True)
    xc = x - mean
    var = jnp.mean(xc * xc, axis=-1, keepdims=True)   # biased var (torch LayerNorm)
    return xc * jax.lax.rsqrt(var + 1e-5) * g + b


_INV_SQRT2 = 0.7071067811865476


def _erf(x):
    # Abramowitz & Stegun 7.1.26, max abs error ~1.5e-7 (~= f32 eps): keeps the
    # torch nn.GELU() exact-erf semantics while lowering via exp (EUP slot).
    a1, a2, a3, a4, a5 = (0.254829592, -0.284496736, 1.421413741,
                          -1.453152027, 1.061405429)
    ax = jnp.abs(x)
    t = 1.0 / (1.0 + 0.3275911 * ax)
    poly = ((((a5 * t + a4) * t + a3) * t + a2) * t + a1) * t
    y = 1.0 - poly * jnp.exp(-(ax * ax))
    return jnp.where(x < 0.0, -y, y)


def _gelu(x):
    return 0.5 * x * (1.0 + _erf(x * _INV_SQRT2))


def _attention(xq_n, x_kv, ap, heads, dim_head):
    """Head-batched multi-head attention for one batch element.

    xq_n : (Nq, D) already-normalized query stream.
    x_kv : (Nk, D) raw context stream (reference quirk: K/V are not normed in
           cross-attention; for self-attention the caller passes xq_n twice).
    ap   : dict of head-shaped weight refs: wq_h (H,D,dh), wkv_h (H,D,2*dh),
           wout_h (H,dh,D), bout (1,D).
    Returns the (Nq, D) attention output before the residual add.
    """
    scale = dim_head ** -0.5
    nq, d = xq_n.shape
    nk = x_kv.shape[0]
    wq = ap["wq_h"][...]
    wkv = ap["wkv_h"][...]
    wout = ap["wout_h"][...]

    xq_b = jnp.broadcast_to(xq_n[None], (heads, nq, d))
    xkv_b = jnp.broadcast_to(x_kv[None], (heads, nk, d))
    q = jnp.einsum("hnd,hde->hne", xq_b, wq, preferred_element_type=jnp.float32)
    kv = jnp.einsum("hnd,hde->hne", xkv_b, wkv, preferred_element_type=jnp.float32)
    k = kv[:, :, :dim_head]
    v = kv[:, :, dim_head:]

    s = jnp.einsum("hqd,hkd->hqk", q, k, preferred_element_type=jnp.float32) * scale
    s = s - jnp.max(s, axis=-1, keepdims=True)
    p = jnp.exp(s)
    p = p * pl.reciprocal(jnp.sum(p, axis=-1, keepdims=True), approx=True)
    o = jnp.einsum("hqk,hkd->hqd", p, v, preferred_element_type=jnp.float32)

    y = jnp.einsum("hnd,hde->hne", o, wout, preferred_element_type=jnp.float32)
    return jnp.sum(y, axis=0) + ap["bout"][...]


def _ffn(x, lp):
    """PreNorm FeedForward with residual: x + (W2 gelu(W1 LN(x) + b1) + b2)."""
    xn = _ln(x, lp["ln2_g"][...], lp["ln2_b"][...])
    h = jnp.dot(xn, lp["w1"][...], preferred_element_type=jnp.float32) + lp["b1"][...]
    h = _gelu(h)
    y = jnp.dot(h, lp["w2"][...], preferred_element_type=jnp.float32) + lp["b2"][...]
    return x + y


# ----------------------------- the fused kernel --------------------------------

def _crossvit_kernel(*refs, treedef, enc_heads, enc_dim_head,
                     cross_heads, cross_dim_head):
    x_ref = refs[0]                     # (1, C, N) block of the input features
    o_ref = refs[-1]                    # (1, D, N) output block
    p = jax.tree_util.tree_unflatten(treedef, list(refs[1:-1]))

    # --- patch embedding (patch_size=(1,1)): Linear over channels + pos-emb ---
    x = x_ref[0].astype(jnp.float32)                     # (C, N)
    emb = p["emb1"]
    t = jnp.dot(x.T, emb["w_patch"][...], preferred_element_type=jnp.float32)
    t = t + emb["b_patch"][...] + emb["pos"][...]        # (N, D)

    for blk in p["basic"]:
        # ---------------- encoder Transformer on the feat1 stream -------------
        enc = blk["enc1"]
        for lp, h in zip(enc["layers"], enc_heads):
            xn = _ln(t, lp["ln1_g"][...], lp["ln1_b"][...])
            t = t + _attention(xn, xn, lp["attn"], h, enc_dim_head)
            t = _ffn(t, lp)
        t = _ln(t, enc["norm_g"][...], enc["norm_b"][...])   # trailing encoder LN

        # ------- CrossTransformer, called as cross_attend(t, t) (ref quirk) ---
        t2 = t
        cl = blk["cross"]["layers"]
        for li, (lp, h) in enumerate(zip(cl, cross_heads)):
            qn = _ln(t, lp["ln1_g"][...], lp["ln1_b"][...])
            t = t + _attention(qn, t2, lp["attn1"], h, cross_dim_head)
            if li < len(cl) - 1:
                # Last layer's t2 update never reaches the reference output
                # (BasicCrossVitBlock returns (feat1, feat1)); skip it.
                qn2 = _ln(t2, lp["ln2_g"][...], lp["ln2_b"][...])
                t2 = t2 + _attention(qn2, t, lp["attn2"], h, cross_dim_head)

    # --- epilogue: fold `t1 + t1` and the (N, D) -> (D, N) permute in-kernel ---
    o_ref[0] = (t + t).T.astype(o_ref.dtype)


# ----------------------------- wrapper ------------------------------------------

def _used_params(params):
    """Prune to exactly the parameters that influence the reference output."""
    basic = []
    for blk in params["basic"]:
        cl = blk["cross"]["layers"]
        layers = []
        for li, lp in enumerate(cl):
            d = dict(ln1_g=lp["ln1_g"], ln1_b=lp["ln1_b"], attn1=lp["attn1"])
            if li < len(cl) - 1:
                d.update(ln2_g=lp["ln2_g"], ln2_b=lp["ln2_b"], attn2=lp["attn2"])
            layers.append(d)
        basic.append(dict(enc1=blk["enc1"], cross=dict(layers=layers)))
    return dict(emb1=params["emb1"], basic=basic)


def crossvit_forward(params, feat1, feat2, cfg):
    assert feat1.shape == feat2.shape
    # feat2 / emb2 / enc2 never influence the reference output (dead code).
    del feat2
    B, C, H, W = feat1.shape
    hp = H // cfg["patch"][0]
    wp = W // cfg["patch"][1]
    N = hp * wp                            # patch_size = (1, 1)
    D = cfg["embed_dim"][0]

    # Merge trailing spatial dims only (no transpose materialized); the
    # channel->token transpose happens inside the kernel in VMEM.
    x = feat1.reshape(B, C, N)

    flat, treedef = jax.tree_util.tree_flatten(_used_params(params))

    kernel = functools.partial(
        _crossvit_kernel,
        treedef=treedef,
        enc_heads=tuple(cfg["enc_heads"][0]),
        enc_dim_head=cfg["enc_dim_head"][0],
        cross_heads=tuple(cfg["cross_heads"]),
        cross_dim_head=cfg["cross_dim_head"],
    )

    in_specs = [pl.BlockSpec((1, C, N), lambda b: (b, 0, 0))]
    for a in flat:  # weights: full-array blocks, constant index map (resident)
        in_specs.append(pl.BlockSpec(a.shape, lambda b, _nd=a.ndim: (0,) * _nd))
    out_specs = pl.BlockSpec((1, D, N), lambda b: (b, 0, 0))

    out = pl.pallas_call(
        kernel,
        out_shape=jax.ShapeDtypeStruct((B, D, N), feat1.dtype),
        grid=(B,),
        in_specs=in_specs,
        out_specs=out_specs,
        compiler_params=pltpu.CompilerParams(
            dimension_semantics=("parallel",),          # one batch per TC on v7x
            vmem_limit_bytes=32 * 1024 * 1024,          # explicit (tiny) budget
        ),
    )(x, *flat)

    # (B, D, N) -> (B, D, hp, wp): pure view, no data movement.
    return out.reshape(B, D, hp, wp)


# ----------------------------- parameter init ---------------------------------

def init_params(key, cfg):
    C1, C2 = cfg["input_dim"]
    D1, D2 = cfg["embed_dim"]
    N = cfg["num_patches"]
    keys = iter(jax.random.split(key, 512))

    def rnd(shape, scale=0.05):
        return jax.random.normal(next(keys), shape, jnp.float32) * scale

    def vec(d, ones=False):
        return (jnp.ones if ones else jnp.zeros)((1, d), jnp.float32)

    def attn_p(dim, heads, dim_head):
        inner = heads * dim_head
        wq = rnd((dim, inner))
        wk = rnd((dim, inner))
        wv = rnd((dim, inner))
        wout = rnd((inner, dim))
        # Pre-shape weights head-major so the kernel runs head-batched matmuls
        # with no in-kernel lane reshapes/concatenates.
        wq_h = wq.reshape(dim, heads, dim_head).transpose(1, 0, 2)    # (H, D, dh)
        wk_h = wk.reshape(dim, heads, dim_head).transpose(1, 0, 2)
        wv_h = wv.reshape(dim, heads, dim_head).transpose(1, 0, 2)
        return dict(
            wq_h=wq_h,
            wkv_h=jnp.concatenate([wk_h, wv_h], axis=-1),             # (H, D, 2*dh)
            wout_h=wout.reshape(heads, dim_head, dim),                # (H, dh, D)
            bout=vec(dim),
        )

    def enc_p(dim, heads_list, dim_head, mlp):
        layers = []
        for h in heads_list:
            layers.append(dict(
                ln1_g=vec(dim, True), ln1_b=vec(dim),
                attn=attn_p(dim, h, dim_head),
                ln2_g=vec(dim, True), ln2_b=vec(dim),
                w1=rnd((dim, mlp)), b1=vec(mlp),
                w2=rnd((mlp, dim)), b2=vec(dim),
            ))
        return dict(layers=layers, norm_g=vec(dim, True), norm_b=vec(dim))

    def cross_p(d1, d2, heads_list, dim_head):
        layers = []
        for h in heads_list:
            layers.append(dict(
                ln1_g=vec(d2, True), ln1_b=vec(d2),
                attn1=attn_p(d2, h, dim_head),
                ln2_g=vec(d1, True), ln2_b=vec(d1),
                attn2=attn_p(d1, h, dim_head),
            ))
        return dict(layers=layers)

    return dict(
        emb1=dict(w_patch=rnd((C1, D1)), b_patch=vec(D1), pos=rnd((N, D1), 1.0)),
        # emb2 / enc2 kept for structural parity with the reference, but their
        # outputs never reach the reference output, so the kernel never reads them.
        emb2=dict(w_patch=rnd((C2, D2)), b_patch=vec(D2), pos=rnd((N, D2), 1.0)),
        basic=[dict(
            enc1=enc_p(D1, cfg["enc_heads"][0], cfg["enc_dim_head"][0], cfg["mlp"][0]),
            enc2=enc_p(D2, cfg["enc_heads"][1], cfg["enc_dim_head"][1], cfg["mlp"][1]),
            cross=cross_p(D1, D2, cfg["cross_heads"], cfg["cross_dim_head"]),
        ) for _ in range(cfg["basic_depth"])],
    )


# ----------------------------- main --------------------------------------------

if __name__ == "__main__":
    B, C, H, W = 2, 32, 4, 8          # small shapes consistent with the module
    cfg = dict(
        input_dim=(C, C),
        embed_dim=(32, 32),
        patch=(1, 1),
        num_patches=H * W,
        enc_heads=[[2, 4], [2, 4]],   # enc_depths = [2, 2]
        enc_dim_head=[16, 16],
        mlp=[64, 64],
        basic_depth=1,
        cross_heads=[4],              # cross_attention_depth = 1
        cross_dim_head=16,
    )

    key = jax.random.PRNGKey(0)
    kp, k1, k2 = jax.random.split(key, 3)
    params = init_params(kp, cfg)
    feat1 = jax.random.normal(k1, (B, C, H, W), jnp.float32)
    feat2 = jax.random.normal(k2, (B, C, H, W), jnp.float32)

    fwd = jax.jit(functools.partial(crossvit_forward, cfg=cfg))
    out = jax.block_until_ready(fwd(params, feat1, feat2))
    assert out.shape == (B, cfg["embed_dim"][0], H, W), out.shape
    assert bool(jnp.all(jnp.isfinite(out)))
    print("KERNEL_OK")
</pallas_src>

<mosaic_0001>
module attributes {stable_mosaic.version = 11 : i64} {
  func.func @_crossvit_kernel(%arg0: i32, %arg1: memref<1x32x32xf32, #tpu.memory_space<vmem>>, %arg2: memref<1x32xf32, #tpu.memory_space<vmem>>, %arg3: memref<4x32x32xf32, #tpu.memory_space<vmem>>, %arg4: memref<4x16x32xf32, #tpu.memory_space<vmem>>, %arg5: memref<4x32x16xf32, #tpu.memory_space<vmem>>, %arg6: memref<1x32xf32, #tpu.memory_space<vmem>>, %arg7: memref<1x32xf32, #tpu.memory_space<vmem>>, %arg8: memref<1x32xf32, #tpu.memory_space<vmem>>, %arg9: memref<2x32x32xf32, #tpu.memory_space<vmem>>, %arg10: memref<2x16x32xf32, #tpu.memory_space<vmem>>, %arg11: memref<2x32x16xf32, #tpu.memory_space<vmem>>, %arg12: memref<1x64xf32, #tpu.memory_space<vmem>>, %arg13: memref<1x32xf32, #tpu.memory_space<vmem>>, %arg14: memref<1x32xf32, #tpu.memory_space<vmem>>, %arg15: memref<1x32xf32, #tpu.memory_space<vmem>>, %arg16: memref<1x32xf32, #tpu.memory_space<vmem>>, %arg17: memref<1x32xf32, #tpu.memory_space<vmem>>, %arg18: memref<32x64xf32, #tpu.memory_space<vmem>>, %arg19: memref<64x32xf32, #tpu.memory_space<vmem>>, %arg20: memref<1x32xf32, #tpu.memory_space<vmem>>, %arg21: memref<4x32x32xf32, #tpu.memory_space<vmem>>, %arg22: memref<4x16x32xf32, #tpu.memory_space<vmem>>, %arg23: memref<4x32x16xf32, #tpu.memory_space<vmem>>, %arg24: memref<1x64xf32, #tpu.memory_space<vmem>>, %arg25: memref<1x32xf32, #tpu.memory_space<vmem>>, %arg26: memref<1x32xf32, #tpu.memory_space<vmem>>, %arg27: memref<1x32xf32, #tpu.memory_space<vmem>>, %arg28: memref<1x32xf32, #tpu.memory_space<vmem>>, %arg29: memref<1x32xf32, #tpu.memory_space<vmem>>, %arg30: memref<32x64xf32, #tpu.memory_space<vmem>>, %arg31: memref<64x32xf32, #tpu.memory_space<vmem>>, %arg32: memref<1x32xf32, #tpu.memory_space<vmem>>, %arg33: memref<1x32xf32, #tpu.memory_space<vmem>>, %arg34: memref<1x32xf32, #tpu.memory_space<vmem>>, %arg35: memref<32x32xf32, #tpu.memory_space<vmem>>, %arg36: memref<32x32xf32, #tpu.memory_space<vmem>>, %arg37: memref<1x32x32xf32, #tpu.memory_space<vmem>>) attributes {dimension_semantics = [#tpu.dimension_semantics<parallel>], iteration_bounds = array<i64: 2>, scalar_prefetch = 0 : i64, scratch_operands = 0 : i64, tpu.core_type = #tpu.core_type<tc>, window_params = [{transform_indices = @transform_0, window_bounds = array<i64: 1, 32, 32>}, {pipeline_mode = #tpu.pipeline_mode<synchronous>, transform_indices = @transform_1, window_bounds = array<i64: 1, 32>}, {pipeline_mode = #tpu.pipeline_mode<synchronous>, transform_indices = @transform_2, window_bounds = array<i64: 4, 32, 32>}, {pipeline_mode = #tpu.pipeline_mode<synchronous>, transform_indices = @transform_3, window_bounds = array<i64: 4, 16, 32>}, {pipeline_mode = #tpu.pipeline_mode<synchronous>, transform_indices = @transform_4, window_bounds = array<i64: 4, 32, 16>}, {pipeline_mode = #tpu.pipeline_mode<synchronous>, transform_indices = @transform_5, window_bounds = array<i64: 1, 32>}, {pipeline_mode = #tpu.pipeline_mode<synchronous>, transform_indices = @transform_6, window_bounds = array<i64: 1, 32>}, {pipeline_mode = #tpu.pipeline_mode<synchronous>, transform_indices = @transform_7, window_bounds = array<i64: 1, 32>}, {pipeline_mode = #tpu.pipeline_mode<synchronous>, transform_indices = @transform_8, window_bounds = array<i64: 2, 32, 32>}, {pipeline_mode = #tpu.pipeline_mode<synchronous>, transform_indices = @transform_9, window_bounds = array<i64: 2, 16, 32>}, {pipeline_mode = #tpu.pipeline_mode<synchronous>, transform_indices = @transform_10, window_bounds = array<i64: 2, 32, 16>}, {pipeline_mode = #tpu.pipeline_mode<synchronous>, transform_indices = @transform_11, window_bounds = array<i64: 1, 64>}, {pipeline_mode = #tpu.pipeline_mode<synchronous>, transform_indices = @transform_12, window_bounds = array<i64: 1, 32>}, {pipeline_mode = #tpu.pipeline_mode<synchronous>, transform_indices = @transform_13, window_bounds = array<i64: 1, 32>}, {pipeline_mode = #tpu.pipeline_mode<synchronous>, transform_indices = @transform_14, window_bounds = array<i64: 1, 32>}, {pipeline_mode = #tpu.pipeline_mode<synchronous>, transform_indices = @transform_15, window_bounds = array<i64: 1, 32>}, {pipeline_mode = #tpu.pipeline_mode<synchronous>, transform_indices = @transform_16, window_bounds = array<i64: 1, 32>}, {pipeline_mode = #tpu.pipeline_mode<synchronous>, transform_indices = @transform_17, window_bounds = array<i64: 32, 64>}, {pipeline_mode = #tpu.pipeline_mode<synchronous>, transform_indices = @transform_18, window_bounds = array<i64: 64, 32>}, {pipeline_mode = #tpu.pipeline_mode<synchronous>, transform_indices = @transform_19, window_bounds = array<i64: 1, 32>}, {pipeline_mode = #tpu.pipeline_mode<synchronous>, transform_indices = @transform_20, window_bounds = array<i64: 4, 32, 32>}, {pipeline_mode = #tpu.pipeline_mode<synchronous>, transform_indices = @transform_21, window_bounds = array<i64: 4, 16, 32>}, {pipeline_mode = #tpu.pipeline_mode<synchronous>, transform_indices = @transform_22, window_bounds = array<i64: 4, 32, 16>}, {pipeline_mode = #tpu.pipeline_mode<synchronous>, transform_indices = @transform_23, window_bounds = array<i64: 1, 64>}, {pipeline_mode = #tpu.pipeline_mode<synchronous>, transform_indices = @transform_24, window_bounds = array<i64: 1, 32>}, {pipeline_mode = #tpu.pipeline_mode<synchronous>, transform_indices = @transform_25, window_bounds = array<i64: 1, 32>}, {pipeline_mode = #tpu.pipeline_mode<synchronous>, transform_indices = @transform_26, window_bounds = array<i64: 1, 32>}, {pipeline_mode = #tpu.pipeline_mode<synchronous>, transform_indices = @transform_27, window_bounds = array<i64: 1, 32>}, {pipeline_mode = #tpu.pipeline_mode<synchronous>, transform_indices = @transform_28, window_bounds = array<i64: 1, 32>}, {pipeline_mode = #tpu.pipeline_mode<synchronous>, transform_indices = @transform_29, window_bounds = array<i64: 32, 64>}, {pipeline_mode = #tpu.pipeline_mode<synchronous>, transform_indices = @transform_30, window_bounds = array<i64: 64, 32>}, {pipeline_mode = #tpu.pipeline_mode<synchronous>, transform_indices = @transform_31, window_bounds = array<i64: 1, 32>}, {pipeline_mode = #tpu.pipeline_mode<synchronous>, transform_indices = @transform_32, window_bounds = array<i64: 1, 32>}, {pipeline_mode = #tpu.pipeline_mode<synchronous>, transform_indices = @transform_33, window_bounds = array<i64: 1, 32>}, {pipeline_mode = #tpu.pipeline_mode<synchronous>, transform_indices = @transform_34, window_bounds = array<i64: 32, 32>}, {pipeline_mode = #tpu.pipeline_mode<synchronous>, transform_indices = @transform_35, window_bounds = array<i64: 32, 32>}, {transform_indices = @transform_36, window_bounds = array<i64: 1, 32, 32>}]} {
    %c0 = arith.constant 0 : index
    %c0_0 = arith.constant 0 : index
    %c0_1 = arith.constant 0 : index
    %0 = vector.load %arg1[%c0, %c0_0, %c0_1] : memref<1x32x32xf32, #tpu.memory_space<vmem>>, vector<1x32x32xf32>
    %1 = vector.shape_cast %0 : vector<1x32x32xf32> to vector<32x32xf32>
    %2 = tpu.transpose %1, [1, 0] : vector<32x32xf32> -> vector<32x32xf32>
    %c0_2 = arith.constant 0 : index
    %c0_3 = arith.constant 0 : index
    %3 = vector.load %arg36[%c0_2, %c0_3] : memref<32x32xf32, #tpu.memory_space<vmem>>, vector<32x32xf32>
    %cst = arith.constant dense<0.000000e+00> : vector<32x32xf32>
    %4 = tpu.matmul %2, %3, %cst {dimension_numbers = #tpu.dot_dimension_numbers<[1], [0], [0], [1], [0, 0, 1, 1], [], []>} : vector<32x32xf32>, vector<32x32xf32>, vector<32x32xf32> -> vector<32x32xf32>
    %c0_4 = arith.constant 0 : index
    %c0_5 = arith.constant 0 : index
    %5 = vector.load %arg34[%c0_4, %c0_5] : memref<1x32xf32, #tpu.memory_space<vmem>>, vector<1x32xf32>
    %6 = vector.broadcast %5 : vector<1x32xf32> to vector<32x32xf32>
    %7 = arith.addf %4, %6 : vector<32x32xf32>
    %c0_6 = arith.constant 0 : index
    %c0_7 = arith.constant 0 : index
    %8 = vector.load %arg35[%c0_6, %c0_7] : memref<32x32xf32, #tpu.memory_space<vmem>>, vector<32x32xf32>
    %9 = arith.addf %7, %8 : vector<32x32xf32>
    %c0_8 = arith.constant 0 : index
    %c0_9 = arith.constant 0 : index
    %10 = vector.load %arg15[%c0_8, %c0_9] : memref<1x32xf32, #tpu.memory_space<vmem>>, vector<1x32xf32>
    %c0_10 = arith.constant 0 : index
    %c0_11 = arith.constant 0 : index
    %11 = vector.load %arg14[%c0_10, %c0_11] : memref<1x32xf32, #tpu.memory_space<vmem>>, vector<1x32xf32>
    %cst_12 = arith.constant dense<0.000000e+00> : vector<32xf32>
    %12 = vector.multi_reduction <add>, %9, %cst_12 [1] : vector<32x32xf32> to vector<32xf32>
    %13 = vector.shape_cast %12 : vector<32xf32> to vector<32x1xf32>
    %cst_13 = arith.constant 3.200000e+01 : f32
    %14 = vector.broadcast %cst_13 : f32 to vector<32x1xf32>
    %15 = arith.divf %13, %14 : vector<32x1xf32>
    %16 = vector.broadcast %15 : vector<32x1xf32> to vector<32x32xf32>
    %17 = arith.subf %9, %16 : vector<32x32xf32>
    %18 = arith.mulf %17, %17 : vector<32x32xf32>
    %cst_14 = arith.constant dense<0.000000e+00> : vector<32xf32>
    %19 = vector.multi_reduction <add>, %18, %cst_14 [1] : vector<32x32xf32> to vector<32xf32>
    %20 = vector.shape_cast %19 : vector<32xf32> to vector<32x1xf32>
    %cst_15 = arith.constant 3.200000e+01 : f32
    %21 = vector.broadcast %cst_15 : f32 to vector<32x1xf32>
    %22 = arith.divf %20, %21 : vector<32x1xf32>
    %cst_16 = arith.constant 9.99999974E-6 : f32
    %23 = vector.broadcast %cst_16 : f32 to vector<32x1xf32>
    %24 = arith.addf %22, %23 : vector<32x1xf32>
    %25 = math.rsqrt %24 : vector<32x1xf32>
    %26 = vector.broadcast %25 : vector<32x1xf32> to vector<32x32xf32>
    %27 = arith.mulf %17, %26 : vector<32x32xf32>
    %28 = vector.broadcast %10 : vector<1x32xf32> to vector<32x32xf32>
    %29 = arith.mulf %27, %28 : vector<32x32xf32>
    %30 = vector.broadcast %11 : vector<1x32xf32> to vector<32x32xf32>
    %31 = arith.addf %29, %30 : vector<32x32xf32>
    %c0_17 = arith.constant 0 : index
    %c0_18 = arith.constant 0 : index
    %c0_19 = arith.constant 0 : index
    %32 = vector.load %arg11[%c0_17, %c0_18, %c0_19] : memref<2x32x16xf32, #tpu.memory_space<vmem>>, vector<2x32x16xf32>
    %c0_20 = arith.constant 0 : index
    %c0_21 = arith.constant 0 : index
    %c0_22 = arith.constant 0 : index
    %33 = vector.load %arg9[%c0_20, %c0_21, %c0_22] : memref<2x32x32xf32, #tpu.memory_space<vmem>>, vector<2x32x32xf32>
    %c0_23 = arith.constant 0 : index
    %c0_24 = arith.constant 0 : index
    %c0_25 = arith.constant 0 : index
    %34 = vector.load %arg10[%c0_23, %c0_24, %c0_25] : memref<2x16x32xf32, #tpu.memory_space<vmem>>, vector<2x16x32xf32>
    %35 = vector.shape_cast %31 : vector<32x32xf32> to vector<1x32x32xf32>
    %36 = vector.shape_cast %35 : vector<1x32x32xf32> to vector<1x32x32xf32>
    %37 = vector.broadcast %36 : vector<1x32x32xf32> to vector<2x32x32xf32>
    %38 = vector.shape_cast %31 : vector<32x32xf32> to vector<1x32x32xf32>
    %39 = vector.shape_cast %38 : vector<1x32x32xf32> to vector<1x32x32xf32>
    %40 = vector.broadcast %39 : vector<1x32x32xf32> to vector<2x32x32xf32>
    "tpu.trace_start"() <{level = 10 : i32, message = "hnd,hde->hne"}> : () -> ()
    %cst_26 = arith.constant dense<0.000000e+00> : vector<2x32x16xf32>
    %41 = tpu.matmul %37, %32, %cst_26 {dimension_numbers = #tpu.dot_dimension_numbers<[2], [1], [1], [2], [0, 0, 0, 1, 1, 2], [0], [0]>} : vector<2x32x32xf32>, vector<2x32x16xf32>, vector<2x32x16xf32> -> vector<2x32x16xf32>
    %cst_27 = arith.constant dense<0.000000e+00> : vector<2x32x32xf32>
    %42 = tpu.matmul %40, %33, %cst_27 {dimension_numbers = #tpu.dot_dimension_numbers<[2], [1], [1], [2], [0, 0, 0, 1, 1, 2], [0], [0]>} : vector<2x32x32xf32>, vector<2x32x32xf32>, vector<2x32x32xf32> -> vector<2x32x32xf32>
    "tpu.trace_stop"() : () -> ()
    %43 = vector.extract_strided_slice %42 {offsets = [0, 0, 0], sizes = [2, 32, 16], strides = [1, 1, 1]} : vector<2x32x32xf32> to vector<2x32x16xf32>
    %44 = vector.extract_strided_slice %42 {offsets = [0, 0, 16], sizes = [2, 32, 16], strides = [1, 1, 1]} : vector<2x32x32xf32> to vector<2x32x16xf32>
    "tpu.trace_start"() <{level = 10 : i32, message = "hqd,hkd->hqk"}> : () -> ()
    %cst_28 = arith.constant dense<0.000000e+00> : vector<2x32x32xf32>
    %45 = tpu.matmul %41, %43, %cst_28 {dimension_numbers = #tpu.dot_dimension_numbers<[2], [2], [1], [1], [0, 0, 0, 1, 1, 1], [0], [0]>} : vector<2x32x16xf32>, vector<2x32x16xf32>, vector<2x32x32xf32> -> vector<2x32x32xf32>
    "tpu.trace_stop"() : () -> ()
    %cst_29 = arith.constant 2.500000e-01 : f32
    %46 = vector.broadcast %cst_29 : f32 to vector<2x32x32xf32>
    %47 = arith.mulf %45, %46 : vector<2x32x32xf32>
    %cst_30 = arith.constant dense<0xFF800000> : vector<2x32xf32>
    %48 = vector.multi_reduction <maximumf>, %47, %cst_30 [2] : vector<2x32x32xf32> to vector<2x32xf32>
    %49 = vector.shape_cast %48 : vector<2x32xf32> to vector<2x32x1xf32>
    %50 = vector.broadcast %49 : vector<2x32x1xf32> to vector<2x32x32xf32>
    %51 = arith.subf %47, %50 : vector<2x32x32xf32>
    %52 = math.exp %51 : vector<2x32x32xf32>
    %cst_31 = arith.constant dense<0.000000e+00> : vector<2x32xf32>
    %53 = vector.multi_reduction <add>, %52, %cst_31 [2] : vector<2x32x32xf32> to vector<2x32xf32>
    %54 = vector.shape_cast %53 : vector<2x32xf32> to vector<2x32x1xf32>
    %55 = tpu.reciprocal %54 {approx = true} : vector<2x32x1xf32> -> vector<2x32x1xf32>
    %56 = vector.broadcast %55 : vector<2x32x1xf32> to vector<2x32x32xf32>
    %57 = arith.mulf %52, %56 : vector<2x32x32xf32>
    "tpu.trace_start"() <{level = 10 : i32, message = "hqk,hkd->hqd"}> : () -> ()
    %cst_32 = arith.constant dense<0.000000e+00> : vector<2x32x16xf32>
    %58 = tpu.matmul %57, %44, %cst_32 {dimension_numbers = #tpu.dot_dimension_numbers<[2], [1], [1], [2], [0, 0, 0, 1, 1, 2], [0], [0]>} : vector<2x32x32xf32>, vector<2x32x16xf32>, vector<2x32x16xf32> -> vector<2x32x16xf32>
    "tpu.trace_stop"() : () -> ()
    "tpu.trace_start"() <{level = 10 : i32, message = "hnd,hde->hne"}> : () -> ()
    %cst_33 = arith.constant dense<0.000000e+00> : vector<2x32x32xf32>
    %59 = tpu.matmul %58, %34, %cst_33 {dimension_numbers = #tpu.dot_dimension_numbers<[2], [1], [1], [2], [0, 0, 0, 1, 1, 2], [0], [0]>} : vector<2x32x16xf32>, vector<2x16x32xf32>, vector<2x32x32xf32> -> vector<2x32x32xf32>
    "tpu.trace_stop"() : () -> ()
    %cst_34 = arith.constant dense<0.000000e+00> : vector<32x32xf32>
    %60 = vector.multi_reduction <add>, %59, %cst_34 [0] : vector<2x32x32xf32> to vector<32x32xf32>
    %c0_35 = arith.constant 0 : index
    %c0_36 = arith.constant 0 : index
    %61 = vector.load %arg8[%c0_35, %c0_36] : memref<1x32xf32, #tpu.memory_space<vmem>>, vector<1x32xf32>
    %62 = vector.broadcast %61 : vector<1x32xf32> to vector<32x32xf32>
    %63 = arith.addf %60, %62 : vector<32x32xf32>
    %64 = arith.addf %9, %63 : vector<32x32xf32>
    %c0_37 = arith.constant 0 : index
    %c0_38 = arith.constant 0 : index
    %65 = vector.load %arg17[%c0_37, %c0_38] : memref<1x32xf32, #tpu.memory_space<vmem>>, vector<1x32xf32>
    %c0_39 = arith.constant 0 : index
    %c0_40 = arith.constant 0 : index
    %66 = vector.load %arg16[%c0_39, %c0_40] : memref<1x32xf32, #tpu.memory_space<vmem>>, vector<1x32xf32>
    %cst_41 = arith.constant dense<0.000000e+00> : vector<32xf32>
    %67 = vector.multi_reduction <add>, %64, %cst_41 [1] : vector<32x32xf32> to vector<32xf32>
    %68 = vector.shape_cast %67 : vector<32xf32> to vector<32x1xf32>
    %cst_42 = arith.constant 3.200000e+01 : f32
    %69 = vector.broadcast %cst_42 : f32 to vector<32x1xf32>
    %70 = arith.divf %68, %69 : vector<32x1xf32>
    %71 = vector.broadcast %70 : vector<32x1xf32> to vector<32x32xf32>
    %72 = arith.subf %64, %71 : vector<32x32xf32>
    %73 = arith.mulf %72, %72 : vector<32x32xf32>
    %cst_43 = arith.constant dense<0.000000e+00> : vector<32xf32>
    %74 = vector.multi_reduction <add>, %73, %cst_43 [1] : vector<32x32xf32> to vector<32xf32>
    %75 = vector.shape_cast %74 : vector<32xf32> to vector<32x1xf32>
    %cst_44 = arith.constant 3.200000e+01 : f32
    %76 = vector.broadcast %cst_44 : f32 to vector<32x1xf32>
    %77 = arith.divf %75, %76 : vector<32x1xf32>
    %cst_45 = arith.constant 9.99999974E-6 : f32
    %78 = vector.broadcast %cst_45 : f32 to vector<32x1xf32>
    %79 = arith.addf %77, %78 : vector<32x1xf32>
    %80 = math.rsqrt %79 : vector<32x1xf32>
    %81 = vector.broadcast %80 : vector<32x1xf32> to vector<32x32xf32>
    %82 = arith.mulf %72, %81 : vector<32x32xf32>
    %83 = vector.broadcast %65 : vector<1x32xf32> to vector<32x32xf32>
    %84 = arith.mulf %82, %83 : vector<32x32xf32>
    %85 = vector.broadcast %66 : vector<1x32xf32> to vector<32x32xf32>
    %86 = arith.addf %84, %85 : vector<32x32xf32>
    %c0_46 = arith.constant 0 : index
    %c0_47 = arith.constant 0 : index
    %87 = vector.load %arg18[%c0_46, %c0_47] : memref<32x64xf32, #tpu.memory_space<vmem>>, vector<32x64xf32>
    %cst_48 = arith.constant dense<0.000000e+00> : vector<32x64xf32>
    %88 = tpu.matmul %86, %87, %cst_48 {dimension_numbers = #tpu.dot_dimension_numbers<[1], [0], [0], [1], [0, 0, 1, 1], [], []>} : vector<32x32xf32>, vector<32x64xf32>, vector<32x64xf32> -> vector<32x64xf32>
    %c0_49 = arith.constant 0 : index
    %c0_50 = arith.constant 0 : index
    %89 = vector.load %arg12[%c0_49, %c0_50] : memref<1x64xf32, #tpu.memory_space<vmem>>, vector<1x64xf32>
    %90 = vector.broadcast %89 : vector<1x64xf32> to vector<32x64xf32>
    %91 = arith.addf %88, %90 : vector<32x64xf32>
    %cst_51 = arith.constant 5.000000e-01 : f32
    %92 = vector.broadcast %cst_51 : f32 to vector<32x64xf32>
    %93 = arith.mulf %92, %91 : vector<32x64xf32>
    %cst_52 = arith.constant 0.707106769 : f32
    %94 = vector.broadcast %cst_52 : f32 to vector<32x64xf32>
    %95 = arith.mulf %91, %94 : vector<32x64xf32>
    %96 = math.absf %95 : vector<32x64xf32>
    %cst_53 = arith.constant 0.327591091 : f32
    %97 = vector.broadcast %cst_53 : f32 to vector<32x64xf32>
    %98 = arith.mulf %97, %96 : vector<32x64xf32>
    %cst_54 = arith.constant 1.000000e+00 : f32
    %99 = vector.broadcast %cst_54 : f32 to vector<32x64xf32>
    %100 = arith.addf %99, %98 : vector<32x64xf32>
    %cst_55 = arith.constant 1.000000e+00 : f32
    %101 = vector.broadcast %cst_55 : f32 to vector<32x64xf32>
    %102 = arith.divf %101, %100 : vector<32x64xf32>
    %cst_56 = arith.constant 1.06140542 : f32
    %103 = vector.broadcast %cst_56 : f32 to vector<32x64xf32>
    %104 = arith.mulf %103, %102 : vector<32x64xf32>
    %cst_57 = arith.constant -1.45315206 : f32
    %105 = vector.broadcast %cst_57 : f32 to vector<32x64xf32>
    %106 = arith.addf %104, %105 : vector<32x64xf32>
    %107 = arith.mulf %106, %102 : vector<32x64xf32>
    %cst_58 = arith.constant 1.42141378 : f32
    %108 = vector.broadcast %cst_58 : f32 to vector<32x64xf32>
    %109 = arith.addf %107, %108 : vector<32x64xf32>
    %110 = arith.mulf %109, %102 : vector<32x64xf32>
    %cst_59 = arith.constant -0.284496725 : f32
    %111 = vector.broadcast %cst_59 : f32 to vector<32x64xf32>
    %112 = arith.addf %110, %111 : vector<32x64xf32>
    %113 = arith.mulf %112, %102 : vector<32x64xf32>
    %cst_60 = arith.constant 0.254829586 : f32
    %114 = vector.broadcast %cst_60 : f32 to vector<32x64xf32>
    %115 = arith.addf %113, %114 : vector<32x64xf32>
    %116 = arith.mulf %115, %102 : vector<32x64xf32>
    %117 = arith.mulf %96, %96 : vector<32x64xf32>
    %cst_61 = arith.constant 0.000000e+00 : f32
    %118 = vector.broadcast %cst_61 : f32 to vector<32x64xf32>
    %119 = arith.subf %118, %117 : vector<32x64xf32>
    %120 = math.exp %119 : vector<32x64xf32>
    %121 = arith.mulf %116, %120 : vector<32x64xf32>
    %cst_62 = arith.constant 1.000000e+00 : f32
    %122 = vector.broadcast %cst_62 : f32 to vector<32x64xf32>
    %123 = arith.subf %122, %121 : vector<32x64xf32>
    %cst_63 = arith.constant 0.000000e+00 : f32
    %124 = vector.broadcast %cst_63 : f32 to vector<32x64xf32>
    %125 = arith.cmpf olt, %95, %124 : vector<32x64xf32>
    %cst_64 = arith.constant 0.000000e+00 : f32
    %126 = vector.broadcast %cst_64 : f32 to vector<32x64xf32>
    %127 = arith.subf %126, %123 : vector<32x64xf32>
    %128 = arith.select %125, %127, %123 : vector<32x64xi1>, vector<32x64xf32>
    %cst_65 = arith.constant 1.000000e+00 : f32
    %129 = vector.broadcast %cst_65 : f32 to vector<32x64xf32>
    %130 = arith.addf %129, %128 : vector<32x64xf32>
    %131 = arith.mulf %93, %130 : vector<32x64xf32>
    %c0_66 = arith.constant 0 : index
    %c0_67 = arith.constant 0 : index
    %132 = vector.load %arg19[%c0_66, %c0_67] : memref<64x32xf32, #tpu.memory_space<vmem>>, vector<64x32xf32>
    %cst_68 = arith.constant dense<0.000000e+00> : vector<32x32xf32>
    %133 = tpu.matmul %131, %132, %cst_68 {dimension_numbers = #tpu.dot_dimension_numbers<[1], [0], [0], [1], [0, 0, 1, 1], [], []>} : vector<32x64xf32>, vector<64x32xf32>, vector<32x32xf32> -> vector<32x32xf32>
    %c0_69 = arith.constant 0 : index
    %c0_70 = arith.constant 0 : index
    %134 = vector.load %arg13[%c0_69, %c0_70] : memref<1x32xf32, #tpu.memory_space<vmem>>, vector<1x32xf32>
    %135 = vector.broadcast %134 : vector<1x32xf32> to vector<32x32xf32>
    %136 = arith.addf %133, %135 : vector<32x32xf32>
    %137 = arith.addf %64, %136 : vector<32x32xf32>
    %c0_71 = arith.constant 0 : index
    %c0_72 = arith.constant 0 : index
    %138 = vector.load %arg27[%c0_71, %c0_72] : memref<1x32xf32, #tpu.memory_space<vmem>>, vector<1x32xf32>
    %c0_73 = arith.constant 0 : index
    %c0_74 = arith.constant 0 : index
    %139 = vector.load %arg26[%c0_73, %c0_74] : memref<1x32xf32, #tpu.memory_space<vmem>>, vector<1x32xf32>
    %cst_75 = arith.constant dense<0.000000e+00> : vector<32xf32>
    %140 = vector.multi_reduction <add>, %137, %cst_75 [1] : vector<32x32xf32> to vector<32xf32>
    %141 = vector.shape_cast %140 : vector<32xf32> to vector<32x1xf32>
    %cst_76 = arith.constant 3.200000e+01 : f32
    %142 = vector.broadcast %cst_76 : f32 to vector<32x1xf32>
    %143 = arith.divf %141, %142 : vector<32x1xf32>
    %144 = vector.broadcast %143 : vector<32x1xf32> to vector<32x32xf32>
    %145 = arith.subf %137, %144 : vector<32x32xf32>
    %146 = arith.mulf %145, %145 : vector<32x32xf32>
    %cst_77 = arith.constant dense<0.000000e+00> : vector<32xf32>
    %147 = vector.multi_reduction <add>, %146, %cst_77 [1] : vector<32x32xf32> to vector<32xf32>
    %148 = vector.shape_cast %147 : vector<32xf32> to vector<32x1xf32>
    %cst_78 = arith.constant 3.200000e+01 : f32
    %149 = vector.broadcast %cst_78 : f32 to vector<32x1xf32>
    %150 = arith.divf %148, %149 : vector<32x1xf32>
    %cst_79 = arith.constant 9.99999974E-6 : f32
    %151 = vector.broadcast %cst_79 : f32 to vector<32x1xf32>
    %152 = arith.addf %150, %151 : vector<32x1xf32>
    %153 = math.rsqrt %152 : vector<32x1xf32>
    %154 = vector.broadcast %153 : vector<32x1xf32> to vector<32x32xf32>
    %155 = arith.mulf %145, %154 : vector<32x32xf32>
    %156 = vector.broadcast %138 : vector<1x32xf32> to vector<32x32xf32>
    %157 = arith.mulf %155, %156 : vector<32x32xf32>
    %158 = vector.broadcast %139 : vector<1x32xf32> to vector<32x32xf32>
    %159 = arith.addf %157, %158 : vector<32x32xf32>
    %c0_80 = arith.constant 0 : index
    %c0_81 = arith.constant 0 : index
    %c0_82 = arith.constant 0 : index
    %160 = vector.load %arg23[%c0_80, %c0_81, %c0_82] : memref<4x32x16xf32, #tpu.memory_space<vmem>>, vector<4x32x16xf32>
    %c0_83 = arith.constant 0 : index
    %c0_84 = arith.constant 0 : index
    %c0_85 = arith.constant 0 : index
    %161 = vector.load %arg21[%c0_83, %c0_84, %c0_85] : memref<4x32x32xf32, #tpu.memory_space<vmem>>, vector<4x32x32xf32>
    %c0_86 = arith.constant 0 : index
    %c0_87 = arith.constant 0 : index
    %c0_88 = arith.constant 0 : index
    %162 = vector.load %arg22[%c0_86, %c0_87, %c0_88] : memref<4x16x32xf32, #tpu.memory_space<vmem>>, vector<4x16x32xf32>
    %163 = vector.shape_cast %159 : vector<32x32xf32> to vector<1x32x32xf32>
    %164 = vector.shape_cast %163 : vector<1x32x32xf32> to vector<1x32x32xf32>
    %165 = vector.broadcast %164 : vector<1x32x32xf32> to vector<4x32x32xf32>
    %166 = vector.shape_cast %159 : vector<32x32xf32> to vector<1x32x32xf32>
    %167 = vector.shape_cast %166 : vector<1x32x32xf32> to vector<1x32x32xf32>
    %168 = vector.broadcast %167 : vector<1x32x32xf32> to vector<4x32x32xf32>
    "tpu.trace_start"() <{level = 10 : i32, message = "hnd,hde->hne"}> : () -> ()
    %cst_89 = arith.constant dense<0.000000e+00> : vector<4x32x16xf32>
    %169 = tpu.matmul %165, %160, %cst_89 {dimension_numbers = #tpu.dot_dimension_numbers<[2], [1], [1], [2], [0, 0, 0, 1, 1, 2], [0], [0]>} : vector<4x32x32xf32>, vector<4x32x16xf32>, vector<4x32x16xf32> -> vector<4x32x16xf32>
    %cst_90 = arith.constant dense<0.000000e+00> : vector<4x32x32xf32>
    %170 = tpu.matmul %168, %161, %cst_90 {dimension_numbers = #tpu.dot_dimension_numbers<[2], [1], [1], [2], [0, 0, 0, 1, 1, 2], [0], [0]>} : vector<4x32x32xf32>, vector<4x32x32xf32>, vector<4x32x32xf32> -> vector<4x32x32xf32>
    "tpu.trace_stop"() : () -> ()
    %171 = vector.extract_strided_slice %170 {offsets = [0, 0, 0], sizes = [4, 32, 16], strides = [1, 1, 1]} : vector<4x32x32xf32> to vector<4x32x16xf32>
    %172 = vector.extract_strided_slice %170 {offsets = [0, 0, 16], sizes = [4, 32, 16], strides = [1, 1, 1]} : vector<4x32x32xf32> to vector<4x32x16xf32>
    "tpu.trace_start"() <{level = 10 : i32, message = "hqd,hkd->hqk"}> : () -> ()
    %cst_91 = arith.constant dense<0.000000e+00> : vector<4x32x32xf32>
    %173 = tpu.matmul %169, %171, %cst_91 {dimension_numbers = #tpu.dot_dimension_numbers<[2], [2], [1], [1], [0, 0, 0, 1, 1, 1], [0], [0]>} : vector<4x32x16xf32>, vector<4x32x16xf32>, vector<4x32x32xf32> -> vector<4x32x32xf32>
    "tpu.trace_stop"() : () -> ()
    %cst_92 = arith.constant 2.500000e-01 : f32
    %174 = vector.broadcast %cst_92 : f32 to vector<4x32x32xf32>
    %175 = arith.mulf %173, %174 : vector<4x32x32xf32>
    %cst_93 = arith.constant dense<0xFF800000> : vector<4x32xf32>
    %176 = vector.multi_reduction <maximumf>, %175, %cst_93 [2] : vector<4x32x32xf32> to vector<4x32xf32>
    %177 = vector.shape_cast %176 : vector<4x32xf32> to vector<4x32x1xf32>
    %178 = vector.broadcast %177 : vector<4x32x1xf32> to vector<4x32x32xf32>
    %179 = arith.subf %175, %178 : vector<4x32x32xf32>
    %180 = math.exp %179 : vector<4x32x32xf32>
    %cst_94 = arith.constant dense<0.000000e+00> : vector<4x32xf32>
    %181 = vector.multi_reduction <add>, %180, %cst_94 [2] : vector<4x32x32xf32> to vector<4x32xf32>
    %182 = vector.shape_cast %181 : vector<4x32xf32> to vector<4x32x1xf32>
    %183 = tpu.reciprocal %182 {approx = true} : vector<4x32x1xf32> -> vector<4x32x1xf32>
    %184 = vector.broadcast %183 : vector<4x32x1xf32> to vector<4x32x32xf32>
    %185 = arith.mulf %180, %184 : vector<4x32x32xf32>
    "tpu.trace_start"() <{level = 10 : i32, message = "hqk,hkd->hqd"}> : () -> ()
    %cst_95 = arith.constant dense<0.000000e+00> : vector<4x32x16xf32>
    %186 = tpu.matmul %185, %172, %cst_95 {dimension_numbers = #tpu.dot_dimension_numbers<[2], [1], [1], [2], [0, 0, 0, 1, 1, 2], [0], [0]>} : vector<4x32x32xf32>, vector<4x32x16xf32>, vector<4x32x16xf32> -> vector<4x32x16xf32>
    "tpu.trace_stop"() : () -> ()
    "tpu.trace_start"() <{level = 10 : i32, message = "hnd,hde->hne"}> : () -> ()
    %cst_96 = arith.constant dense<0.000000e+00> : vector<4x32x32xf32>
    %187 = tpu.matmul %186, %162, %cst_96 {dimension_numbers = #tpu.dot_dimension_numbers<[2], [1], [1], [2], [0, 0, 0, 1, 1, 2], [0], [0]>} : vector<4x32x16xf32>, vector<4x16x32xf32>, vector<4x32x32xf32> -> vector<4x32x32xf32>
    "tpu.trace_stop"() : () -> ()
    %cst_97 = arith.constant dense<0.000000e+00> : vector<32x32xf32>
    %188 = vector.multi_reduction <add>, %187, %cst_97 [0] : vector<4x32x32xf32> to vector<32x32xf32>
    %c0_98 = arith.constant 0 : index
    %c0_99 = arith.constant 0 : index
    %189 = vector.load %arg20[%c0_98, %c0_99] : memref<1x32xf32, #tpu.memory_space<vmem>>, vector<1x32xf32>
    %190 = vector.broadcast %189 : vector<1x32xf32> to vector<32x32xf32>
    %191 = arith.addf %188, %190 : vector<32x32xf32>
    %192 = arith.addf %137, %191 : vector<32x32xf32>
    %c0_100 = arith.constant 0 : index
    %c0_101 = arith.constant 0 : index
    %193 = vector.load %arg29[%c0_100, %c0_101] : memref<1x32xf32, #tpu.memory_space<vmem>>, vector<1x32xf32>
    %c0_102 = arith.constant 0 : index
    %c0_103 = arith.constant 0 : index
    %194 = vector.load %arg28[%c0_102, %c0_103] : memref<1x32xf32, #tpu.memory_space<vmem>>, vector<1x32xf32>
    %cst_104 = arith.constant dense<0.000000e+00> : vector<32xf32>
    %195 = vector.multi_reduction <add>, %192, %cst_104 [1] : vector<32x32xf32> to vector<32xf32>
    %196 = vector.shape_cast %195 : vector<32xf32> to vector<32x1xf32>
    %cst_105 = arith.constant 3.200000e+01 : f32
    %197 = vector.broadcast %cst_105 : f32 to vector<32x1xf32>
    %198 = arith.divf %196, %197 : vector<32x1xf32>
    %199 = vector.broadcast %198 : vector<32x1xf32> to vector<32x32xf32>
    %200 = arith.subf %192, %199 : vector<32x32xf32>
    %201 = arith.mulf %200, %200 : vector<32x32xf32>
    %cst_106 = arith.constant dense<0.000000e+00> : vector<32xf32>
    %202 = vector.multi_reduction <add>, %201, %cst_106 [1] : vector<32x32xf32> to vector<32xf32>
    %203 = vector.shape_cast %202 : vector<32xf32> to vector<32x1xf32>
    %cst_107 = arith.constant 3.200000e+01 : f32
    %204 = vector.broadcast %cst_107 : f32 to vector<32x1xf32>
    %205 = arith.divf %203, %204 : vector<32x1xf32>
    %cst_108 = arith.constant 9.99999974E-6 : f32
    %206 = vector.broadcast %cst_108 : f32 to vector<32x1xf32>
    %207 = arith.addf %205, %206 : vector<32x1xf32>
    %208 = math.rsqrt %207 : vector<32x1xf32>
    %209 = vector.broadcast %208 : vector<32x1xf32> to vector<32x32xf32>
    %210 = arith.mulf %200, %209 : vector<32x32xf32>
    %211 = vector.broadcast %193 : vector<1x32xf32> to vector<32x32xf32>
    %212 = arith.mulf %210, %211 : vector<32x32xf32>
    %213 = vector.broadcast %194 : vector<1x32xf32> to vector<32x32xf32>
    %214 = arith.addf %212, %213 : vector<32x32xf32>
    %c0_109 = arith.constant 0 : index
    %c0_110 = arith.constant 0 : index
    %215 = vector.load %arg30[%c0_109, %c0_110] : memref<32x64xf32, #tpu.memory_space<vmem>>, vector<32x64xf32>
    %cst_111 = arith.constant dense<0.000000e+00> : vector<32x64xf32>
    %216 = tpu.matmul %214, %215, %cst_111 {dimension_numbers = #tpu.dot_dimension_numbers<[1], [0], [0], [1], [0, 0, 1, 1], [], []>} : vector<32x32xf32>, vector<32x64xf32>, vector<32x64xf32> -> vector<32x64xf32>
    %c0_112 = arith.constant 0 : index
    %c0_113 = arith.constant 0 : index
    %217 = vector.load %arg24[%c0_112, %c0_113] : memref<1x64xf32, #tpu.memory_space<vmem>>, vector<1x64xf32>
    %218 = vector.broadcast %217 : vector<1x64xf32> to vector<32x64xf32>
    %219 = arith.addf %216, %218 : vector<32x64xf32>
    %cst_114 = arith.constant 5.000000e-01 : f32
    %220 = vector.broadcast %cst_114 : f32 to vector<32x64xf32>
    %221 = arith.mulf %220, %219 : vector<32x64xf32>
    %cst_115 = arith.constant 0.707106769 : f32
    %222 = vector.broadcast %cst_115 : f32 to vector<32x64xf32>
    %223 = arith.mulf %219, %222 : vector<32x64xf32>
    %224 = math.absf %223 : vector<32x64xf32>
    %cst_116 = arith.constant 0.327591091 : f32
    %225 = vector.broadcast %cst_116 : f32 to vector<32x64xf32>
    %226 = arith.mulf %225, %224 : vector<32x64xf32>
    %cst_117 = arith.constant 1.000000e+00 : f32
    %227 = vector.broadcast %cst_117 : f32 to vector<32x64xf32>
    %228 = arith.addf %227, %226 : vector<32x64xf32>
    %cst_118 = arith.constant 1.000000e+00 : f32
    %229 = vector.broadcast %cst_118 : f32 to vector<32x64xf32>
    %230 = arith.divf %229, %228 : vector<32x64xf32>
    %cst_119 = arith.constant 1.06140542 : f32
    %231 = vector.broadcast %cst_119 : f32 to vector<32x64xf32>
    %232 = arith.mulf %231, %230 : vector<32x64xf32>
    %cst_120 = arith.constant -1.45315206 : f32
    %233 = vector.broadcast %cst_120 : f32 to vector<32x64xf32>
    %234 = arith.addf %232, %233 : vector<32x64xf32>
    %235 = arith.mulf %234, %230 : vector<32x64xf32>
    %cst_121 = arith.constant 1.42141378 : f32
    %236 = vector.broadcast %cst_121 : f32 to vector<32x64xf32>
    %237 = arith.addf %235, %236 : vector<32x64xf32>
    %238 = arith.mulf %237, %230 : vector<32x64xf32>
    %cst_122 = arith.constant -0.284496725 : f32
    %239 = vector.broadcast %cst_122 : f32 to vector<32x64xf32>
    %240 = arith.addf %238, %239 : vector<32x64xf32>
    %241 = arith.mulf %240, %230 : vector<32x64xf32>
    %cst_123 = arith.constant 0.254829586 : f32
    %242 = vector.broadcast %cst_123 : f32 to vector<32x64xf32>
    %243 = arith.addf %241, %242 : vector<32x64xf32>
    %244 = arith.mulf %243, %230 : vector<32x64xf32>
    %245 = arith.mulf %224, %224 : vector<32x64xf32>
    %cst_124 = arith.constant 0.000000e+00 : f32
    %246 = vector.broadcast %cst_124 : f32 to vector<32x64xf32>
    %247 = arith.subf %246, %245 : vector<32x64xf32>
    %248 = math.exp %247 : vector<32x64xf32>
    %249 = arith.mulf %244, %248 : vector<32x64xf32>
    %cst_125 = arith.constant 1.000000e+00 : f32
    %250 = vector.broadcast %cst_125 : f32 to vector<32x64xf32>
    %251 = arith.subf %250, %249 : vector<32x64xf32>
    %cst_126 = arith.constant 0.000000e+00 : f32
    %252 = vector.broadcast %cst_126 : f32 to vector<32x64xf32>
    %253 = arith.cmpf olt, %223, %252 : vector<32x64xf32>
    %cst_127 = arith.constant 0.000000e+00 : f32
    %254 = vector.broadcast %cst_127 : f32 to vector<32x64xf32>
    %255 = arith.subf %254, %251 : vector<32x64xf32>
    %256 = arith.select %253, %255, %251 : vector<32x64xi1>, vector<32x64xf32>
    %cst_128 = arith.constant 1.000000e+00 : f32
    %257 = vector.broadcast %cst_128 : f32 to vector<32x64xf32>
    %258 = arith.addf %257, %256 : vector<32x64xf32>
    %259 = arith.mulf %221, %258 : vector<32x64xf32>
    %c0_129 = arith.constant 0 : index
    %c0_130 = arith.constant 0 : index
    %260 = vector.load %arg31[%c0_129, %c0_130] : memref<64x32xf32, #tpu.memory_space<vmem>>, vector<64x32xf32>
    %cst_131 = arith.constant dense<0.000000e+00> : vector<32x32xf32>
    %261 = tpu.matmul %259, %260, %cst_131 {dimension_numbers = #tpu.dot_dimension_numbers<[1], [0], [0], [1], [0, 0, 1, 1], [], []>} : vector<32x64xf32>, vector<64x32xf32>, vector<32x32xf32> -> vector<32x32xf32>
    %c0_132 = arith.constant 0 : index
    %c0_133 = arith.constant 0 : index
    %262 = vector.load %arg25[%c0_132, %c0_133] : memref<1x32xf32, #tpu.memory_space<vmem>>, vector<1x32xf32>
    %263 = vector.broadcast %262 : vector<1x32xf32> to vector<32x32xf32>
    %264 = arith.addf %261, %263 : vector<32x32xf32>
    %265 = arith.addf %192, %264 : vector<32x32xf32>
    %c0_134 = arith.constant 0 : index
    %c0_135 = arith.constant 0 : index
    %266 = vector.load %arg33[%c0_134, %c0_135] : memref<1x32xf32, #tpu.memory_space<vmem>>, vector<1x32xf32>
    %c0_136 = arith.constant 0 : index
    %c0_137 = arith.constant 0 : index
    %267 = vector.load %arg32[%c0_136, %c0_137] : memref<1x32xf32, #tpu.memory_space<vmem>>, vector<1x32xf32>
    %cst_138 = arith.constant dense<0.000000e+00> : vector<32xf32>
    %268 = vector.multi_reduction <add>, %265, %cst_138 [1] : vector<32x32xf32> to vector<32xf32>
    %269 = vector.shape_cast %268 : vector<32xf32> to vector<32x1xf32>
    %cst_139 = arith.constant 3.200000e+01 : f32
    %270 = vector.broadcast %cst_139 : f32 to vector<32x1xf32>
    %271 = arith.divf %269, %270 : vector<32x1xf32>
    %272 = vector.broadcast %271 : vector<32x1xf32> to vector<32x32xf32>
    %273 = arith.subf %265, %272 : vector<32x32xf32>
    %274 = arith.mulf %273, %273 : vector<32x32xf32>
    %cst_140 = arith.constant dense<0.000000e+00> : vector<32xf32>
    %275 = vector.multi_reduction <add>, %274, %cst_140 [1] : vector<32x32xf32> to vector<32xf32>
    %276 = vector.shape_cast %275 : vector<32xf32> to vector<32x1xf32>
    %cst_141 = arith.constant 3.200000e+01 : f32
    %277 = vector.broadcast %cst_141 : f32 to vector<32x1xf32>
    %278 = arith.divf %276, %277 : vector<32x1xf32>
    %cst_142 = arith.constant 9.99999974E-6 : f32
    %279 = vector.broadcast %cst_142 : f32 to vector<32x1xf32>
    %280 = arith.addf %278, %279 : vector<32x1xf32>
    %281 = math.rsqrt %280 : vector<32x1xf32>
    %282 = vector.broadcast %281 : vector<32x1xf32> to vector<32x32xf32>
    %283 = arith.mulf %273, %282 : vector<32x32xf32>
    %284 = vector.broadcast %266 : vector<1x32xf32> to vector<32x32xf32>
    %285 = arith.mulf %283, %284 : vector<32x32xf32>
    %286 = vector.broadcast %267 : vector<1x32xf32> to vector<32x32xf32>
    %287 = arith.addf %285, %286 : vector<32x32xf32>
    %c0_143 = arith.constant 0 : index
    %c0_144 = arith.constant 0 : index
    %288 = vector.load %arg7[%c0_143, %c0_144] : memref<1x32xf32, #tpu.memory_space<vmem>>, vector<1x32xf32>
    %c0_145 = arith.constant 0 : index
    %c0_146 = arith.constant 0 : index
    %289 = vector.load %arg6[%c0_145, %c0_146] : memref<1x32xf32, #tpu.memory_space<vmem>>, vector<1x32xf32>
    %cst_147 = arith.constant dense<0.000000e+00> : vector<32xf32>
    %290 = vector.multi_reduction <add>, %287, %cst_147 [1] : vector<32x32xf32> to vector<32xf32>
    %291 = vector.shape_cast %290 : vector<32xf32> to vector<32x1xf32>
    %cst_148 = arith.constant 3.200000e+01 : f32
    %292 = vector.broadcast %cst_148 : f32 to vector<32x1xf32>
    %293 = arith.divf %291, %292 : vector<32x1xf32>
    %294 = vector.broadcast %293 : vector<32x1xf32> to vector<32x32xf32>
    %295 = arith.subf %287, %294 : vector<32x32xf32>
    %296 = arith.mulf %295, %295 : vector<32x32xf32>
    %cst_149 = arith.constant dense<0.000000e+00> : vector<32xf32>
    %297 = vector.multi_reduction <add>, %296, %cst_149 [1] : vector<32x32xf32> to vector<32xf32>
    %298 = vector.shape_cast %297 : vector<32xf32> to vector<32x1xf32>
    %cst_150 = arith.constant 3.200000e+01 : f32
    %299 = vector.broadcast %cst_150 : f32 to vector<32x1xf32>
    %300 = arith.divf %298, %299 : vector<32x1xf32>
    %cst_151 = arith.constant 9.99999974E-6 : f32
    %301 = vector.broadcast %cst_151 : f32 to vector<32x1xf32>
    %302 = arith.addf %300, %301 : vector<32x1xf32>
    %303 = math.rsqrt %302 : vector<32x1xf32>
    %304 = vector.broadcast %303 : vector<32x1xf32> to vector<32x32xf32>
    %305 = arith.mulf %295, %304 : vector<32x32xf32>
    %306 = vector.broadcast %288 : vector<1x32xf32> to vector<32x32xf32>
    %307 = arith.mulf %305, %306 : vector<32x32xf32>
    %308 = vector.broadcast %289 : vector<1x32xf32> to vector<32x32xf32>
    %309 = arith.addf %307, %308 : vector<32x32xf32>
    %c0_152 = arith.constant 0 : index
    %c0_153 = arith.constant 0 : index
    %c0_154 = arith.constant 0 : index
    %310 = vector.load %arg5[%c0_152, %c0_153, %c0_154] : memref<4x32x16xf32, #tpu.memory_space<vmem>>, vector<4x32x16xf32>
    %c0_155 = arith.constant 0 : index
    %c0_156 = arith.constant 0 : index
    %c0_157 = arith.constant 0 : index
    %311 = vector.load %arg3[%c0_155, %c0_156, %c0_157] : memref<4x32x32xf32, #tpu.memory_space<vmem>>, vector<4x32x32xf32>
    %c0_158 = arith.constant 0 : index
    %c0_159 = arith.constant 0 : index
    %c0_160 = arith.constant 0 : index
    %312 = vector.load %arg4[%c0_158, %c0_159, %c0_160] : memref<4x16x32xf32, #tpu.memory_space<vmem>>, vector<4x16x32xf32>
    %313 = vector.shape_cast %309 : vector<32x32xf32> to vector<1x32x32xf32>
    %314 = vector.shape_cast %313 : vector<1x32x32xf32> to vector<1x32x32xf32>
    %315 = vector.broadcast %314 : vector<1x32x32xf32> to vector<4x32x32xf32>
    %316 = vector.shape_cast %287 : vector<32x32xf32> to vector<1x32x32xf32>
    %317 = vector.shape_cast %316 : vector<1x32x32xf32> to vector<1x32x32xf32>
    %318 = vector.broadcast %317 : vector<1x32x32xf32> to vector<4x32x32xf32>
    "tpu.trace_start"() <{level = 10 : i32, message = "hnd,hde->hne"}> : () -> ()
    %cst_161 = arith.constant dense<0.000000e+00> : vector<4x32x16xf32>
    %319 = tpu.matmul %315, %310, %cst_161 {dimension_numbers = #tpu.dot_dimension_numbers<[2], [1], [1], [2], [0, 0, 0, 1, 1, 2], [0], [0]>} : vector<4x32x32xf32>, vector<4x32x16xf32>, vector<4x32x16xf32> -> vector<4x32x16xf32>
    %cst_162 = arith.constant dense<0.000000e+00> : vector<4x32x32xf32>
    %320 = tpu.matmul %318, %311, %cst_162 {dimension_numbers = #tpu.dot_dimension_numbers<[2], [1], [1], [2], [0, 0, 0, 1, 1, 2], [0], [0]>} : vector<4x32x32xf32>, vector<4x32x32xf32>, vector<4x32x32xf32> -> vector<4x32x32xf32>
    "tpu.trace_stop"() : () -> ()
    %321 = vector.extract_strided_slice %320 {offsets = [0, 0, 0], sizes = [4, 32, 16], strides = [1, 1, 1]} : vector<4x32x32xf32> to vector<4x32x16xf32>
    %322 = vector.extract_strided_slice %320 {offsets = [0, 0, 16], sizes = [4, 32, 16], strides = [1, 1, 1]} : vector<4x32x32xf32> to vector<4x32x16xf32>
    "tpu.trace_start"() <{level = 10 : i32, message = "hqd,hkd->hqk"}> : () -> ()
    %cst_163 = arith.constant dense<0.000000e+00> : vector<4x32x32xf32>
    %323 = tpu.matmul %319, %321, %cst_163 {dimension_numbers = #tpu.dot_dimension_numbers<[2], [2], [1], [1], [0, 0, 0, 1, 1, 1], [0], [0]>} : vector<4x32x16xf32>, vector<4x32x16xf32>, vector<4x32x32xf32> -> vector<4x32x32xf32>
    "tpu.trace_stop"() : () -> ()
    %cst_164 = arith.constant 2.500000e-01 : f32
    %324 = vector.broadcast %cst_164 : f32 to vector<4x32x32xf32>
    %325 = arith.mulf %323, %324 : vector<4x32x32xf32>
    %cst_165 = arith.constant dense<0xFF800000> : vector<4x32xf32>
    %326 = vector.multi_reduction <maximumf>, %325, %cst_165 [2] : vector<4x32x32xf32> to vector<4x32xf32>
    %327 = vector.shape_cast %326 : vector<4x32xf32> to vector<4x32x1xf32>
    %328 = vector.broadcast %327 : vector<4x32x1xf32> to vector<4x32x32xf32>
    %329 = arith.subf %325, %328 : vector<4x32x32xf32>
    %330 = math.exp %329 : vector<4x32x32xf32>
    %cst_166 = arith.constant dense<0.000000e+00> : vector<4x32xf32>
    %331 = vector.multi_reduction <add>, %330, %cst_166 [2] : vector<4x32x32xf32> to vector<4x32xf32>
    %332 = vector.shape_cast %331 : vector<4x32xf32> to vector<4x32x1xf32>
    %333 = tpu.reciprocal %332 {approx = true} : vector<4x32x1xf32> -> vector<4x32x1xf32>
    %334 = vector.broadcast %333 : vector<4x32x1xf32> to vector<4x32x32xf32>
    %335 = arith.mulf %330, %334 : vector<4x32x32xf32>
    "tpu.trace_start"() <{level = 10 : i32, message = "hqk,hkd->hqd"}> : () -> ()
    %cst_167 = arith.constant dense<0.000000e+00> : vector<4x32x16xf32>
    %336 = tpu.matmul %335, %322, %cst_167 {dimension_numbers = #tpu.dot_dimension_numbers<[2], [1], [1], [2], [0, 0, 0, 1, 1, 2], [0], [0]>} : vector<4x32x32xf32>, vector<4x32x16xf32>, vector<4x32x16xf32> -> vector<4x32x16xf32>
    "tpu.trace_stop"() : () -> ()
    "tpu.trace_start"() <{level = 10 : i32, message = "hnd,hde->hne"}> : () -> ()
    %cst_168 = arith.constant dense<0.000000e+00> : vector<4x32x32xf32>
    %337 = tpu.matmul %336, %312, %cst_168 {dimension_numbers = #tpu.dot_dimension_numbers<[2], [1], [1], [2], [0, 0, 0, 1, 1, 2], [0], [0]>} : vector<4x32x16xf32>, vector<4x16x32xf32>, vector<4x32x32xf32> -> vector<4x32x32xf32>
    "tpu.trace_stop"() : () -> ()
    %cst_169 = arith.constant dense<0.000000e+00> : vector<32x32xf32>
    %338 = vector.multi_reduction <add>, %337, %cst_169 [0] : vector<4x32x32xf32> to vector<32x32xf32>
    %c0_170 = arith.constant 0 : index
    %c0_171 = arith.constant 0 : index
    %339 = vector.load %arg2[%c0_170, %c0_171] : memref<1x32xf32, #tpu.memory_space<vmem>>, vector<1x32xf32>
    %340 = vector.broadcast %339 : vector<1x32xf32> to vector<32x32xf32>
    %341 = arith.addf %338, %340 : vector<32x32xf32>
    %342 = arith.addf %287, %341 : vector<32x32xf32>
    %343 = arith.addf %342, %342 : vector<32x32xf32>
    %344 = tpu.transpose %343, [1, 0] : vector<32x32xf32> -> vector<32x32xf32>
    %c0_172 = arith.constant 0 : index
    %c0_173 = arith.constant 0 : index
    %c0_174 = arith.constant 0 : index
    %345 = vector.load %arg37[%c0_172, %c0_173, %c0_174] : memref<1x32x32xf32, #tpu.memory_space<vmem>>, vector<1x32x32xf32>
    %346 = vector.shape_cast %345 : vector<1x32x32xf32> to vector<32x32xf32>
    %347 = vector.shape_cast %344 : vector<32x32xf32> to vector<1x32x32xf32>
    tpu.vector_store %arg37[%c0_172, %c0_173, %c0_174], %347 {strides = array<i32>} : memref<1x32x32xf32, #tpu.memory_space<vmem>>, vector<1x32x32xf32>,
    return
  }
  func.func @transform_0(%arg0: i32) -> (i32, i32, i32) {
    %c0_i32 = arith.constant 0 : i32
    %c0_i32_0 = arith.constant 0 : i32
    %c0_i32_1 = arith.constant 0 : i32
    return %arg0, %c0_i32, %c0_i32_0 : i32, i32, i32
  }
  func.func @transform_1(%arg0: i32) -> (i32, i32) {
    %c0_i32 = arith.constant 0 : i32
    %c0_i32_0 = arith.constant 0 : i32
    %c0_i32_1 = arith.constant 0 : i32
    return %c0_i32, %c0_i32_0 : i32, i32
  }
  func.func @transform_2(%arg0: i32) -> (i32, i32, i32) {
    %c0_i32 = arith.constant 0 : i32
    %c0_i32_0 = arith.constant 0 : i32
    %c0_i32_1 = arith.constant 0 : i32
    %c0_i32_2 = arith.constant 0 : i32
    return %c0_i32, %c0_i32_0, %c0_i32_1 : i32, i32, i32
  }
  func.func @transform_3(%arg0: i32) -> (i32, i32, i32) {
    %c0_i32 = arith.constant 0 : i32
    %c0_i32_0 = arith.constant 0 : i32
    %c0_i32_1 = arith.constant 0 : i32
    %c0_i32_2 = arith.constant 0 : i32
    return %c0_i32, %c0_i32_0, %c0_i32_1 : i32, i32, i32
  }
  func.func @transform_4(%arg0: i32) -> (i32, i32, i32) {
    %c0_i32 = arith.constant 0 : i32
    %c0_i32_0 = arith.constant 0 : i32
    %c0_i32_1 = arith.constant 0 : i32
    %c0_i32_2 = arith.constant 0 : i32
    return %c0_i32, %c0_i32_0, %c0_i32_1 : i32, i32, i32
  }
  func.func @transform_5(%arg0: i32) -> (i32, i32) {
    %c0_i32 = arith.constant 0 : i32
    %c0_i32_0 = arith.constant 0 : i32
    %c0_i32_1 = arith.constant 0 : i32
    return %c0_i32, %c0_i32_0 : i32, i32
  }
  func.func @transform_6(%arg0: i32) -> (i32, i32) {
    %c0_i32 = arith.constant 0 : i32
    %c0_i32_0 = arith.constant 0 : i32
    %c0_i32_1 = arith.constant 0 : i32
    return %c0_i32, %c0_i32_0 : i32, i32
  }
  func.func @transform_7(%arg0: i32) -> (i32, i32) {
    %c0_i32 = arith.constant 0 : i32
    %c0_i32_0 = arith.constant 0 : i32
    %c0_i32_1 = arith.constant 0 : i32
    return %c0_i32, %c0_i32_0 : i32, i32
  }
  func.func @transform_8(%arg0: i32) -> (i32, i32, i32) {
    %c0_i32 = arith.constant 0 : i32
    %c0_i32_0 = arith.constant 0 : i32
    %c0_i32_1 = arith.constant 0 : i32
    %c0_i32_2 = arith.constant 0 : i32
    return %c0_i32, %c0_i32_0, %c0_i32_1 : i32, i32, i32
  }
  func.func @transform_9(%arg0: i32) -> (i32, i32, i32) {
    %c0_i32 = arith.constant 0 : i32
    %c0_i32_0 = arith.constant 0 : i32
    %c0_i32_1 = arith.constant 0 : i32
    %c0_i32_2 = arith.constant 0 : i32
    return %c0_i32, %c0_i32_0, %c0_i32_1 : i32, i32, i32
  }
  func.func @transform_10(%arg0: i32) -> (i32, i32, i32) {
    %c0_i32 = arith.constant 0 : i32
    %c0_i32_0 = arith.constant 0 : i32
    %c0_i32_1 = arith.constant 0 : i32
    %c0_i32_2 = arith.constant 0 : i32
    return %c0_i32, %c0_i32_0, %c0_i32_1 : i32, i32, i32
  }
  func.func @transform_11(%arg0: i32) -> (i32, i32) {
    %c0_i32 = arith.constant 0 : i32
    %c0_i32_0 = arith.constant 0 : i32
    %c0_i32_1 = arith.constant 0 : i32
    return %c0_i32, %c0_i32_0 : i32, i32
  }
  func.func @transform_12(%arg0: i32) -> (i32, i32) {
    %c0_i32 = arith.constant 0 : i32
    %c0_i32_0 = arith.constant 0 : i32
    %c0_i32_1 = arith.constant 0 : i32
    return %c0_i32, %c0_i32_0 : i32, i32
  }
  func.func @transform_13(%arg0: i32) -> (i32, i32) {
    %c0_i32 = arith.constant 0 : i32
    %c0_i32_0 = arith.constant 0 : i32
    %c0_i32_1 = arith.constant 0 : i32
    return %c0_i32, %c0_i32_0 : i32, i32
  }
  func.func @transform_14(%arg0: i32) -> (i32, i32) {
    %c0_i32 = arith.constant 0 : i32
    %c0_i32_0 = arith.constant 0 : i32
    %c0_i32_1 = arith.constant 0 : i32
    return %c0_i32, %c0_i32_0 : i32, i32
  }
  func.func @transform_15(%arg0: i32) -> (i32, i32) {
    %c0_i32 = arith.constant 0 : i32
    %c0_i32_0 = arith.constant 0 : i32
    %c0_i32_1 = arith.constant 0 : i32
    return %c0_i32, %c0_i32_0 : i32, i32
  }
  func.func @transform_16(%arg0: i32) -> (i32, i32) {
    %c0_i32 = arith.constant 0 : i32
    %c0_i32_0 = arith.constant 0 : i32
    %c0_i32_1 = arith.constant 0 : i32
    return %c0_i32, %c0_i32_0 : i32, i32
  }
  func.func @transform_17(%arg0: i32) -> (i32, i32) {
    %c0_i32 = arith.constant 0 : i32
    %c0_i32_0 = arith.constant 0 : i32
    %c0_i32_1 = arith.constant 0 : i32
    return %c0_i32, %c0_i32_0 : i32, i32
  }
  func.func @transform_18(%arg0: i32) -> (i32, i32) {
    %c0_i32 = arith.constant 0 : i32
    %c0_i32_0 = arith.constant 0 : i32
    %c0_i32_1 = arith.constant 0 : i32
    return %c0_i32, %c0_i32_0 : i32, i32
  }
  func.func @transform_19(%arg0: i32) -> (i32, i32) {
    %c0_i32 = arith.constant 0 : i32
    %c0_i32_0 = arith.constant 0 : i32
    %c0_i32_1 = arith.constant 0 : i32
    return %c0_i32, %c0_i32_0 : i32, i32
  }
  func.func @transform_20(%arg0: i32) -> (i32, i32, i32) {
    %c0_i32 = arith.constant 0 : i32
    %c0_i32_0 = arith.constant 0 : i32
    %c0_i32_1 = arith.constant 0 : i32
    %c0_i32_2 = arith.constant 0 : i32
    return %c0_i32, %c0_i32_0, %c0_i32_1 : i32, i32, i32
  }
  func.func @transform_21(%arg0: i32) -> (i32, i32, i32) {
    %c0_i32 = arith.constant 0 : i32
    %c0_i32_0 = arith.constant 0 : i32
    %c0_i32_1 = arith.constant 0 : i32
    %c0_i32_2 = arith.constant 0 : i32
    return %c0_i32, %c0_i32_0, %c0_i32_1 : i32, i32, i32
  }
  func.func @transform_22(%arg0: i32) -> (i32, i32, i32) {
    %c0_i32 = arith.constant 0 : i32
    %c0_i32_0 = arith.constant 0 : i32
    %c0_i32_1 = arith.constant 0 : i32
    %c0_i32_2 = arith.constant 0 : i32
    return %c0_i32, %c0_i32_0, %c0_i32_1 : i32, i32, i32
  }
  func.func @transform_23(%arg0: i32) -> (i32, i32) {
    %c0_i32 = arith.constant 0 : i32
    %c0_i32_0 = arith.constant 0 : i32
    %c0_i32_1 = arith.constant 0 : i32
    return %c0_i32, %c0_i32_0 : i32, i32
  }
  func.func @transform_24(%arg0: i32) -> (i32, i32) {
    %c0_i32 = arith.constant 0 : i32
    %c0_i32_0 = arith.constant 0 : i32
    %c0_i32_1 = arith.constant 0 : i32
    return %c0_i32, %c0_i32_0 : i32, i32
  }
  func.func @transform_25(%arg0: i32) -> (i32, i32) {
    %c0_i32 = arith.constant 0 : i32
    %c0_i32_0 = arith.constant 0 : i32
    %c0_i32_1 = arith.constant 0 : i32
    return %c0_i32, %c0_i32_0 : i32, i32
  }
  func.func @transform_26(%arg0: i32) -> (i32, i32) {
    %c0_i32 = arith.constant 0 : i32
    %c0_i32_0 = arith.constant 0 : i32
    %c0_i32_1 = arith.constant 0 : i32
    return %c0_i32, %c0_i32_0 : i32, i32
  }
  func.func @transform_27(%arg0: i32) -> (i32, i32) {
    %c0_i32 = arith.constant 0 : i32
    %c0_i32_0 = arith.constant 0 : i32
    %c0_i32_1 = arith.constant 0 : i32
    return %c0_i32, %c0_i32_0 : i32, i32
  }
  func.func @transform_28(%arg0: i32) -> (i32, i32) {
    %c0_i32 = arith.constant 0 : i32
    %c0_i32_0 = arith.constant 0 : i32
    %c0_i32_1 = arith.constant 0 : i32
    return %c0_i32, %c0_i32_0 : i32, i32
  }
  func.func @transform_29(%arg0: i32) -> (i32, i32) {
    %c0_i32 = arith.constant 0 : i32
    %c0_i32_0 = arith.constant 0 : i32
    %c0_i32_1 = arith.constant 0 : i32
    return %c0_i32, %c0_i32_0 : i32, i32
  }
  func.func @transform_30(%arg0: i32) -> (i32, i32) {
    %c0_i32 = arith.constant 0 : i32
    %c0_i32_0 = arith.constant 0 : i32
    %c0_i32_1 = arith.constant 0 : i32
    return %c0_i32, %c0_i32_0 : i32, i32
  }
  func.func @transform_31(%arg0: i32) -> (i32, i32) {
    %c0_i32 = arith.constant 0 : i32
    %c0_i32_0 = arith.constant 0 : i32
    %c0_i32_1 = arith.constant 0 : i32
    return %c0_i32, %c0_i32_0 : i32, i32
  }
  func.func @transform_32(%arg0: i32) -> (i32, i32) {
    %c0_i32 = arith.constant 0 : i32
    %c0_i32_0 = arith.constant 0 : i32
    %c0_i32_1 = arith.constant 0 : i32
    return %c0_i32, %c0_i32_0 : i32, i32
  }
  func.func @transform_33(%arg0: i32) -> (i32, i32) {
    %c0_i32 = arith.constant 0 : i32
    %c0_i32_0 = arith.constant 0 : i32
    %c0_i32_1 = arith.constant 0 : i32
    return %c0_i32, %c0_i32_0 : i32, i32
  }
  func.func @transform_34(%arg0: i32) -> (i32, i32) {
    %c0_i32 = arith.constant 0 : i32
    %c0_i32_0 = arith.constant 0 : i32
    %c0_i32_1 = arith.constant 0 : i32
    return %c0_i32, %c0_i32_0 : i32, i32
  }
  func.func @transform_35(%arg0: i32) -> (i32, i32) {
    %c0_i32 = arith.constant 0 : i32
    %c0_i32_0 = arith.constant 0 : i32
    %c0_i32_1 = arith.constant 0 : i32
    return %c0_i32, %c0_i32_0 : i32, i32
  }
  func.func @transform_36(%arg0: i32) -> (i32, i32, i32) {
    %c0_i32 = arith.constant 0 : i32
    %c0_i32_0 = arith.constant 0 : i32
    %c0_i32_1 = arith.constant 0 : i32
    return %arg0, %c0_i32, %c0_i32_0 : i32, i32, i32
  }
}

</mosaic_0001>

<llo_original>
// kernel: crossvit_forward.1
$region0: #{crossvit_forward.1}
  #allocation0 [shape = 'u32[]', space=smem, size = 0x4, offset = 0x4, fixed_abs, tag = 'smem constant byte address 0x4 - core index']
  #allocation1 [shape = 'u32[72,128]{1,0:T(1,128)}', space=vmem, size = 0x9000, scoped, tag = 'internal scratch']
  %s0 = inlined_call_operand.smem [shape: u32[37], index: -1, kind: input, shape index: {}]
  %s1 = sld [smem:[%s0]]
  %s2 = scalar_lea.smem %s0, 1
  %s3 = sld [smem:[%s2]]
  %s4 = scalar_lea.smem %s0, 2
  %s5 = sld [smem:[%s4]]
  %s6 = scalar_lea.smem %s0, 3
  %s7 = sld [smem:[%s6]]
  %s8 = scalar_lea.smem %s0, 4
  %s9 = sld [smem:[%s8]]
  %s10 = scalar_lea.smem %s0, 5
  %s11 = sld [smem:[%s10]]
  %s12 = scalar_lea.smem %s0, 6
  %s13 = sld [smem:[%s12]]
  %s14 = scalar_lea.smem %s0, 7
  %s15 = sld [smem:[%s14]]
  %s16 = scalar_lea.smem %s0, 8
  %s17 = sld [smem:[%s16]]
  %s18 = scalar_lea.smem %s0, 9
  %s19 = sld [smem:[%s18]]
  %s20 = scalar_lea.smem %s0, 10
  %s21 = sld [smem:[%s20]]
  %s22 = scalar_lea.smem %s0, 11
  %s23 = sld [smem:[%s22]]
  %s24 = scalar_lea.smem %s0, 12
  %s25 = sld [smem:[%s24]]
  %s26 = scalar_lea.smem %s0, 13
  %s27 = sld [smem:[%s26]]
  %s28 = scalar_lea.smem %s0, 14
  %s29 = sld [smem:[%s28]]
  %s30 = scalar_lea.smem %s0, 15
  %s31 = sld [smem:[%s30]]
  %s32 = scalar_lea.smem %s0, 16
  %s33 = sld [smem:[%s32]]
  %s34 = scalar_lea.smem %s0, 17
  %s35 = sld [smem:[%s34]]
  %s36 = scalar_lea.smem %s0, 18
  %s37 = sld [smem:[%s36]]
  %s38 = scalar_lea.smem %s0, 19
  %s39 = sld [smem:[%s38]]
  %s40 = scalar_lea.smem %s0, 20
  %s41 = sld [smem:[%s40]]
  %s42 = scalar_lea.smem %s0, 21
  %s43 = sld [smem:[%s42]]
  %s44 = scalar_lea.smem %s0, 22
  %s45 = sld [smem:[%s44]]
  %s46 = scalar_lea.smem %s0, 23
  %s47 = sld [smem:[%s46]]
  %s48 = scalar_lea.smem %s0, 24
  %s49 = sld [smem:[%s48]]
  %s50 = scalar_lea.smem %s0, 25
  %s51 = sld [smem:[%s50]]
  %s52 = scalar_lea.smem %s0, 26
  %s53 = sld [smem:[%s52]]
  %s54 = scalar_lea.smem %s0, 27
  %s55 = sld [smem:[%s54]]
  %s56 = scalar_lea.smem %s0, 28
  %s57 = sld [smem:[%s56]]
  %s58 = scalar_lea.smem %s0, 29
  %s59 = sld [smem:[%s58]]
  %s60 = scalar_lea.smem %s0, 30
  %s61 = sld [smem:[%s60]]
  %s62 = scalar_lea.smem %s0, 31
  %s63 = sld [smem:[%s62]]
  %s64 = scalar_lea.smem %s0, 32
  %s65 = sld [smem:[%s64]]
  %s66 = scalar_lea.smem %s0, 33
  %s67 = sld [smem:[%s66]]
  %s68 = scalar_lea.smem %s0, 34
  %s69 = sld [smem:[%s68]]
  %s70 = scalar_lea.smem %s0, 35
  %s71 = sld [smem:[%s70]]
  %s72 = scalar_lea.smem %s0, 36
  %s73 = sld [smem:[%s72]]
  %s74 = sld [smem:[#allocation0]]
  $region201: #{crossvit_forward.1} parent=0
    _
  %s76 = ssub.s32 1, %s74
  %s77 = scalar_select 0, %s76, %s74
  $region1: #{crossvit_forward.1} parent=0
    #allocation2 [shape = 'u8[512]{0}', space=vmem, size = 0x400, scoped, tag = 'input window, operand 1, single buffered']
    #allocation3 [shape = 's32[2]{0}', space=sflag, size = 0x8, scoped, tag = 'scoped memory for crossvit_forward.1']
    #allocation4 [shape = 'u8[512]{0}', space=vmem, size = 0x400, scoped, tag = 'input window, operand 5, single buffered']
    #allocation5 [shape = 's32[1]{0}', space=sflag, size = 0x4, scoped, tag = 'scoped memory for crossvit_forward.1']
    #allocation6 [shape = 'u8[512]{0}', space=vmem, size = 0x400, scoped, tag = 'input window, operand 6, single buffered']
    #allocation7 [shape = 'u8[512]{0}', space=vmem, size = 0x400, scoped, tag = 'input window, operand 7, single buffered']
    #allocation8 [shape = 's32[1]{0}', space=sflag, size = 0x4, scoped, tag = 'scoped memory for crossvit_forward.1']
    #allocation9 [shape = 'u8[16384]{0}', space=vmem, size = 0x4000, scoped, tag = 'input window, operand 34, single buffered']
    #allocation10 [shape = 'u8[16384]{0}', space=vmem, size = 0x4000, scoped, tag = 'input window, operand 35, single buffered']
    #allocation11 [shape = 's32[1]{0}', space=sflag, size = 0x4, scoped, tag = 'scoped memory for crossvit_forward.1']
    %78 = vsyncpa [#allocation3], 0
    %79 = vsyncpa [#allocation5], 0
    %80 = vsyncpa [#allocation8], 0
    %81 = vsyncpa [#allocation11], 0
    loop: start=0, step=1, limit=4
    $region2: #{crossvit_forward.1} parent=1 // loop_pre_header
      _
    $region3: #{crossvit_forward.1} parent=1 // loop_header
      %s83 = sphi 0, %s87
      %p84 = scmp.ge.s32.totalorder %s83, 4
      %s93 = sphi 0, %s95
      %s96 = sphi 0, %s93
      %s97 = sphi 0, %s96
      %s113 = sphi 0, %s97
      %s117 = sphi 0, %s117
      %s119 = sphi 0, %s117
      %s120 = sphi 0, %s119
      %s134 = sphi 0, %s120
      %s138 = sphi 0, %s138
      %s140 = sphi 0, %s138
      %s141 = sphi 0, %s140
      %s155 = sphi 0, %s141
      %s159 = sphi 0, %s159
      %s161 = sphi 0, %s159
      %s162 = sphi 0, %s161
      %s176 = sphi 0, %s162
      %s180 = sphi 0, %s180
      %s182 = sphi 0, %s180
      %s183 = sphi 0, %s182
      %s197 = sphi 0, %s183
      %s201 = sphi 0, %s201
      %s203 = sphi 0, %s201
      %s204 = sphi 0, %s203
      %s218 = sphi 0, %s204
      %s222 = sphi 0, %s222
      %s224 = sphi 0, %s222
      %s225 = sphi 0, %s224
      %s239 = sphi 0, %s225
      %s243 = sphi 0, %s243
      %s245 = sphi 0, %s243
      %s246 = sphi 0, %s245
      %s260 = sphi 0, %s246
      %s264 = sphi 0, %s264
      %s266 = sphi 0, %s264
      %s267 = sphi 0, %s266
      %s281 = sphi 0, %s267
      %s285 = sphi 0, %s285
      %s287 = sphi 0, %s285
      %s288 = sphi 0, %s287
      %s302 = sphi 0, %s288
      %s306 = sphi 0, %s306
      %s308 = sphi 0, %s306
      %s309 = sphi 0, %s308
      %s323 = sphi 0, %s309
      %s327 = sphi 0, %s327
      %s329 = sphi 0, %s327
      %s330 = sphi 0, %s329
      %s344 = sphi 0, %s330
      %s348 = sphi 0, %s348
      %s350 = sphi 0, %s348
      %s351 = sphi 0, %s350
      %s365 = sphi 0, %s351
      %s369 = sphi 0, %s369
      %s371 = sphi 0, %s369
      %s372 = sphi 0, %s371
      %s386 = sphi 0, %s372
      %s390 = sphi 0, %s390
      %s392 = sphi 0, %s390
      %s393 = sphi 0, %s392
      %s407 = sphi 0, %s393
      %s411 = sphi 0, %s411
      %s413 = sphi 0, %s411
      %s414 = sphi 0, %s413
      %s428 = sphi 0, %s414
      %s432 = sphi 0, %s432
      %s434 = sphi 0, %s432
      %s435 = sphi 0, %s434
      %s449 = sphi 0, %s435
      %s453 = sphi 0, %s453
      %s455 = sphi 0, %s453
      %s456 = sphi 0, %s455
      %s470 = sphi 0, %s456
      %s474 = sphi 0, %s474
      %s476 = sphi 0, %s474
      %s477 = sphi 0, %s476
      %s491 = sphi 0, %s477
      %s495 = sphi 0, %s495
      %s497 = sphi 0, %s495
      %s498 = sphi 0, %s497
      %s512 = sphi 0, %s498
      %s516 = sphi 0, %s516
      %s518 = sphi 0, %s516
      %s519 = sphi 0, %s518
      %s533 = sphi 0, %s519
      %s537 = sphi 0, %s537
      %s539 = sphi 0, %s537
      %s540 = sphi 0, %s539
      %s554 = sphi 0, %s540
      %s558 = sphi 0, %s558
      %s560 = sphi 0, %s558
      %s561 = sphi 0, %s560
      %s575 = sphi 0, %s561
      %s579 = sphi 0, %s579
      %s581 = sphi 0, %s579
      %s582 = sphi 0, %s581
      %s596 = sphi 0, %s582
      %s600 = sphi 0, %s600
      %s602 = sphi 0, %s600
      %s603 = sphi 0, %s602
      %s617 = sphi 0, %s603
      %s621 = sphi 0, %s621
      %s623 = sphi 0, %s621
      %s624 = sphi 0, %s623
      %s638 = sphi 0, %s624
      %s642 = sphi 0, %s642
      %s644 = sphi 0, %s642
      %s645 = sphi 0, %s644
      %s659 = sphi 0, %s645
      %s663 = sphi 0, %s663
      %s665 = sphi 0, %s663
      %s666 = sphi 0, %s665
      %s680 = sphi 0, %s666
      %s684 = sphi 0, %s684
      %s686 = sphi 0, %s684
      %s687 = sphi 0, %s686
      %s701 = sphi 0, %s687
      %s705 = sphi 0, %s705
      %s707 = sphi 0, %s705
      %s708 = sphi 0, %s707
      %s722 = sphi 0, %s708
      %s726 = sphi 0, %s726
      %s728 = sphi 0, %s726
      %s729 = sphi 0, %s728
      %s743 = sphi 0, %s729
      %s747 = sphi 0, %s747
      %s749 = sphi 0, %s747
      %s750 = sphi 0, %s749
      %s764 = sphi 0, %s750
      %s768 = sphi 0, %s768
      %s770 = sphi 0, %s768
      %s771 = sphi 0, %s770
      %s785 = sphi 0, %s771
      %s789 = sphi 0, %s789
      %s791 = sphi 0, %s789
      %s792 = sphi 0, %s791
      %s806 = sphi 0, %s792
      %s810 = sphi 0, %s810
      %s812 = sphi 0, %s810
      %s813 = sphi 0, %s812
      %s827 = sphi 0, %s813
      %s831 = sphi 0, %s831
      %s833 = sphi 0, %s831
      %s834 = sphi 0, %s833
      %s848 = sphi 0, %s834
      %s854 = sphi 0, %s856
      %s857 = sphi 0, %s854
      %s858 = sphi 0, %s857
      %s874 = sphi 0, %s858
    $region4: #{crossvit_forward.1} parent=1 // loop_header_branch
      %86 = sbr.rel (%p84) target = $region8
    $region5: #{crossvit_forward.1} parent=1 // loop_body
      %s88 = ssub.s32 %s83, 1
      %s89 = ssub.s32 %s83, 2
      %s90 = sadd.s32 %s83, 1
      %s91 = ssub.s32 %s83, %s90
      %p92 = scmp.eq.s32.totalorder %s91, 0
      %s94 = sadd.s32 %s93, 1
      %s95 = scalar_select %p92, %s93, %s94
      %p98 = pneg %p92
      %p99 = scmp.eq.s32.totalorder %s83, 1
      %p100 = por %p98, %p99
      %p101 = scmp.ne.s32.totalorder %s93, %s96
      %p102 = scmp.eq.s32.totalorder %s83, 0
      %p103 = por %p101, %p102
      %p104 = scmp.ne.s32.totalorder %s93, %s96
      %p105 = scmp.eq.s32.totalorder %s88, 1
      %p106 = por %p104, %p105
      %p107 = scmp.ne.s32.totalorder %s96, %s97
      %p108 = scmp.eq.s32.totalorder %s88, 0
      %p109 = por %p107, %p108
      %p110 = scmp.ne.s32.totalorder %s96, %s97
      %p111 = scmp.eq.s32.totalorder %s89, 1
      %p112 = por %p110, %p111
      %p114 = scmp.ne.s32.totalorder %s97, %s113
      %p115 = scmp.eq.s32.totalorder %s89, 0
      %p116 = por %p114, %p115
      %s118 = sadd.s32 %s117, 1
      %p121 = scmp.eq.s32.totalorder %s83, 1
      %p122 = scmp.ne.s32.totalorder %s117, %s119
      %p123 = scmp.eq.s32.totalorder %s83, 0
      %p124 = por %p122, %p123
      %p125 = scmp.ne.s32.totalorder %s117, %s119
      %p126 = scmp.eq.s32.totalorder %s88, 1
      %p127 = por %p125, %p126
      %p128 = scmp.ne.s32.totalorder %s119, %s120
      %p129 = scmp.eq.s32.totalorder %s88, 0
      %p130 = por %p128, %p129
      %p131 = scmp.ne.s32.totalorder %s119, %s120
      %p132 = scmp.eq.s32.totalorder %s89, 1
      %p133 = por %p131, %p132
      %p135 = scmp.ne.s32.totalorder %s120, %s134
      %p136 = scmp.eq.s32.totalorder %s89, 0
      %p137 = por %p135, %p136
      %s139 = sadd.s32 %s138, 1
      %p142 = scmp.eq.s32.totalorder %s83, 1
      %p143 = scmp.ne.s32.totalorder %s138, %s140
      %p144 = scmp.eq.s32.totalorder %s83, 0
      %p145 = por %p143, %p144
      %p146 = scmp.ne.s32.totalorder %s138, %s140
      %p147 = scmp.eq.s32.totalorder %s88, 1
      %p148 = por %p146, %p147
      %p149 = scmp.ne.s32.totalorder %s140, %s141
      %p150 = scmp.eq.s32.totalorder %s88, 0
      %p151 = por %p149, %p150
      %p152 = scmp.ne.s32.totalorder %s140, %s141
      %p153 = scmp.eq.s32.totalorder %s89, 1
      %p154 = por %p152, %p153
      %p156 = scmp.ne.s32.totalorder %s141, %s155
      %p157 = scmp.eq.s32.totalorder %s89, 0
      %p158 = por %p156, %p157
      %s160 = sadd.s32 %s159, 1
      %p163 = scmp.eq.s32.totalorder %s83, 1
      %p164 = scmp.ne.s32.totalorder %s159, %s161
      %p165 = scmp.eq.s32.totalorder %s83, 0
      %p166 = por %p164, %p165
      %p167 = scmp.ne.s32.totalorder %s159, %s161
      %p168 = scmp.eq.s32.totalorder %s88, 1
      %p169 = por %p167, %p168
      %p170 = scmp.ne.s32.totalorder %s161, %s162
      %p171 = scmp.eq.s32.totalorder %s88, 0
      %p172 = por %p170, %p171
      %p173 = scmp.ne.s32.totalorder %s161, %s162
      %p174 = scmp.eq.s32.totalorder %s89, 1
      %p175 = por %p173, %p174
      %p177 = scmp.ne.s32.totalorder %s162, %s176
      %p178 = scmp.eq.s32.totalorder %s89, 0
      %p179 = por %p177, %p178
      %s181 = sadd.s32 %s180, 1
      %p184 = scmp.eq.s32.totalorder %s83, 1
      %p185 = scmp.ne.s32.totalorder %s180, %s182
      %p186 = scmp.eq.s32.totalorder %s83, 0
      %p187 = por %p185, %p186
      %p188 = scmp.ne.s32.totalorder %s180, %s182
      %p189 = scmp.eq.s32.totalorder %s88, 1
      %p190 = por %p188, %p189
      %p191 = scmp.ne.s32.totalorder %s182, %s183
      %p192 = scmp.eq.s32.totalorder %s88, 0
      %p193 = por %p191, %p192
      %p194 = scmp.ne.s32.totalorder %s182, %s183
      %p195 = scmp.eq.s32.totalorder %s89, 1
      %p196 = por %p194, %p195
      %p198 = scmp.ne.s32.totalorder %s183, %s197
      %p199 = scmp.eq.s32.totalorder %s89, 0
      %p200 = por %p198, %p199
      %s202 = sadd.s32 %s201, 1
      %p205 = scmp.eq.s32.totalorder %s83, 1
      %p206 = scmp.ne.s32.totalorder %s201, %s203
      %p207 = scmp.eq.s32.totalorder %s83, 0
      %p208 = por %p206, %p207
      %p209 = scmp.ne.s32.totalorder %s201, %s203
      %p210 = scmp.eq.s32.totalorder %s88, 1
      %p211 = por %p209, %p210
      %p212 = scmp.ne.s32.totalorder %s203, %s204
      %p213 = scmp.eq.s32.totalorder %s88, 0
      %p214 = por %p212, %p213
      %p215 = scmp.ne.s32.totalorder %s203, %s204
      %p216 = scmp.eq.s32.totalorder %s89, 1
      %p217 = por %p215, %p216
      %p219 = scmp.ne.s32.totalorder %s204, %s218
      %p220 = scmp.eq.s32.totalorder %s89, 0
      %p221 = por %p219, %p220
      %s223 = sadd.s32 %s222, 1
      %p226 = scmp.eq.s32.totalorder %s83, 1
      %p227 = scmp.ne.s32.totalorder %s222, %s224
      %p228 = scmp.eq.s32.totalorder %s83, 0
      %p229 = por %p227, %p228
      %p230 = scmp.ne.s32.totalorder %s222, %s224
      %p231 = scmp.eq.s32.totalorder %s88, 1
      %p232 = por %p230, %p231
      %p233 = scmp.ne.s32.totalorder %s224, %s225
      %p234 = scmp.eq.s32.totalorder %s88, 0
      %p235 = por %p233, %p234
      %p236 = scmp.ne.s32.totalorder %s224, %s225
      %p237 = scmp.eq.s32.totalorder %s89, 1
      %p238 = por %p236, %p237
      %p240 = scmp.ne.s32.totalorder %s225, %s239
      %p241 = scmp.eq.s32.totalorder %s89, 0
      %p242 = por %p240, %p241
      %s244 = sadd.s32 %s243, 1
      %p247 = scmp.eq.s32.totalorder %s83, 1
      %p248 = scmp.ne.s32.totalorder %s243, %s245
      %p249 = scmp.eq.s32.totalorder %s83, 0
      %p250 = por %p248, %p249
      %p251 = scmp.ne.s32.totalorder %s243, %s245
      %p252 = scmp.eq.s32.totalorder %s88, 1
      %p253 = por %p251, %p252
      %p254 = scmp.ne.s32.totalorder %s245, %s246
      %p255 = scmp.eq.s32.totalorder %s88, 0
      %p256 = por %p254, %p255
      %p257 = scmp.ne.s32.totalorder %s245, %s246
      %p258 = scmp.eq.s32.totalorder %s89, 1
      %p259 = por %p257, %p258
      %p261 = scmp.ne.s32.totalorder %s246, %s260
      %p262 = scmp.eq.s32.totalorder %s89, 0
      %p263 = por %p261, %p262
      %s265 = sadd.s32 %s264, 1
      %p268 = scmp.eq.s32.totalorder %s83, 1
      %p269 = scmp.ne.s32.totalorder %s264, %s266
      %p270 = scmp.eq.s32.totalorder %s83, 0
      %p271 = por %p269, %p270
      %p272 = scmp.ne.s32.totalorder %s264, %s266
      %p273 = scmp.eq.s32.totalorder %s88, 1
      %p274 = por %p272, %p273
      %p275 = scmp.ne.s32.totalorder %s266, %s267
      %p276 = scmp.eq.s32.totalorder %s88, 0
      %p277 = por %p275, %p276
      %p278 = scmp.ne.s32.totalorder %s266, %s267
      %p279 = scmp.eq.s32.totalorder %s89, 1
      %p280 = por %p278, %p279
      %p282 = scmp.ne.s32.totalorder %s267, %s281
      %p283 = scmp.eq.s32.totalorder %s89, 0
      %p284 = por %p282, %p283
      %s286 = sadd.s32 %s285, 1
      %p289 = scmp.eq.s32.totalorder %s83, 1
      %p290 = scmp.ne.s32.totalorder %s285, %s287
      %p291 = scmp.eq.s32.totalorder %s83, 0
      %p292 = por %p290, %p291
      %p293 = scmp.ne.s32.totalorder %s285, %s287
      %p294 = scmp.eq.s32.totalorder %s88, 1
      %p295 = por %p293, %p294
      %p296 = scmp.ne.s32.totalorder %s287, %s288
      %p297 = scmp.eq.s32.totalorder %s88, 0
      %p298 = por %p296, %p297
      %p299 = scmp.ne.s32.totalorder %s287, %s288
      %p300 = scmp.eq.s32.totalorder %s89, 1
      %p301 = por %p299, %p300
      %p303 = scmp.ne.s32.totalorder %s288, %s302
      %p304 = scmp.eq.s32.totalorder %s89, 0
      %p305 = por %p303, %p304
      %s307 = sadd.s32 %s306, 1
      %p310 = scmp.eq.s32.totalorder %s83, 1
      %p311 = scmp.ne.s32.totalorder %s306, %s308
      %p312 = scmp.eq.s32.totalorder %s83, 0
      %p313 = por %p311, %p312
      %p314 = scmp.ne.s32.totalorder %s306, %s308
      %p315 = scmp.eq.s32.totalorder %s88, 1
      %p316 = por %p314, %p315
      %p317 = scmp.ne.s32.totalorder %s308, %s309
      %p318 = scmp.eq.s32.totalorder %s88, 0
      %p319 = por %p317, %p318
      %p320 = scmp.ne.s32.totalorder %s308, %s309
      %p321 = scmp.eq.s32.totalorder %s89, 1
      %p322 = por %p320, %p321
      %p324 = scmp.ne.s32.totalorder %s309, %s323
      %p325 = scmp.eq.s32.totalorder %s89, 0
      %p326 = por %p324, %p325
      %s328 = sadd.s32 %s327, 1
      %p331 = scmp.eq.s32.totalorder %s83, 1
      %p332 = scmp.ne.s32.totalorder %s327, %s329
      %p333 = scmp.eq.s32.totalorder %s83, 0
      %p334 = por %p332, %p333
      %p335 = scmp.ne.s32.totalorder %s327, %s329
      %p336 = scmp.eq.s32.totalorder %s88, 1
      %p337 = por %p335, %p336
      %p338 = scmp.ne.s32.totalorder %s329, %s330
      %p339 = scmp.eq.s32.totalorder %s88, 0
      %p340 = por %p338, %p339
      %p341 = scmp.ne.s32.totalorder %s329, %s330
      %p342 = scmp.eq.s32.totalorder %s89, 1
      %p343 = por %p341, %p342
      %p345 = scmp.ne.s32.totalorder %s330, %s344
      %p346 = scmp.eq.s32.totalorder %s89, 0
      %p347 = por %p345, %p346
      %s349 = sadd.s32 %s348, 1
      %p352 = scmp.eq.s32.totalorder %s83, 1
      %p353 = scmp.ne.s32.totalorder %s348, %s350
      %p354 = scmp.eq.s32.totalorder %s83, 0
      %p355 = por %p353, %p354
      %p356 = scmp.ne.s32.totalorder %s348, %s350
      %p357 = scmp.eq.s32.totalorder %s88, 1
      %p358 = por %p356, %p357
      %p359 = scmp.ne.s32.totalorder %s350, %s351
      %p360 = scmp.eq.s32.totalorder %s88, 0
      %p361 = por %p359, %p360
      %p362 = scmp.ne.s32.totalorder %s350, %s351
      %p363 = scmp.eq.s32.totalorder %s89, 1
      %p364 = por %p362, %p363
      %p366 = scmp.ne.s32.totalorder %s351, %s365
      %p367 = scmp.eq.s32.totalorder %s89, 0
      %p368 = por %p366, %p367
      %s370 = sadd.s32 %s369, 1
      %p373 = scmp.eq.s32.totalorder %s83, 1
      %p374 = scmp.ne.s32.totalorder %s369, %s371
      %p375 = scmp.eq.s32.totalorder %s83, 0
      %p376 = por %p374, %p375
      %p377 = scmp.ne.s32.totalorder %s369, %s371
      %p378 = scmp.eq.s32.totalorder %s88, 1
      %p379 = por %p377, %p378
      %p380 = scmp.ne.s32.totalorder %s371, %s372
      %p381 = scmp.eq.s32.totalorder %s88, 0
      %p382 = por %p380, %p381
      %p383 = scmp.ne.s32.totalorder %s371, %s372
      %p384 = scmp.eq.s32.totalorder %s89, 1
      %p385 = por %p383, %p384
      %p387 = scmp.ne.s32.totalorder %s372, %s386
      %p388 = scmp.eq.s32.totalorder %s89, 0
      %p389 = por %p387, %p388
      %s391 = sadd.s32 %s390, 1
      %p394 = scmp.eq.s32.totalorder %s83, 1
      %p395 = scmp.ne.s32.totalorder %s390, %s392
      %p396 = scmp.eq.s32.totalorder %s83, 0
      %p397 = por %p395, %p396
      %p398 = scmp.ne.s32.totalorder %s390, %s392
      %p399 = scmp.eq.s32.totalorder %s88, 1
      %p400 = por %p398, %p399
      %p401 = scmp.ne.s32.totalorder %s392, %s393
      %p402 = scmp.eq.s32.totalorder %s88, 0
      %p403 = por %p401, %p402
      %p404 = scmp.ne.s32.totalorder %s392, %s393
      %p405 = scmp.eq.s32.totalorder %s89, 1
      %p406 = por %p404, %p405
      %p408 = scmp.ne.s32.totalorder %s393, %s407
      %p409 = scmp.eq.s32.totalorder %s89, 0
      %p410 = por %p408, %p409
      %s412 = sadd.s32 %s411, 1
      %p415 = scmp.eq.s32.totalorder %s83, 1
      %p416 = scmp.ne.s32.totalorder %s411, %s413
      %p417 = scmp.eq.s32.totalorder %s83, 0
      %p418 = por %p416, %p417
      %p419 = scmp.ne.s32.totalorder %s411, %s413
      %p420 = scmp.eq.s32.totalorder %s88, 1
      %p421 = por %p419, %p420
      %p422 = scmp.ne.s32.totalorder %s413, %s414
      %p423 = scmp.eq.s32.totalorder %s88, 0
      %p424 = por %p422, %p423
      %p425 = scmp.ne.s32.totalorder %s413, %s414
      %p426 = scmp.eq.s32.totalorder %s89, 1
      %p427 = por %p425, %p426
      %p429 = scmp.ne.s32.totalorder %s414, %s428
      %p430 = scmp.eq.s32.totalorder %s89, 0
      %p431 = por %p429, %p430
      %s433 = sadd.s32 %s432, 1
      %p436 = scmp.eq.s32.totalorder %s83, 1
      %p437 = scmp.ne.s32.totalorder %s432, %s434
      %p438 = scmp.eq.s32.totalorder %s83, 0
      %p439 = por %p437, %p438
      %p440 = scmp.ne.s32.totalorder %s432, %s434
      %p441 = scmp.eq.s32.totalorder %s88, 1
      %p442 = por %p440, %p441
      %p443 = scmp.ne.s32.totalorder %s434, %s435
      %p444 = scmp.eq.s32.totalorder %s88, 0
      %p445 = por %p443, %p444
      %p446 = scmp.ne.s32.totalorder %s434, %s435
      %p447 = scmp.eq.s32.totalorder %s89, 1
      %p448 = por %p446, %p447
      %p450 = scmp.ne.s32.totalorder %s435, %s449
      %p451 = scmp.eq.s32.totalorder %s89, 0
      %p452 = por %p450, %p451
      %s454 = sadd.s32 %s453, 1
      %p457 = scmp.eq.s32.totalorder %s83, 1
      %p458 = scmp.ne.s32.totalorder %s453, %s455
      %p459 = scmp.eq.s32.totalorder %s83, 0
      %p460 = por %p458, %p459
      %p461 = scmp.ne.s32.totalorder %s453, %s455
      %p462 = scmp.eq.s32.totalorder %s88, 1
      %p463 = por %p461, %p462
      %p464 = scmp.ne.s32.totalorder %s455, %s456
      %p465 = scmp.eq.s32.totalorder %s88, 0
      %p466 = por %p464, %p465
      %p467 = scmp.ne.s32.totalorder %s455, %s456
      %p468 = scmp.eq.s32.totalorder %s89, 1
      %p469 = por %p467, %p468
      %p471 = scmp.ne.s32.totalorder %s456, %s470
      %p472 = scmp.eq.s32.totalorder %s89, 0
      %p473 = por %p471, %p472
      %s475 = sadd.s32 %s474, 1
      %p478 = scmp.eq.s32.totalorder %s83, 1
      %p479 = scmp.ne.s32.totalorder %s474, %s476
      %p480 = scmp.eq.s32.totalorder %s83, 0
      %p481 = por %p479, %p480
      %p482 = scmp.ne.s32.totalorder %s474, %s476
      %p483 = scmp.eq.s32.totalorder %s88, 1
      %p484 = por %p482, %p483
      %p485 = scmp.ne.s32.totalorder %s476, %s477
      %p486 = scmp.eq.s32.totalorder %s88, 0
      %p487 = por %p485, %p486
      %p488 = scmp.ne.s32.totalorder %s476, %s477
      %p489 = scmp.eq.s32.totalorder %s89, 1
      %p490 = por %p488, %p489
      %p492 = scmp.ne.s32.totalorder %s477, %s491
      %p493 = scmp.eq.s32.totalorder %s89, 0
      %p494 = por %p492, %p493
      %s496 = sadd.s32 %s495, 1
      %p499 = scmp.eq.s32.totalorder %s83, 1
      %p500 = scmp.ne.s32.totalorder %s495, %s497
      %p501 = scmp.eq.s32.totalorder %s83, 0
      %p502 = por %p500, %p501
      %p503 = scmp.ne.s32.totalorder %s495, %s497
      %p504 = scmp.eq.s32.totalorder %s88, 1
      %p505 = por %p503, %p504
      %p506 = scmp.ne.s32.totalorder %s497, %s498
      %p507 = scmp.eq.s32.totalorder %s88, 0
      %p508 = por %p506, %p507
      %p509 = scmp.ne.s32.totalorder %s497, %s498
      %p510 = scmp.eq.s32.totalorder %s89, 1
      %p511 = por %p509, %p510
      %p513 = scmp.ne.s32.totalorder %s498, %s512
      %p514 = scmp.eq.s32.totalorder %s89, 0
      %p515 = por %p513, %p514
      %s517 = sadd.s32 %s516, 1
      %p520 = scmp.eq.s32.totalorder %s83, 1
      %p521 = scmp.ne.s32.totalorder %s516, %s518
      %p522 = scmp.eq.s32.totalorder %s83, 0
      %p523 = por %p521, %p522
      %p524 = scmp.ne.s32.totalorder %s516, %s518
      %p525 = scmp.eq.s32.totalorder %s88, 1
      %p526 = por %p524, %p525
      %p527 = scmp.ne.s32.totalorder %s518, %s519
      %p528 = scmp.eq.s32.totalorder %s88, 0
      %p529 = por %p527, %p528
      %p530 = scmp.ne.s32.totalorder %s518, %s519
      %p531 = scmp.eq.s32.totalorder %s89, 1
      %p532 = por %p530, %p531
      %p534 = scmp.ne.s32.totalorder %s519, %s533
      %p535 = scmp.eq.s32.totalorder %s89, 0
      %p536 = por %p534, %p535
      %s538 = sadd.s32 %s537, 1
      %p541 = scmp.eq.s32.totalorder %s83, 1
      %p542 = scmp.ne.s32.totalorder %s537, %s539
      %p543 = scmp.eq.s32.totalorder %s83, 0
      %p544 = por %p542, %p543
      %p545 = scmp.ne.s32.totalorder %s537, %s539
      %p546 = scmp.eq.s32.totalorder %s88, 1
      %p547 = por %p545, %p546
      %p548 = scmp.ne.s32.totalorder %s539, %s540
      %p549 = scmp.eq.s32.totalorder %s88, 0
      %p550 = por %p548, %p549
      %p551 = scmp.ne.s32.totalorder %s539, %s540
      %p552 = scmp.eq.s32.totalorder %s89, 1
      %p553 = por %p551, %p552
      %p555 = scmp.ne.s32.totalorder %s540, %s554
      %p556 = scmp.eq.s32.totalorder %s89, 0
      %p557 = por %p555, %p556
      %s559 = sadd.s32 %s558, 1
      %p562 = scmp.eq.s32.totalorder %s83, 1
      %p563 = scmp.ne.s32.totalorder %s558, %s560
      %p564 = scmp.eq.s32.totalorder %s83, 0
      %p565 = por %p563, %p564
      %p566 = scmp.ne.s32.totalorder %s558, %s560
      %p567 = scmp.eq.s32.totalorder %s88, 1
      %p568 = por %p566, %p567
      %p569 = scmp.ne.s32.totalorder %s560, %s561
      %p570 = scmp.eq.s32.totalorder %s88, 0
      %p571 = por %p569, %p570
      %p572 = scmp.ne.s32.totalorder %s560, %s561
      %p573 = scmp.eq.s32.totalorder %s89, 1
      %p574 = por %p572, %p573
      %p576 = scmp.ne.s32.totalorder %s561, %s575
      %p577 = scmp.eq.s32.totalorder %s89, 0
      %p578 = por %p576, %p577
      %s580 = sadd.s32 %s579, 1
      %p583 = scmp.eq.s32.totalorder %s83, 1
      %p584 = scmp.ne.s32.totalorder %s579, %s581
      %p585 = scmp.eq.s32.totalorder %s83, 0
      %p586 = por %p584, %p585
      %p587 = scmp.ne.s32.totalorder %s579, %s581
      %p588 = scmp.eq.s32.totalorder %s88, 1
      %p589 = por %p587, %p588
      %p590 = scmp.ne.s32.totalorder %s581, %s582
      %p591 = scmp.eq.s32.totalorder %s88, 0
      %p592 = por %p590, %p591
      %p593 = scmp.ne.s32.totalorder %s581, %s582
      %p594 = scmp.eq.s32.totalorder %s89, 1
      %p595 = por %p593, %p594
      %p597 = scmp.ne.s32.totalorder %s582, %s596
      %p598 = scmp.eq.s32.totalorder %s89, 0
      %p599 = por %p597, %p598
      %s601 = sadd.s32 %s600, 1
      %p604 = scmp.eq.s32.totalorder %s83, 1
      %p605 = scmp.ne.s32.totalorder %s600, %s602
      %p606 = scmp.eq.s32.totalorder %s83, 0
      %p607 = por %p605, %p606
      %p608 = scmp.ne.s32.totalorder %s600, %s602
      %p609 = scmp.eq.s32.totalorder %s88, 1
      %p610 = por %p608, %p609
      %p611 = scmp.ne.s32.totalorder %s602, %s603
      %p612 = scmp.eq.s32.totalorder %s88, 0
      %p613 = por %p611, %p612
      %p614 = scmp.ne.s32.totalorder %s602, %s603
      %p615 = scmp.eq.s32.totalorder %s89, 1
      %p616 = por %p614, %p615
      %p618 = scmp.ne.s32.totalorder %s603, %s617
      %p619 = scmp.eq.s32.totalorder %s89, 0
      %p620 = por %p618, %p619
      %s622 = sadd.s32 %s621, 1
      %p625 = scmp.eq.s32.totalorder %s83, 1
      %p626 = scmp.ne.s32.totalorder %s621, %s623
      %p627 = scmp.eq.s32.totalorder %s83, 0
      %p628 = por %p626, %p627
      %p629 = scmp.ne.s32.totalorder %s621, %s623
      %p630 = scmp.eq.s32.totalorder %s88, 1
      %p631 = por %p629, %p630
      %p632 = scmp.ne.s32.totalorder %s623, %s624
      %p633 = scmp.eq.s32.totalorder %s88, 0
      %p634 = por %p632, %p633
      %p635 = scmp.ne.s32.totalorder %s623, %s624
      %p636 = scmp.eq.s32.totalorder %s89, 1
      %p637 = por %p635, %p636
      %p639 = scmp.ne.s32.totalorder %s624, %s638
      %p640 = scmp.eq.s32.totalorder %s89, 0
      %p641 = por %p639, %p640
      %s643 = sadd.s32 %s642, 1
      %p646 = scmp.eq.s32.totalorder %s83, 1
      %p647 = scmp.ne.s32.totalorder %s642, %s644
      %p648 = scmp.eq.s32.totalorder %s83, 0
      %p649 = por %p647, %p648
      %p650 = scmp.ne.s32.totalorder %s642, %s644
      %p651 = scmp.eq.s32.totalorder %s88, 1
      %p652 = por %p650, %p651
      %p653 = scmp.ne.s32.totalorder %s644, %s645
      %p654 = scmp.eq.s32.totalorder %s88, 0
      %p655 = por %p653, %p654
      %p656 = scmp.ne.s32.totalorder %s644, %s645
      %p657 = scmp.eq.s32.totalorder %s89, 1
      %p658 = por %p656, %p657
      %p660 = scmp.ne.s32.totalorder %s645, %s659
      %p661 = scmp.eq.s32.totalorder %s89, 0
      %p662 = por %p660, %p661
      %s664 = sadd.s32 %s663, 1
      %p667 = scmp.eq.s32.totalorder %s83, 1
      %p668 = scmp.ne.s32.totalorder %s663, %s665
      %p669 = scmp.eq.s32.totalorder %s83, 0
      %p670 = por %p668, %p669
      %p671 = scmp.ne.s32.totalorder %s663, %s665
      %p672 = scmp.eq.s32.totalorder %s88, 1
      %p673 = por %p671, %p672
      %p674 = scmp.ne.s32.totalorder %s665, %s666
      %p675 = scmp.eq.s32.totalorder %s88, 0
      %p676 = por %p674, %p675
      %p677 = scmp.ne.s32.totalorder %s665, %s666
      %p678 = scmp.eq.s32.totalorder %s89, 1
      %p679 = por %p677, %p678
      %p681 = scmp.ne.s32.totalorder %s666, %s680
      %p682 = scmp.eq.s32.totalorder %s89, 0
      %p683 = por %p681, %p682
      %s685 = sadd.s32 %s684, 1
      %p688 = scmp.eq.s32.totalorder %s83, 1
      %p689 = scmp.ne.s32.totalorder %s684, %s686
      %p690 = scmp.eq.s32.totalorder %s83, 0
      %p691 = por %p689, %p690
      %p692 = scmp.ne.s32.totalorder %s684, %s686
      %p693 = scmp.eq.s32.totalorder %s88, 1
      %p694 = por %p692, %p693
      %p695 = scmp.ne.s32.totalorder %s686, %s687
      %p696 = scmp.eq.s32.totalorder %s88, 0
      %p697 = por %p695, %p696
      %p698 = scmp.ne.s32.totalorder %s686, %s687
      %p699 = scmp.eq.s32.totalorder %s89, 1
      %p700 = por %p698, %p699
      %p702 = scmp.ne.s32.totalorder %s687, %s701
      %p703 = scmp.eq.s32.totalorder %s89, 0
      %p704 = por %p702, %p703
      %s706 = sadd.s32 %s705, 1
      %p709 = scmp.eq.s32.totalorder %s83, 1
      %p710 = scmp.ne.s32.totalorder %s705, %s707
      %p711 = scmp.eq.s32.totalorder %s83, 0
      %p712 = por %p710, %p711
      %p713 = scmp.ne.s32.totalorder %s705, %s707
      %p714 = scmp.eq.s32.totalorder %s88, 1
      %p715 = por %p713, %p714
      %p716 = scmp.ne.s32.totalorder %s707, %s708
      %p717 = scmp.eq.s32.totalorder %s88, 0
      %p718 = por %p716, %p717
      %p719 = scmp.ne.s32.totalorder %s707, %s708
      %p720 = scmp.eq.s32.totalorder %s89, 1
      %p721 = por %p719, %p720
      %p723 = scmp.ne.s32.totalorder %s708, %s722
      %p724 = scmp.eq.s32.totalorder %s89, 0
      %p725 = por %p723, %p724
      %s727 = sadd.s32 %s726, 1
      %p730 = scmp.eq.s32.totalorder %s83, 1
      %p731 = scmp.ne.s32.totalorder %s726, %s728
      %p732 = scmp.eq.s32.totalorder %s83, 0
      %p733 = por %p731, %p732
      %p734 = scmp.ne.s32.totalorder %s726, %s728
      %p735 = scmp.eq.s32.totalorder %s88, 1
      %p736 = por %p734, %p735
      %p737 = scmp.ne.s32.totalorder %s728, %s729
      %p738 = scmp.eq.s32.totalorder %s88, 0
      %p739 = por %p737, %p738
      %p740 = scmp.ne.s32.totalorder %s728, %s729
      %p741 = scmp.eq.s32.totalorder %s89, 1
      %p742 = por %p740, %p741
      %p744 = scmp.ne.s32.totalorder %s729, %s743
      %p745 = scmp.eq.s32.totalorder %s89, 0
      %p746 = por %p744, %p745
      %s748 = sadd.s32 %s747, 1
      %p751 = scmp.eq.s32.totalorder %s83, 1
      %p752 = scmp.ne.s32.totalorder %s747, %s749
      %p753 = scmp.eq.s32.totalorder %s83, 0
      %p754 = por %p752, %p753
      %p755 = scmp.ne.s32.totalorder %s747, %s749
      %p756 = scmp.eq.s32.totalorder %s88, 1
      %p757 = por %p755, %p756
      %p758 = scmp.ne.s32.totalorder %s749, %s750
      %p759 = scmp.eq.s32.totalorder %s88, 0
      %p760 = por %p758, %p759
      %p761 = scmp.ne.s32.totalorder %s749, %s750
      %p762 = scmp.eq.s32.totalorder %s89, 1
      %p763 = por %p761, %p762
      %p765 = scmp.ne.s32.totalorder %s750, %s764
      %p766 = scmp.eq.s32.totalorder %s89, 0
      %p767 = por %p765, %p766
      %s769 = sadd.s32 %s768, 1
      %p772 = scmp.eq.s32.totalorder %s83, 1
      %p773 = scmp.ne.s32.totalorder %s768, %s770
      %p774 = scmp.eq.s32.totalorder %s83, 0
      %p775 = por %p773, %p774
      %p776 = scmp.ne.s32.totalorder %s768, %s770
      %p777 = scmp.eq.s32.totalorder %s88, 1
      %p778 = por %p776, %p777
      %p779 = scmp.ne.s32.totalorder %s770, %s771
      %p780 = scmp.eq.s32.totalorder %s88, 0
      %p781 = por %p779, %p780
      %p782 = scmp.ne.s32.totalorder %s770, %s771
      %p783 = scmp.eq.s32.totalorder %s89, 1
      %p784 = por %p782, %p783
      %p786 = scmp.ne.s32.totalorder %s771, %s785
      %p787 = scmp.eq.s32.totalorder %s89, 0
      %p788 = por %p786, %p787
      %s790 = sadd.s32 %s789, 1
      %p793 = scmp.eq.s32.totalorder %s83, 1
      %p794 = scmp.ne.s32.totalorder %s789, %s791
      %p795 = scmp.eq.s32.totalorder %s83, 0
      %p796 = por %p794, %p795
      %p797 = scmp.ne.s32.totalorder %s789, %s791
      %p798 = scmp.eq.s32.totalorder %s88, 1
      %p799 = por %p797, %p798
      %p800 = scmp.ne.s32.totalorder %s791, %s792
      %p801 = scmp.eq.s32.totalorder %s88, 0
      %p802 = por %p800, %p801
      %p803 = scmp.ne.s32.totalorder %s791, %s792
      %p804 = scmp.eq.s32.totalorder %s89, 1
      %p805 = por %p803, %p804
      %p807 = scmp.ne.s32.totalorder %s792, %s806
      %p808 = scmp.eq.s32.totalorder %s89, 0
      %p809 = por %p807, %p808
      %s811 = sadd.s32 %s810, 1
      %p814 = scmp.eq.s32.totalorder %s83, 1
      %p815 = scmp.ne.s32.totalorder %s810, %s812
      %p816 = scmp.eq.s32.totalorder %s83, 0
      %p817 = por %p815, %p816
      %p818 = scmp.ne.s32.totalorder %s810, %s812
      %p819 = scmp.eq.s32.totalorder %s88, 1
      %p820 = por %p818, %p819
      %p821 = scmp.ne.s32.totalorder %s812, %s813
      %p822 = scmp.eq.s32.totalorder %s88, 0
      %p823 = por %p821, %p822
      %p824 = scmp.ne.s32.totalorder %s812, %s813
      %p825 = scmp.eq.s32.totalorder %s89, 1
      %p826 = por %p824, %p825
      %p828 = scmp.ne.s32.totalorder %s813, %s827
      %p829 = scmp.eq.s32.totalorder %s89, 0
      %p830 = por %p828, %p829
      %s832 = sadd.s32 %s831, 1
      %p835 = scmp.eq.s32.totalorder %s83, 1
      %p836 = scmp.ne.s32.totalorder %s831, %s833
      %p837 = scmp.eq.s32.totalorder %s83, 0
      %p838 = por %p836, %p837
      %p839 = scmp.ne.s32.totalorder %s831, %s833
      %p840 = scmp.eq.s32.totalorder %s88, 1
      %p841 = por %p839, %p840
      %p842 = scmp.ne.s32.totalorder %s833, %s834
      %p843 = scmp.eq.s32.totalorder %s88, 0
      %p844 = por %p842, %p843
      %p845 = scmp.ne.s32.totalorder %s833, %s834
      %p846 = scmp.eq.s32.totalorder %s89, 1
      %p847 = por %p845, %p846
      %p849 = scmp.ne.s32.totalorder %s834, %s848
      %p850 = scmp.eq.s32.totalorder %s89, 0
      %p851 = por %p849, %p850
      %s852 = ssub.s32 %s83, %s90
      %p853 = scmp.eq.s32.totalorder %s852, 0
      %s855 = sadd.s32 %s854, 1
      %s856 = scalar_select %p853, %s854, %s855
      %p859 = pneg %p853
      %p860 = scmp.eq.s32.totalorder %s83, 1
      %p861 = por %p859, %p860
      %p862 = scmp.ne.s32.totalorder %s854, %s857
      %p863 = scmp.eq.s32.totalorder %s83, 0
      %p864 = por %p862, %p863
      %p865 = scmp.ne.s32.totalorder %s854, %s857
      %p866 = scmp.eq.s32.totalorder %s88, 1
      %p867 = por %p865, %p866
      %p868 = scmp.ne.s32.totalorder %s857, %s858
      %p869 = scmp.eq.s32.totalorder %s88, 0
      %p870 = por %p868, %p869
      %p871 = scmp.ne.s32.totalorder %s857, %s858
      %p872 = scmp.eq.s32.totalorder %s89, 1
      %p873 = por %p871, %p872
      %p875 = scmp.ne.s32.totalorder %s858, %s874
      %p876 = scmp.eq.s32.totalorder %s89, 0
      %p877 = por %p875, %p876
      %p878 = scmp.le.s32.totalorder 1, %s83
      %p879 = scmp.lt.s32.totalorder %s83, 3
      %p880 = pnand %p878, %p879
      %p881 = pneg %p880
      // Predicated region
      $region9: #{crossvit_forward.1} parent=5 // pred_check
        _
      $region10: #{crossvit_forward.1} parent=5 // pred_check_branch
        %883 = sbr.rel (%p880) target = $region12
      $region11: #{crossvit_forward.1} parent=5 // pred_region
        %s884 = ssub.s32 %s83, 1
        // Predicated region
        $region13: #{crossvit_forward.1} parent=11 // pred_check
          %p885 = pneg %p130
        $region14: #{crossvit_forward.1} parent=11 // pred_check_branch
          %887 = sbr.rel (%p885) target = $region16
        $region15: #{crossvit_forward.1} parent=11 // pred_region
          %889 = vsyncadd [#allocation3], 0
          %s891 = sshll.u32 %s3, 4
          %s892 = int_to_ptr.hbm [resolvable:$true] %s891
          %s893 = sshll.u32 [#allocation2], 4
          %s894 = int_to_ptr.vmem [resolvable:$true] %s893
          %896 = dma.hbm_to_vmem [thread:$0]  %s892, 16, %s894, [#allocation3]
        $region16: #{crossvit_forward.1} parent=11 // pred_fallthru
          _
        // Predicated region
        $region17: #{crossvit_forward.1} parent=11 // pred_check
          %p897 = pneg %p151
        $region18: #{crossvit_forward.1} parent=11 // pred_check_branch
          %899 = sbr.rel (%p897) target = $region20
        $region19: #{crossvit_forward.1} parent=11 // pred_region
          _
        $region20: #{crossvit_forward.1} parent=11 // pred_fallthru
          _
        // Predicated region
        $region21: #{crossvit_forward.1} parent=11 // pred_check
          %p900 = pneg %p172
        $region22: #{crossvit_forward.1} parent=11 // pred_check_branch
          %902 = sbr.rel (%p900) target = $region24
        $region23: #{crossvit_forward.1} parent=11 // pred_region
          _
        $region24: #{crossvit_forward.1} parent=11 // pred_fallthru
          _
        // Predicated region
        $region25: #{crossvit_forward.1} parent=11 // pred_check
          %p903 = pneg %p193
        $region26: #{crossvit_forward.1} parent=11 // pred_check_branch
          %905 = sbr.rel (%p903) target = $region28
        $region27: #{crossvit_forward.1} parent=11 // pred_region
          _
        $region28: #{crossvit_forward.1} parent=11 // pred_fallthru
          _
        // Predicated region
        $region29: #{crossvit_forward.1} parent=11 // pred_check
          %p906 = pneg %p214
        $region30: #{crossvit_forward.1} parent=11 // pred_check_branch
          %908 = sbr.rel (%p906) target = $region32
        $region31: #{crossvit_forward.1} parent=11 // pred_region
          %910 = vsyncadd [#allocation5], 0
          %s912 = sshll.u32 %s11, 4
          %s913 = int_to_ptr.hbm [resolvable:$true] %s912
          %s914 = sshll.u32 [#allocation4], 4
          %s915 = int_to_ptr.vmem [resolvable:$true] %s914
          %917 = dma.hbm_to_vmem [thread:$0]  %s913, 16, %s915, [#allocation5]
        $region32: #{crossvit_forward.1} parent=11 // pred_fallthru
          _
        // Predicated region
        $region33: #{crossvit_forward.1} parent=11 // pred_check
          %p918 = pneg %p235
        $region34: #{crossvit_forward.1} parent=11 // pred_check_branch
          %920 = sbr.rel (%p918) target = $region36
        $region35: #{crossvit_forward.1} parent=11 // pred_region
          %922 = vsyncadd [#allocation5], 0
          %s924 = sshll.u32 %s13, 4
          %s925 = int_to_ptr.hbm [resolvable:$true] %s924
          %s926 = sshll.u32 [#allocation6], 4
          %s927 = int_to_ptr.vmem [resolvable:$true] %s926
          %929 = dma.hbm_to_vmem [thread:$0]  %s925, 16, %s927, [#allocation5]
        $region36: #{crossvit_forward.1} parent=11 // pred_fallthru
          _
        // Predicated region
        $region37: #{crossvit_forward.1} parent=11 // pred_check
          %p930 = pneg %p256
        $region38: #{crossvit_forward.1} parent=11 // pred_check_branch
          %932 = sbr.rel (%p930) target = $region40
        $region39: #{crossvit_forward.1} parent=11 // pred_region
          %934 = vsyncadd [#allocation8], 0
          %s936 = sshll.u32 %s15, 4
          %s937 = int_to_ptr.hbm [resolvable:$true] %s936
          %s938 = sshll.u32 [#allocation7], 4
          %s939 = int_to_ptr.vmem [resolvable:$true] %s938
          %941 = dma.hbm_to_vmem [thread:$0]  %s937, 16, %s939, [#allocation8]
        $region40: #{crossvit_forward.1} parent=11 // pred_fallthru
          _
        // Predicated region
        $region41: #{crossvit_forward.1} parent=11 // pred_check
          %p942 = pneg %p277
        $region42: #{crossvit_forward.1} parent=11 // pred_check_branch
          %944 = sbr.rel (%p942) target = $region44
        $region43: #{crossvit_forward.1} parent=11 // pred_region
          _
        $region44: #{crossvit_forward.1} parent=11 // pred_fallthru
          _
        // Predicated region
        $region45: #{crossvit_forward.1} parent=11 // pred_check
          %p945 = pneg %p298
        $region46: #{crossvit_forward.1} parent=11 // pred_check_branch
          %947 = sbr.rel (%p945) target = $region48
        $region47: #{crossvit_forward.1} parent=11 // pred_region
          _
        $region48: #{crossvit_forward.1} parent=11 // pred_fallthru
          _
        // Predicated region
        $region49: #{crossvit_forward.1} parent=11 // pred_check
          %p948 = pneg %p319
        $region50: #{crossvit_forward.1} parent=11 // pred_check_branch
          %950 = sbr.rel (%p948) target = $region52
        $region51: #{crossvit_forward.1} parent=11 // pred_region
          _
        $region52: #{crossvit_forward.1} parent=11 // pred_fallthru
          _
        // Predicated region
        $region53: #{crossvit_forward.1} parent=11 // pred_check
          %p951 = pneg %p340
        $region54: #{crossvit_forward.1} parent=11 // pred_check_branch
          %953 = sbr.rel (%p951) target = $region56
        $region55: #{crossvit_forward.1} parent=11 // pred_region
          _
        $region56: #{crossvit_forward.1} parent=11 // pred_fallthru
          _
        // Predicated region
        $region57: #{crossvit_forward.1} parent=11 // pred_check
          %p954 = pneg %p361
        $region58: #{crossvit_forward.1} parent=11 // pred_check_branch
          %956 = sbr.rel (%p954) target = $region60
        $region59: #{crossvit_forward.1} parent=11 // pred_region
          _
        $region60: #{crossvit_forward.1} parent=11 // pred_fallthru
          _
        // Predicated region
        $region61: #{crossvit_forward.1} parent=11 // pred_check
          %p957 = pneg %p382
        $region62: #{crossvit_forward.1} parent=11 // pred_check_branch
          %959 = sbr.rel (%p957) target = $region64
        $region63: #{crossvit_forward.1} parent=11 // pred_region
          _
        $region64: #{crossvit_forward.1} parent=11 // pred_fallthru
          _
        // Predicated region
        $region65: #{crossvit_forward.1} parent=11 // pred_check
          %p960 = pneg %p403
        $region66: #{crossvit_forward.1} parent=11 // pred_check_branch
          %962 = sbr.rel (%p960) target = $region68
        $region67: #{crossvit_forward.1} parent=11 // pred_region
          _
        $region68: #{crossvit_forward.1} parent=11 // pred_fallthru
          _
        // Predicated region
        $region69: #{crossvit_forward.1} parent=11 // pred_check
          %p963 = pneg %p424
        $region70: #{crossvit_forward.1} parent=11 // pred_check_branch
          %965 = sbr.rel (%p963) target = $region72
        $region71: #{crossvit_forward.1} parent=11 // pred_region
          _
        $region72: #{crossvit_forward.1} parent=11 // pred_fallthru
          _
        // Predicated region
        $region73: #{crossvit_forward.1} parent=11 // pred_check
          %p966 = pneg %p445
        $region74: #{crossvit_forward.1} parent=11 // pred_check_branch
          %968 = sbr.rel (%p966) target = $region76
        $region75: #{crossvit_forward.1} parent=11 // pred_region
          _
        $region76: #{crossvit_forward.1} parent=11 // pred_fallthru
          _
        // Predicated region
        $region77: #{crossvit_forward.1} parent=11 // pred_check
          %p969 = pneg %p466
        $region78: #{crossvit_forward.1} parent=11 // pred_check_branch
          %971 = sbr.rel (%p969) target = $region80
        $region79: #{crossvit_forward.1} parent=11 // pred_region
          _
        $region80: #{crossvit_forward.1} parent=11 // pred_fallthru
          _
        // Predicated region
        $region81: #{crossvit_forward.1} parent=11 // pred_check
          %p972 = pneg %p487
        $region82: #{crossvit_forward.1} parent=11 // pred_check_branch
          %974 = sbr.rel (%p972) target = $region84
        $region83: #{crossvit_forward.1} parent=11 // pred_region
          _
        $region84: #{crossvit_forward.1} parent=11 // pred_fallthru
          _
        // Predicated region
        $region85: #{crossvit_forward.1} parent=11 // pred_check
          %p975 = pneg %p508
        $region86: #{crossvit_forward.1} parent=11 // pred_check_branch
          %977 = sbr.rel (%p975) target = $region88
        $region87: #{crossvit_forward.1} parent=11 // pred_region
          _
        $region88: #{crossvit_forward.1} parent=11 // pred_fallthru
          _
        // Predicated region
        $region89: #{crossvit_forward.1} parent=11 // pred_check
          %p978 = pneg %p529
        $region90: #{crossvit_forward.1} parent=11 // pred_check_branch
          %980 = sbr.rel (%p978) target = $region92
        $region91: #{crossvit_forward.1} parent=11 // pred_region
          _
        $region92: #{crossvit_forward.1} parent=11 // pred_fallthru
          _
        // Predicated region
        $region93: #{crossvit_forward.1} parent=11 // pred_check
          %p981 = pneg %p550
        $region94: #{crossvit_forward.1} parent=11 // pred_check_branch
          %983 = sbr.rel (%p981) target = $region96
        $region95: #{crossvit_forward.1} parent=11 // pred_region
          _
        $region96: #{crossvit_forward.1} parent=11 // pred_fallthru
          _
        // Predicated region
        $region97: #{crossvit_forward.1} parent=11 // pred_check
          %p984 = pneg %p571
        $region98: #{crossvit_forward.1} parent=11 // pred_check_branch
          %986 = sbr.rel (%p984) target = $region100
        $region99: #{crossvit_forward.1} parent=11 // pred_region
          _
        $region100: #{crossvit_forward.1} parent=11 // pred_fallthru
          _
        // Predicated region
        $region101: #{crossvit_forward.1} parent=11 // pred_check
          %p987 = pneg %p592
        $region102: #{crossvit_forward.1} parent=11 // pred_check_branch
          %989 = sbr.rel (%p987) target = $region104
        $region103: #{crossvit_forward.1} parent=11 // pred_region
          _
        $region104: #{crossvit_forward.1} parent=11 // pred_fallthru
          _
        // Predicated region
        $region105: #{crossvit_forward.1} parent=11 // pred_check
          %p990 = pneg %p613
        $region106: #{crossvit_forward.1} parent=11 // pred_check_branch
          %992 = sbr.rel (%p990) target = $region108
        $region107: #{crossvit_forward.1} parent=11 // pred_region
          _
        $region108: #{crossvit_forward.1} parent=11 // pred_fallthru
          _
        // Predicated region
        $region109: #{crossvit_forward.1} parent=11 // pred_check
          %p993 = pneg %p634
        $region110: #{crossvit_forward.1} parent=11 // pred_check_branch
          %995 = sbr.rel (%p993) target = $region112
        $region111: #{crossvit_forward.1} parent=11 // pred_region
          _
        $region112: #{crossvit_forward.1} parent=11 // pred_fallthru
          _
        // Predicated region
        $region113: #{crossvit_forward.1} parent=11 // pred_check
          %p996 = pneg %p655
        $region114: #{crossvit_forward.1} parent=11 // pred_check_branch
          %998 = sbr.rel (%p996) target = $region116
        $region115: #{crossvit_forward.1} parent=11 // pred_region
          _
        $region116: #{crossvit_forward.1} parent=11 // pred_fallthru
          _
        // Predicated region
        $region117: #{crossvit_forward.1} parent=11 // pred_check
          %p999 = pneg %p676
        $region118: #{crossvit_forward.1} parent=11 // pred_check_branch
          %1001 = sbr.rel (%p999) target = $region120
        $region119: #{crossvit_forward.1} parent=11 // pred_region
          _
        $region120: #{crossvit_forward.1} parent=11 // pred_fallthru
          _
        // Predicated region
        $region121: #{crossvit_forward.1} parent=11 // pred_check
          %p1002 = pneg %p697
        $region122: #{crossvit_forward.1} parent=11 // pred_check_branch
          %1004 = sbr.rel (%p1002) target = $region124
        $region123: #{crossvit_forward.1} parent=11 // pred_region
          _
        $region124: #{crossvit_forward.1} parent=11 // pred_fallthru
          _
        // Predicated region
        $region125: #{crossvit_forward.1} parent=11 // pred_check
          %p1005 = pneg %p718
        $region126: #{crossvit_forward.1} parent=11 // pred_check_branch
          %1007 = sbr.rel (%p1005) target = $region128
        $region127: #{crossvit_forward.1} parent=11 // pred_region
          _
        $region128: #{crossvit_forward.1} parent=11 // pred_fallthru
          _
        // Predicated region
        $region129: #{crossvit_forward.1} parent=11 // pred_check
          %p1008 = pneg %p739
        $region130: #{crossvit_forward.1} parent=11 // pred_check_branch
          %1010 = sbr.rel (%p1008) target = $region132
        $region131: #{crossvit_forward.1} parent=11 // pred_region
          _
        $region132: #{crossvit_forward.1} parent=11 // pred_fallthru
          _
        // Predicated region
        $region133: #{crossvit_forward.1} parent=11 // pred_check
          %p1011 = pneg %p760
        $region134: #{crossvit_forward.1} parent=11 // pred_check_branch
          %1013 = sbr.rel (%p1011) target = $region136
        $region135: #{crossvit_forward.1} parent=11 // pred_region
          _
        $region136: #{crossvit_forward.1} parent=11 // pred_fallthru
          _
        // Predicated region
        $region137: #{crossvit_forward.1} parent=11 // pred_check
          %p1014 = pneg %p781
        $region138: #{crossvit_forward.1} parent=11 // pred_check_branch
          %1016 = sbr.rel (%p1014) target = $region140
        $region139: #{crossvit_forward.1} parent=11 // pred_region
          _
        $region140: #{crossvit_forward.1} parent=11 // pred_fallthru
          _
        // Predicated region
        $region141: #{crossvit_forward.1} parent=11 // pred_check
          %p1017 = pneg %p802
        $region142: #{crossvit_forward.1} parent=11 // pred_check_branch
          %1019 = sbr.rel (%p1017) target = $region144
        $region143: #{crossvit_forward.1} parent=11 // pred_region
          _
        $region144: #{crossvit_forward.1} parent=11 // pred_fallthru
          _
        // Predicated region
        $region145: #{crossvit_forward.1} parent=11 // pred_check
          %p1020 = pneg %p823
        $region146: #{crossvit_forward.1} parent=11 // pred_check_branch
          %1022 = sbr.rel (%p1020) target = $region148
        $region147: #{crossvit_forward.1} parent=11 // pred_region
          %1024 = vsyncadd [#allocation8], 0
          %s1025 = sshll.u32 %s69, 4
          %s1026 = int_to_ptr.hbm [resolvable:$true] %s1025
          %s1027 = sshll.u32 [#allocation9], 4
          %s1028 = int_to_ptr.vmem [resolvable:$true] %s1027
          %1033 = dma.hbm_to_vmem [thread:$0]  %s1026, 512, %s1028, [#allocation8], 128, 128, 8
        $region148: #{crossvit_forward.1} parent=11 // pred_fallthru
          _
        // Predicated region
        $region149: #{crossvit_forward.1} parent=11 // pred_check
          %p1034 = pneg %p844
        $region150: #{crossvit_forward.1} parent=11 // pred_check_branch
          %1036 = sbr.rel (%p1034) target = $region152
        $region151: #{crossvit_forward.1} parent=11 // pred_region
          %1038 = vsyncadd [#allocation11], 0
          %s1039 = sshll.u32 %s71, 4
          %s1040 = int_to_ptr.hbm [resolvable:$true] %s1039
          %s1041 = sshll.u32 [#allocation10], 4
          %s1042 = int_to_ptr.vmem [resolvable:$true] %s1041
          %1047 = dma.hbm_to_vmem [thread:$0]  %s1040, 512, %s1042, [#allocation11], 128, 128, 8
        $region152: #{crossvit_forward.1} parent=11 // pred_fallthru
          _
      $region12: #{crossvit_forward.1} parent=5 // pred_fallthru
        _
      %p1048 = scmp.lt.s32.totalorder %s83, 2
      // Predicated region
      $region153: #{crossvit_forward.1} parent=5 // pred_check
        %p1049 = pneg %p1048
      $region154: #{crossvit_forward.1} parent=5 // pred_check_branch
        %1051 = sbr.rel (%p1049) target = $region156
      $region155: #{crossvit_forward.1} parent=5 // pred_region
        // Predicated region
        $region157: #{crossvit_forward.1} parent=155 // pred_check
          %p1052 = pneg %p103
        $region158: #{crossvit_forward.1} parent=155 // pred_check_branch
          %1054 = sbr.rel (%p1052) target = $region160
        $region159: #{crossvit_forward.1} parent=155 // pred_region
          %p1055 = scmp.lt.s32.totalorder %s83, 1
          %s1056 = scalar_select %p1055, %s83, 1
          %s1057 = smul.addr %s1056, 4
          %s1058 = smul.addr %s1057, 8
          %s1059 = scalar_lea.vmem %s1, %s1058
        $region160: #{crossvit_forward.1} parent=155 // pred_fallthru
          _
      $region156: #{crossvit_forward.1} parent=5 // pred_fallthru
        _
      %p1060 = scmp.le.s32.totalorder 1, %s83
      %p1061 = scmp.lt.s32.totalorder %s83, 3
      %p1062 = pnand %p1060, %p1061
      %p1063 = pneg %p1062
      // Predicated region
      $region161: #{crossvit_forward.1} parent=5 // pred_check
        _
      $region162: #{crossvit_forward.1} parent=5 // pred_check_branch
        %1065 = sbr.rel (%p1062) target = $region164
      $region163: #{crossvit_forward.1} parent=5 // pred_region
        %s1066 = ssub.s32 %s83, 1
        // Predicated region
        $region165: #{crossvit_forward.1} parent=163 // pred_check
          %p1067 = pneg %p130
        $region166: #{crossvit_forward.1} parent=163 // pred_check_branch
          %1069 = sbr.rel (%p1067) target = $region168
        $region167: #{crossvit_forward.1} parent=163 // pred_region
          %1071 = dma.done [#allocation3], 16
        $region168: #{crossvit_forward.1} parent=163 // pred_fallthru
          _
        // Predicated region
        $region169: #{crossvit_forward.1} parent=163 // pred_check
          %p1072 = pneg %p214
        $region170: #{crossvit_forward.1} parent=163 // pred_check_branch
          %1074 = sbr.rel (%p1072) target = $region172
        $region171: #{crossvit_forward.1} parent=163 // pred_region
          %1076 = dma.done [#allocation5], 16
        $region172: #{crossvit_forward.1} parent=163 // pred_fallthru
          _
        // Predicated region
        $region173: #{crossvit_forward.1} parent=163 // pred_check
          %p1077 = pneg %p235
        $region174: #{crossvit_forward.1} parent=163 // pred_check_branch
          %1079 = sbr.rel (%p1077) target = $region176
        $region175: #{crossvit_forward.1} parent=163 // pred_region
          %1081 = dma.done [#allocation5], 16
        $region176: #{crossvit_forward.1} parent=163 // pred_fallthru
          _
        // Predicated region
        $region177: #{crossvit_forward.1} parent=163 // pred_check
          %p1082 = pneg %p256
        $region178: #{crossvit_forward.1} parent=163 // pred_check_branch
          %1084 = sbr.rel (%p1082) target = $region180
        $region179: #{crossvit_forward.1} parent=163 // pred_region
          %1086 = dma.done [#allocation8], 16
        $region180: #{crossvit_forward.1} parent=163 // pred_fallthru
          _
        // Predicated region
        $region181: #{crossvit_forward.1} parent=163 // pred_check
          %p1087 = pneg %p823
        $region182: #{crossvit_forward.1} parent=163 // pred_check_branch
          %1089 = sbr.rel (%p1087) target = $region184
        $region183: #{crossvit_forward.1} parent=163 // pred_region
          %1091 = dma.done [#allocation8], 512
        $region184: #{crossvit_forward.1} parent=163 // pred_fallthru
          _
        // Predicated region
        $region185: #{crossvit_forward.1} parent=163 // pred_check
          %p1092 = pneg %p844
        $region186: #{crossvit_forward.1} parent=163 // pred_check_branch
          %1094 = sbr.rel (%p1092) target = $region188
        $region187: #{crossvit_forward.1} parent=163 // pred_region
          %1096 = dma.done [#allocation11], 512
        $region188: #{crossvit_forward.1} parent=163 // pred_fallthru
          _
        %p1097 = scmp.lt.s32.totalorder %s88, 1
        %s1098 = scalar_select %p1097, %s88, 1
        %s1099 = smul.addr %s1098, 4
        %s1100 = smul.addr %s1099, 8
        %s1101 = scalar_lea.vmem %s1, %s1100
        %p1102 = pneg %p109
        %p1103 = pneg %p106
        %p1104 = pneg %p130
        %p1105 = pneg %p127
        %p1106 = pneg %p151
        %p1107 = pneg %p148
        %p1108 = pneg %p172
        %p1109 = pneg %p169
        %p1110 = pneg %p193
        %p1111 = pneg %p190
        %p1112 = pneg %p214
        %p1113 = pneg %p211
        %p1114 = pneg %p235
        %p1115 = pneg %p232
        %p1116 = pneg %p256
        %p1117 = pneg %p253
        %p1118 = pneg %p277
        %p1119 = pneg %p274
        %p1120 = pneg %p298
        %p1121 = pneg %p295
        %p1122 = pneg %p319
        %p1123 = pneg %p316
        %p1124 = pneg %p340
        %p1125 = pneg %p337
        %p1126 = pneg %p361
        %p1127 = pneg %p358
        %p1128 = pneg %p382
        %p1129 = pneg %p379
        %p1130 = pneg %p403
        %p1131 = pneg %p400
        %p1132 = pneg %p424
        %p1133 = pneg %p421
        %p1134 = pneg %p445
        %p1135 = pneg %p442
        %p1136 = pneg %p466
        %p1137 = pneg %p463
        %p1138 = pneg %p487
        %p1139 = pneg %p484
        %p1140 = pneg %p508
        %p1141 = pneg %p505
        %p1142 = pneg %p529
        %p1143 = pneg %p526
        %p1144 = pneg %p550
        %p1145 = pneg %p547
        %p1146 = pneg %p571
        %p1147 = pneg %p568
        %p1148 = pneg %p592
        %p1149 = pneg %p589
        %p1150 = pneg %p613
        %p1151 = pneg %p610
        %p1152 = pneg %p634
        %p1153 = pneg %p631
        %p1154 = pneg %p655
        %p1155 = pneg %p652
        %p1156 = pneg %p676
        %p1157 = pneg %p673
        %p1158 = pneg %p697
        %p1159 = pneg %p694
        %p1160 = pneg %p718
        %p1161 = pneg %p715
        %p1162 = pneg %p739
        %p1163 = pneg %p736
        %p1164 = pneg %p760
        %p1165 = pneg %p757
        %p1166 = pneg %p781
        %p1167 = pneg %p778
        %p1168 = pneg %p802
        %p1169 = pneg %p799
        %p1170 = pneg %p823
        %p1171 = pneg %p820
        %p1172 = pneg %p844
        %p1173 = pneg %p841
        %p1174 = pneg %p870
        %p1175 = pneg %p867
        %p1176 = scmp.lt.s32.totalorder %s88, 1
        %s1177 = scalar_select %p1176, %s88, 1
        %s1178 = smul.addr %s1177, 4
        %s1179 = smul.addr %s1178, 8
        %s1180 = scalar_lea.vmem %s73, %s1179
        %p1181 = scmp.lt.s32.totalorder %s88, 1
        %s1182 = scalar_select %p1181, %s88, 1
        %s1183 = smul.addr %s1182, 4
        %s1184 = smul.addr %s1183, 8
        %s1185 = scalar_lea.vmem %s1, %s1184
        %p1186 = scmp.lt.s32.totalorder %s88, 1
        %s1187 = scalar_select %p1186, %s88, 1
        %s1188 = smul.addr %s1187, 4
        %s1189 = smul.addr %s1188, 8
        %s1190 = scalar_lea.vmem %s73, %s1189
        %v1191 = vld [vmem:[%s1185] sm:$0xff]
        %v1192 = vld [vmem:[%s1185 + $0x8] sm:$0xff]
        %v1193 = vld [vmem:[%s1185 + $0x10] sm:$0xff]
        %v1194 = vld [vmem:[%s1185 + $0x18] sm:$0xff]
        %1195 = vxpose.xlu0.b32.start [1/16] %v1191, 128
        %1196 = vxpose.xlu0.b32.cont [2/16] %v1192, 128
        %1197 = vxpose.xlu0.b32.cont [3/16] %v1193, 128
        %1198 = vxpose.xlu0.b32.cont [4/16] %v1194, 128
        %1199 = vxpose.xlu0.b32.cont [5/16] 0.0, 128
        %1200 = vxpose.xlu0.b32.cont [6/16] 0.0, 128
        %1201 = vxpose.xlu0.b32.cont [7/16] 0.0, 128
        %1202 = vxpose.xlu0.b32.cont [8/16] 0.0, 128
        %1203 = vxpose.xlu0.b32.cont [9/16] 0.0, 128
        %1204 = vxpose.xlu0.b32.cont [10/16] 0.0, 128
        %1205 = vxpose.xlu0.b32.cont [11/16] 0.0, 128
        %1206 = vxpose.xlu0.b32.cont [12/16] 0.0, 128
        %1207 = vxpose.xlu0.b32.cont [13/16] 0.0, 128
        %1208 = vxpose.xlu0.b32.cont [14/16] 0.0, 128
        %1209 = vxpose.xlu0.b32.cont [15/16] 0.0, 128
        %1210 = vxpose.xlu0.b32.end [16/16] 0.0, 128
        %v1211 = vpop.trf.xlu0
        %v1212 = vpop.trf.xlu0
        %v1213 = vpop.trf.xlu0
        %v1214 = vpop.trf.xlu0
        %v1215 = vpop.trf.xlu0
        %v1216 = vpop.trf.xlu0
        %v1217 = vpop.trf.xlu0
        %v1218 = vpop.trf.xlu0
        %v1219 = vpop.trf.xlu0
        %v1220 = vpop.trf.xlu0
        %v1221 = vpop.trf.xlu0
        %v1222 = vpop.trf.xlu0
        %v1223 = vpop.trf.xlu0
        %v1224 = vpop.trf.xlu0
        %v1225 = vpop.trf.xlu0
        %v1226 = vpop.trf.xlu0
        %v1227 = vld [vmem:[#allocation10] sm:$0xff]
        %v1228 = vld [vmem:[#allocation10 + $0x8] sm:$0xff]
        %v1229 = vld [vmem:[#allocation10 + $0x10] sm:$0xff]
        %v1230 = vld [vmem:[#allocation10 + $0x18] sm:$0xff]
        %v1231 = vld [vmem:[%s67] sm:$0x1]
        %v1233 = vperm.slane %v1231, 0
        %vm1235 = vcmask 261120
        %v1237 = vsel %vm1235, %v1211, 0
        %v1240 = vsel %vm1235, %v1212, 0
        %v1243 = vsel %vm1235, %v1213, 0
        %v1246 = vsel %vm1235, %v1214, 0
        %1248 = vmatpush.msra.mxu0 0.0
        %1249 = vmatpush.msra.mxu0 0.0
        %1250 = vmatpush.msra.mxu0 0.0
        %1251 = vmatpush.msra.mxu0 0.0
        %1252 = vmatpush.msra.mxu0 0.0
        %1253 = vmatpush.msra.mxu0 0.0
        %1254 = vmatpush.msra.mxu0 0.0
        %1255 = vmatpush.msra.mxu0 0.0
        %1256 = vmatpush.msra.mxu0 0.0
        %1257 = vmatpush.msra.mxu0 0.0
        %1258 = vmatpush.msra.mxu0 0.0
        %1259 = vmatpush.msra.mxu0 0.0
        %1260 = vmatpush.msra.mxu0 %v1230
        %1261 = vmatpush.msra.mxu0 %v1229
        %1262 = vmatpush.msra.mxu0 %v1228
        %1263 = vmatpush.msra.mxu0 %v1227
        %1264 = vmatmul.f32.gmra.mxu0 %v1237
        %v1265 = vpop.f32.mrf.mxu0
        %v1266 = vadd.f32 %v1233, %v1265
        %1267 = vmatmul.f32.gmra.mxu0 %v1240
        %v1268 = vpop.f32.mrf.mxu0
        %v1269 = vadd.f32 %v1233, %v1268
        %1270 = vmatmul.f32.gmra.mxu0 %v1243
        %v1271 = vpop.f32.mrf.mxu0
        %v1272 = vadd.f32 %v1233, %v1271
        %1273 = vmatmul.f32.gmra.mxu0 %v1246
        %v1274 = vpop.f32.mrf.mxu0
        %v1275 = vadd.f32 %v1233, %v1274
        %1276 = vdwg.mxu0
        %v1277 = vld [vmem:[#allocation9] sm:$0xff]
        %v1278 = vld [vmem:[#allocation9 + $0x8] sm:$0xff]
        %v1279 = vld [vmem:[#allocation9 + $0x10] sm:$0xff]
        %v1280 = vld [vmem:[#allocation9 + $0x18] sm:$0xff]
        %v1281 = vadd.f32 %v1266, %v1277
        %v1282 = vadd.f32 %v1269, %v1278
        %v1283 = vadd.f32 %v1272, %v1279
        %v1284 = vadd.f32 %v1275, %v1280
        %v1285 = vld [vmem:[%s29] sm:$0x1]
        %v1286 = vld [vmem:[%s27] sm:$0x1]
        %v1287 = vsel %vm1235, %v1281, 0.0
        %1288 = vadd.xlane.f32.xlu0 %v1287
        %v1289 = vpop.xlane.xlu0 %1288
        %v1290 = vsel %vm1235, %v1282, 0.0
        %1291 = vadd.xlane.f32.xlu0 %v1290
        %v1292 = vpop.xlane.xlu0 %1291
        %v1293 = vsel %vm1235, %v1283, 0.0
        %1294 = vadd.xlane.f32.xlu0 %v1293
        %v1295 = vpop.xlane.xlu0 %1294
        %v1296 = vsel %vm1235, %v1284, 0.0
        %1297 = vadd.xlane.f32.xlu0 %v1296
        %v1298 = vpop.xlane.xlu0 %1297
        %v1299 = vrcp.pop 32.0
        %v1300 = vmul.f32 32.0, %v1299
        %v1301 = vsub.f32 1.0, %v1300
        %v1302 = vmul.f32 %v1299, %v1301
        %v1303 = vadd.f32 %v1299, %v1302
        %vm1304 = vweird.f32 %v1299
        %v1305 = vsel %vm1304, %v1299, %v1303
        %v1306 = vmul.f32 %v1289, %v1305
        %v1307 = vmul.f32 %v1292, %v1305
        %v1308 = vmul.f32 %v1295, %v1305
        %v1309 = vmul.f32 %v1298, %v1305
        %v1310 = vsub.f32 %v1281, %v1306
        %v1311 = vsub.f32 %v1282, %v1307
        %v1312 = vsub.f32 %v1283, %v1308
        %v1313 = vsub.f32 %v1284, %v1309
        %v1314 = vmul.f32 %v1310, %v1310
        %v1315 = vmul.f32 %v1311, %v1311
        %v1316 = vmul.f32 %v1312, %v1312
        %v1317 = vmul.f32 %v1313, %v1313
        %v1318 = vsel %vm1235, %v1314, 0.0
        %1319 = vadd.xlane.f32.xlu0 %v1318
        %v1320 = vpop.xlane.xlu0 %1319
        %v1321 = vsel %vm1235, %v1315, 0.0
        %1322 = vadd.xlane.f32.xlu0 %v1321
        %v1323 = vpop.xlane.xlu0 %1322
        %v1324 = vsel %vm1235, %v1316, 0.0
        %1325 = vadd.xlane.f32.xlu0 %v1324
        %v1326 = vpop.xlane.xlu0 %1325
        %v1327 = vsel %vm1235, %v1317, 0.0
        %1328 = vadd.xlane.f32.xlu0 %v1327
        %v1329 = vpop.xlane.xlu0 %1328
        %v1330 = vmul.f32 %v1320, %v1305
        %v1331 = vmul.f32 %v1323, %v1305
        %v1332 = vmul.f32 %v1326, %v1305
        %v1333 = vmul.f32 %v1329, %v1305
        %v1334 = vadd.f32 %v1330, 1e-05
        %v1335 = vadd.f32 %v1331, 1e-05
        %v1336 = vadd.f32 %v1332, 1e-05
        %v1337 = vadd.f32 %v1333, 1e-05
        %v1338 = vrsqrt.pop %v1334
        %v1339 = vmul.f32 %v1338, %v1334
        %v1340 = vmul.f32 %v1339, %v1338
        %v1341 = vmul.f32 0.5, %v1340
        %v1342 = vsub.f32 1.5, %v1341
        %v1343 = vmul.f32 %v1338, %v1342
        %vm1344 = vweird.f32 %v1334
        %vm1345 = vweird.f32 %v1338
        %vm1346 = vmor %vm1344, %vm1345
        %v1347 = vsel %vm1346, %v1338, %v1343
        %v1348 = vrsqrt.pop %v1335
        %v1349 = vmul.f32 %v1348, %v1335
        %v1350 = vmul.f32 %v1349, %v1348
        %v1351 = vmul.f32 0.5, %v1350
        %v1352 = vsub.f32 1.5, %v1351
        %v1353 = vmul.f32 %v1348, %v1352
        %vm1354 = vweird.f32 %v1335
        %vm1355 = vweird.f32 %v1348
        %vm1356 = vmor %vm1354, %vm1355
        %v1357 = vsel %vm1356, %v1348, %v1353
        %v1358 = vrsqrt.pop %v1336
        %v1359 = vmul.f32 %v1358, %v1336
        %v1360 = vmul.f32 %v1359, %v1358
        %v1361 = vmul.f32 0.5, %v1360
        %v1362 = vsub.f32 1.5, %v1361
        %v1363 = vmul.f32 %v1358, %v1362
        %vm1364 = vweird.f32 %v1336
        %vm1365 = vweird.f32 %v1358
        %vm1366 = vmor %vm1364, %vm1365
        %v1367 = vsel %vm1366, %v1358, %v1363
        %v1368 = vrsqrt.pop %v1337
        %v1369 = vmul.f32 %v1368, %v1337
        %v1370 = vmul.f32 %v1369, %v1368
        %v1371 = vmul.f32 0.5, %v1370
        %v1372 = vsub.f32 1.5, %v1371
        %v1373 = vmul.f32 %v1368, %v1372
        %vm1374 = vweird.f32 %v1337
        %vm1375 = vweird.f32 %v1368
        %vm1376 = vmor %vm1374, %vm1375
        %v1377 = vsel %vm1376, %v1368, %v1373
        %v1378 = vmul.f32 %v1310, %v1347
        %v1379 = vmul.f32 %v1311, %v1357
        %v1380 = vmul.f32 %v1312, %v1367
        %v1381 = vmul.f32 %v1313, %v1377
        %v1383 = vperm.slane %v1285, 0
        %v1385 = vmul.f32 %v1378, %v1383
        %v1386 = vmul.f32 %v1379, %v1383
        %v1387 = vmul.f32 %v1380, %v1383
        %v1388 = vmul.f32 %v1381, %v1383
        %v1390 = vperm.slane %v1286, 0
        %v1392 = vadd.f32 %v1385, %v1390
        %v1393 = vadd.f32 %v1386, %v1390
        %v1394 = vadd.f32 %v1387, %v1390
        %v1395 = vadd.f32 %v1388, %v1390
        %v1396 = vld [vmem:[%s21] sm:$0xff]
        %v1397 = vld [vmem:[%s21 + $0x8] sm:$0xff]
        %v1398 = vld [vmem:[%s21 + $0x10] sm:$0xff]
        %v1399 = vld [vmem:[%s21 + $0x18] sm:$0xff]
        %v1400 = vld [vmem:[%s21 + $0x20] sm:$0xff]
        %v1401 = vld [vmem:[%s21 + $0x28] sm:$0xff]
        %v1402 = vld [vmem:[%s21 + $0x30] sm:$0xff]
        %v1403 = vld [vmem:[%s21 + $0x38] sm:$0xff]
        %v1404 = vld [vmem:[%s17] sm:$0xff]
        %v1405 = vld [vmem:[%s17 + $0x8] sm:$0xff]
        %v1406 = vld [vmem:[%s17 + $0x10] sm:$0xff]
        %v1407 = vld [vmem:[%s17 + $0x18] sm:$0xff]
        %v1408 = vld [vmem:[%s17 + $0x20] sm:$0xff]
        %v1409 = vld [vmem:[%s17 + $0x28] sm:$0xff]
        %v1410 = vld [vmem:[%s17 + $0x30] sm:$0xff]
        %v1411 = vld [vmem:[%s17 + $0x38] sm:$0xff]
        %v1412 = vld [vmem:[%s19] sm:$0xff]
        %v1413 = vld [vmem:[%s19 + $0x8] sm:$0xff]
        %v1414 = vld [vmem:[%s19 + $0x10] sm:$0xff]
        %v1415 = vld [vmem:[%s19 + $0x18] sm:$0xff]
        %v1417 = vsel %vm1235, %v1392, 0
        %v1420 = vsel %vm1235, %v1393, 0
        %v1423 = vsel %vm1235, %v1394, 0
        %v1426 = vsel %vm1235, %v1395, 0
        %1428 = vmatpush.msra.mxu0 0.0
        %1429 = vmatpush.msra.mxu0 0.0
        %1430 = vmatpush.msra.mxu0 0.0
        %1431 = vmatpush.msra.mxu0 0.0
        %1432 = vmatpush.msra.mxu0 0.0
        %1433 = vmatpush.msra.mxu0 0.0
        %1434 = vmatpush.msra.mxu0 0.0
        %1435 = vmatpush.msra.mxu0 0.0
        %1436 = vmatpush.msra.mxu0 0.0
        %1437 = vmatpush.msra.mxu0 0.0
        %1438 = vmatpush.msra.mxu0 0.0
        %1439 = vmatpush.msra.mxu0 0.0
        %1440 = vmatpush.msra.mxu0 %v1399
        %1441 = vmatpush.msra.mxu0 %v1398
        %1442 = vmatpush.msra.mxu0 %v1397
        %1443 = vmatpush.msra.mxu0 %v1396
        %1444 = vmatmul.f32.gmra.mxu0 %v1417
        %v1445 = vpop.f32.mrf.mxu0
        %v1446 = vadd.f32 0.0, %v1445
        %1447 = vmatmul.f32.gmra.mxu0 %v1420
        %v1448 = vpop.f32.mrf.mxu0
        %v1449 = vadd.f32 0.0, %v1448
        %1450 = vmatmul.f32.gmra.mxu0 %v1423
        %v1451 = vpop.f32.mrf.mxu0
        %v1452 = vadd.f32 0.0, %v1451
        %1453 = vmatmul.f32.gmra.mxu0 %v1426
        %v1454 = vpop.f32.mrf.mxu0
        %v1455 = vadd.f32 0.0, %v1454
        %1456 = vdwg.mxu0
        %1457 = vmatpush.msra.mxu0 0.0
        %1458 = vmatpush.msra.mxu0 0.0
        %1459 = vmatpush.msra.mxu0 0.0
        %1460 = vmatpush.msra.mxu0 0.0
        %1461 = vmatpush.msra.mxu0 0.0
        %1462 = vmatpush.msra.mxu0 0.0
        %1463 = vmatpush.msra.mxu0 0.0
        %1464 = vmatpush.msra.mxu0 0.0
        %1465 = vmatpush.msra.mxu0 0.0
        %1466 = vmatpush.msra.mxu0 0.0
        %1467 = vmatpush.msra.mxu0 0.0
        %1468 = vmatpush.msra.mxu0 0.0
        %1469 = vmatpush.msra.mxu0 %v1403
        %1470 = vmatpush.msra.mxu0 %v1402
        %1471 = vmatpush.msra.mxu0 %v1401
        %1472 = vmatpush.msra.mxu0 %v1400
        %1473 = vmatmul.f32.gmra.mxu0 %v1417
        %v1474 = vpop.f32.mrf.mxu0
        %v1475 = vadd.f32 0.0, %v1474
        %1476 = vmatmul.f32.gmra.mxu0 %v1420
        %v1477 = vpop.f32.mrf.mxu0
        %v1478 = vadd.f32 0.0, %v1477
        %1479 = vmatmul.f32.gmra.mxu0 %v1423
        %v1480 = vpop.f32.mrf.mxu0
        %v1481 = vadd.f32 0.0, %v1480
        %1482 = vmatmul.f32.gmra.mxu0 %v1426
        %v1483 = vpop.f32.mrf.mxu0
        %v1484 = vadd.f32 0.0, %v1483
        %1485 = vdwg.mxu0
        %1486 = vmatpush.msra.mxu0 0.0
        %1487 = vmatpush.msra.mxu0 0.0
        %1488 = vmatpush.msra.mxu0 0.0
        %1489 = vmatpush.msra.mxu0 0.0
        %1490 = vmatpush.msra.mxu0 0.0
        %1491 = vmatpush.msra.mxu0 0.0
        %1492 = vmatpush.msra.mxu0 0.0
        %1493 = vmatpush.msra.mxu0 0.0
        %1494 = vmatpush.msra.mxu0 0.0
        %1495 = vmatpush.msra.mxu0 0.0
        %1496 = vmatpush.msra.mxu0 0.0
        %1497 = vmatpush.msra.mxu0 0.0
        %1498 = vmatpush.msra.mxu0 %v1407
        %1499 = vmatpush.msra.mxu0 %v1406
        %1500 = vmatpush.msra.mxu0 %v1405
        %1501 = vmatpush.msra.mxu0 %v1404
        %1502 = vmatmul.f32.gmra.mxu0 %v1417
        %v1503 = vpop.f32.mrf.mxu0
        %v1504 = vadd.f32 0.0, %v1503
        %1505 = vmatmul.f32.gmra.mxu0 %v1420
        %v1506 = vpop.f32.mrf.mxu0
        %v1507 = vadd.f32 0.0, %v1506
        %1508 = vmatmul.f32.gmra.mxu0 %v1423
        %v1509 = vpop.f32.mrf.mxu0
        %v1510 = vadd.f32 0.0, %v1509
        %1511 = vmatmul.f32.gmra.mxu0 %v1426
        %v1512 = vpop.f32.mrf.mxu0
        %v1513 = vadd.f32 0.0, %v1512
        %1514 = vdwg.mxu0
        %1515 = vmatpush.msra.mxu0 0.0
        %1516 = vmatpush.msra.mxu0 0.0
        %1517 = vmatpush.msra.mxu0 0.0
        %1518 = vmatpush.msra.mxu0 0.0
        %1519 = vmatpush.msra.mxu0 0.0
        %1520 = vmatpush.msra.mxu0 0.0
        %1521 = vmatpush.msra.mxu0 0.0
        %1522 = vmatpush.msra.mxu0 0.0
        %1523 = vmatpush.msra.mxu0 0.0
        %1524 = vmatpush.msra.mxu0 0.0
        %1525 = vmatpush.msra.mxu0 0.0
        %1526 = vmatpush.msra.mxu0 0.0
        %1527 = vmatpush.msra.mxu0 %v1411
        %1528 = vmatpush.msra.mxu0 %v1410
        %1529 = vmatpush.msra.mxu0 %v1409
        %1530 = vmatpush.msra.mxu0 %v1408
        %1531 = vmatmul.f32.gmra.mxu0 %v1417
        %v1532 = vpop.f32.mrf.mxu0
        %v1533 = vadd.f32 0.0, %v1532
        %1534 = vmatmul.f32.gmra.mxu0 %v1420
        %v1535 = vpop.f32.mrf.mxu0
        %v1536 = vadd.f32 0.0, %v1535
        %1537 = vmatmul.f32.gmra.mxu0 %v1423
        %v1538 = vpop.f32.mrf.mxu0
        %v1539 = vadd.f32 0.0, %v1538
        %1540 = vmatmul.f32.gmra.mxu0 %v1426
        %v1541 = vpop.f32.mrf.mxu0
        %v1542 = vadd.f32 0.0, %v1541
        %1543 = vdwg.mxu0
        %vm1544 = vcmask 130048
        %v1546 = vsel %vm1544, %v1446, 0
        %v1549 = vsel %vm1544, %v1449, 0
        %v1552 = vsel %vm1544, %v1452, 0
        %v1555 = vsel %vm1544, %v1455, 0
        %v1558 = vsel %vm1544, %v1504, 0
        %v1561 = vsel %vm1544, %v1507, 0
        %v1564 = vsel %vm1544, %v1510, 0
        %v1567 = vsel %vm1544, %v1513, 0
        %1569 = vmatpush.xpose.msra.mxu0 0.0
        %1570 = vmatpush.xpose.msra.mxu0 0.0
        %1571 = vmatpush.xpose.msra.mxu0 0.0
        %1572 = vmatpush.xpose.msra.mxu0 0.0
        %1573 = vmatpush.xpose.msra.mxu0 0.0
        %1574 = vmatpush.xpose.msra.mxu0 0.0
        %1575 = vmatpush.xpose.msra.mxu0 0.0
        %1576 = vmatpush.xpose.msra.mxu0 0.0
        %1577 = vmatpush.xpose.msra.mxu0 0.0
        %1578 = vmatpush.xpose.msra.mxu0 0.0
        %1579 = vmatpush.xpose.msra.mxu0 0.0
        %1580 = vmatpush.xpose.msra.mxu0 0.0
        %1581 = vmatpush.xpose.msra.mxu0 %v1567
        %1582 = vmatpush.xpose.msra.mxu0 %v1564
        %1583 = vmatpush.xpose.msra.mxu0 %v1561
        %1584 = vmatpush.xpose.msra.mxu0 %v1558
        %1585 = vmatmul.f32.gmra.mxu0 %v1546
        %v1586 = vpop.f32.mrf.mxu0
        %v1587 = vadd.f32 0.0, %v1586
        %1588 = vmatmul.f32.gmra.mxu0 %v1549
        %v1589 = vpop.f32.mrf.mxu0
        %v1590 = vadd.f32 0.0, %v1589
        %1591 = vmatmul.f32.gmra.mxu0 %v1552
        %v1592 = vpop.f32.mrf.mxu0
        %v1593 = vadd.f32 0.0, %v1592
        %1594 = vmatmul.f32.gmra.mxu0 %v1555
        %v1595 = vpop.f32.mrf.mxu0
        %v1596 = vadd.f32 0.0, %v1595
        %1597 = vdwg.mxu0
        %v1599 = vsel %vm1544, %v1475, 0
        %v1602 = vsel %vm1544, %v1478, 0
        %v1605 = vsel %vm1544, %v1481, 0
        %v1608 = vsel %vm1544, %v1484, 0
        %v1611 = vsel %vm1544, %v1533, 0
        %v1614 = vsel %vm1544, %v1536, 0
        %v1617 = vsel %vm1544, %v1539, 0
        %v1620 = vsel %vm1544, %v1542, 0
        %1622 = vmatpush.xpose.msra.mxu0 0.0
        %1623 = vmatpush.xpose.msra.mxu0 0.0
        %1624 = vmatpush.xpose.msra.mxu0 0.0
        %1625 = vmatpush.xpose.msra.mxu0 0.0
        %1626 = vmatpush.xpose.msra.mxu0 0.0
        %1627 = vmatpush.xpose.msra.mxu0 0.0
        %1628 = vmatpush.xpose.msra.mxu0 0.0
        %1629 = vmatpush.xpose.msra.mxu0 0.0
        %1630 = vmatpush.xpose.msra.mxu0 0.0
        %1631 = vmatpush.xpose.msra.mxu0 0.0
        %1632 = vmatpush.xpose.msra.mxu0 0.0
        %1633 = vmatpush.xpose.msra.mxu0 0.0
        %1634 = vmatpush.xpose.msra.mxu0 %v1620
        %1635 = vmatpush.xpose.msra.mxu0 %v1617
        %1636 = vmatpush.xpose.msra.mxu0 %v1614
        %1637 = vmatpush.xpose.msra.mxu0 %v1611
        %1638 = vmatmul.f32.gmra.mxu0 %v1599
        %v1639 = vpop.f32.mrf.mxu0
        %v1640 = vadd.f32 0.0, %v1639
        %1641 = vmatmul.f32.gmra.mxu0 %v1602
        %v1642 = vpop.f32.mrf.mxu0
        %v1643 = vadd.f32 0.0, %v1642
        %1644 = vmatmul.f32.gmra.mxu0 %v1605
        %v1645 = vpop.f32.mrf.mxu0
        %v1646 = vadd.f32 0.0, %v1645
        %1647 = vmatmul.f32.gmra.mxu0 %v1608
        %v1648 = vpop.f32.mrf.mxu0
        %v1649 = vadd.f32 0.0, %v1648
        %1650 = vdwg.mxu0
        %v1651 = vmul.f32 %v1587, 0.25
        %v1652 = vmul.f32 %v1590, 0.25
        %v1653 = vmul.f32 %v1593, 0.25
        %v1654 = vmul.f32 %v1596, 0.25
        %v1655 = vmul.f32 %v1640, 0.25
        %v1656 = vmul.f32 %v1643, 0.25
        %v1657 = vmul.f32 %v1646, 0.25
        %v1658 = vmul.f32 %v1649, 0.25
        %v1659 = vsel %vm1235, %v1651, -inf
        %1660 = vmax.xlane.f32.xlu0 %v1659
        %v1661 = vpop.xlane.xlu0 %1660
        %v1662 = vsel %vm1235, %v1652, -inf
        %1663 = vmax.xlane.f32.xlu0 %v1662
        %v1664 = vpop.xlane.xlu0 %1663
        %v1665 = vsel %vm1235, %v1653, -inf
        %1666 = vmax.xlane.f32.xlu0 %v1665
        %v1667 = vpop.xlane.xlu0 %1666
        %v1668 = vsel %vm1235, %v1654, -inf
        %1669 = vmax.xlane.f32.xlu0 %v1668
        %v1670 = vpop.xlane.xlu0 %1669
        %v1671 = vsel %vm1235, %v1655, -inf
        %1672 = vmax.xlane.f32.xlu0 %v1671
        %v1673 = vpop.xlane.xlu0 %1672
        %v1674 = vsel %vm1235, %v1656, -inf
        %1675 = vmax.xlane.f32.xlu0 %v1674
        %v1676 = vpop.xlane.xlu0 %1675
        %v1677 = vsel %vm1235, %v1657, -inf
        %1678 = vmax.xlane.f32.xlu0 %v1677
        %v1679 = vpop.xlane.xlu0 %1678
        %v1680 = vsel %vm1235, %v1658, -inf
        %1681 = vmax.xlane.f32.xlu0 %v1680
        %v1682 = vpop.xlane.xlu0 %1681
        %v1683 = vsub.f32 %v1651, %v1661
        %v1684 = vsub.f32 %v1652, %v1664
        %v1685 = vsub.f32 %v1653, %v1667
        %v1686 = vsub.f32 %v1654, %v1670
        %v1687 = vsub.f32 %v1655, %v1673
        %v1688 = vsub.f32 %v1656, %v1676
        %v1689 = vsub.f32 %v1657, %v1679
        %v1690 = vsub.f32 %v1658, %v1682
        %v1691 = vmul.f32 %v1683, 1.442695
        %v1692 = vpow.pop %v1691
        %v1693 = vmul.f32 %v1684, 1.442695
        %v1694 = vpow.pop %v1693
        %v1695 = vmul.f32 %v1685, 1.442695
        %v1696 = vpow.pop %v1695
        %v1697 = vmul.f32 %v1686, 1.442695
        %v1698 = vpow.pop %v1697
        %v1699 = vmul.f32 %v1687, 1.442695
        %v1700 = vpow.pop %v1699
        %v1701 = vmul.f32 %v1688, 1.442695
        %v1702 = vpow.pop %v1701
        %v1703 = vmul.f32 %v1689, 1.442695
        %v1704 = vpow.pop %v1703
        %v1705 = vmul.f32 %v1690, 1.442695
        %v1706 = vpow.pop %v1705
        %v1707 = vsel %vm1235, %v1692, 0.0
        %1708 = vadd.xlane.f32.xlu0 %v1707
        %v1709 = vpop.xlane.xlu0 %1708
        %v1710 = vsel %vm1235, %v1694, 0.0
        %1711 = vadd.xlane.f32.xlu0 %v1710
        %v1712 = vpop.xlane.xlu0 %1711
        %v1713 = vsel %vm1235, %v1696, 0.0
        %1714 = vadd.xlane.f32.xlu0 %v1713
        %v1715 = vpop.xlane.xlu0 %1714
        %v1716 = vsel %vm1235, %v1698, 0.0
        %1717 = vadd.xlane.f32.xlu0 %v1716
        %v1718 = vpop.xlane.xlu0 %1717
        %v1719 = vsel %vm1235, %v1700, 0.0
        %1720 = vadd.xlane.f32.xlu0 %v1719
        %v1721 = vpop.xlane.xlu0 %1720
        %v1722 = vsel %vm1235, %v1702, 0.0
        %1723 = vadd.xlane.f32.xlu0 %v1722
        %v1724 = vpop.xlane.xlu0 %1723
        %v1725 = vsel %vm1235, %v1704, 0.0
        %1726 = vadd.xlane.f32.xlu0 %v1725
        %v1727 = vpop.xlane.xlu0 %1726
        %v1728 = vsel %vm1235, %v1706, 0.0
        %1729 = vadd.xlane.f32.xlu0 %v1728
        %v1730 = vpop.xlane.xlu0 %1729
        %v1731 = vrcp.pop %v1709
        %v1732 = vrcp.pop %v1712
        %v1733 = vrcp.pop %v1715
        %v1734 = vrcp.pop %v1718
        %v1735 = vrcp.pop %v1721
        %v1736 = vrcp.pop %v1724
        %v1737 = vrcp.pop %v1727
        %v1738 = vrcp.pop %v1730
        %v1739 = vmul.f32 %v1692, %v1731
        %v1740 = vmul.f32 %v1694, %v1732
        %v1741 = vmul.f32 %v1696, %v1733
        %v1742 = vmul.f32 %v1698, %v1734
        %v1743 = vmul.f32 %v1700, %v1735
        %v1744 = vmul.f32 %v1702, %v1736
        %v1745 = vmul.f32 %v1704, %v1737
        %v1746 = vmul.f32 %v1706, %v1738
        %1747 = vrot.lane.b32.xlu0 %v1504, 112
        %v1748 = vpop.permute.xlu0 %1747
        %1749 = vrot.lane.b32.xlu0 %v1507, 112
        %v1750 = vpop.permute.xlu0 %1749
        %1751 = vrot.lane.b32.xlu0 %v1510, 112
        %v1752 = vpop.permute.xlu0 %1751
        %1753 = vrot.lane.b32.xlu0 %v1513, 112
        %v1754 = vpop.permute.xlu0 %1753
        %v1760 = vsel %vm1235, %v1739, 0
        %v1763 = vsel %vm1235, %v1740, 0
        %v1766 = vsel %vm1235, %v1741, 0
        %v1769 = vsel %vm1235, %v1742, 0
        %1771 = vmatpush.msra.mxu0 0.0
        %1772 = vmatpush.msra.mxu0 0.0
        %1773 = vmatpush.msra.mxu0 0.0
        %1774 = vmatpush.msra.mxu0 0.0
        %1775 = vmatpush.msra.mxu0 0.0
        %1776 = vmatpush.msra.mxu0 0.0
        %1777 = vmatpush.msra.mxu0 0.0
        %1778 = vmatpush.msra.mxu0 0.0
        %1779 = vmatpush.msra.mxu0 0.0
        %1780 = vmatpush.msra.mxu0 0.0
        %1781 = vmatpush.msra.mxu0 0.0
        %1782 = vmatpush.msra.mxu0 0.0
        %1783 = vmatpush.msra.mxu0 %v1754
        %1784 = vmatpush.msra.mxu0 %v1752
        %1785 = vmatpush.msra.mxu0 %v1750
        %1786 = vmatpush.msra.mxu0 %v1748
        %1787 = vmatmul.f32.gmra.mxu0 %v1760
        %v1788 = vpop.f32.mrf.mxu0
        %v1789 = vadd.f32 0.0, %v1788
        %1790 = vmatmul.f32.gmra.mxu0 %v1763
        %v1791 = vpop.f32.mrf.mxu0
        %v1792 = vadd.f32 0.0, %v1791
        %1793 = vmatmul.f32.gmra.mxu0 %v1766
        %v1794 = vpop.f32.mrf.mxu0
        %v1795 = vadd.f32 0.0, %v1794
        %1796 = vmatmul.f32.gmra.mxu0 %v1769
        %v1797 = vpop.f32.mrf.mxu0
        %v1798 = vadd.f32 0.0, %v1797
        %1799 = vdwg.mxu0
        %1800 = vrot.lane.b32.xlu0 %v1533, 112
        %v1801 = vpop.permute.xlu0 %1800
        %1802 = vrot.lane.b32.xlu0 %v1536, 112
        %v1803 = vpop.permute.xlu0 %1802
        %1804 = vrot.lane.b32.xlu0 %v1539, 112
        %v1805 = vpop.permute.xlu0 %1804
        %1806 = vrot.lane.b32.xlu0 %v1542, 112
        %v1807 = vpop.permute.xlu0 %1806
        %v1813 = vsel %vm1235, %v1743, 0
        %v1816 = vsel %vm1235, %v1744, 0
        %v1819 = vsel %vm1235, %v1745, 0
        %v1822 = vsel %vm1235, %v1746, 0
        %1824 = vmatpush.msra.mxu0 0.0
        %1825 = vmatpush.msra.mxu0 0.0
        %1826 = vmatpush.msra.mxu0 0.0
        %1827 = vmatpush.msra.mxu0 0.0
        %1828 = vmatpush.msra.mxu0 0.0
        %1829 = vmatpush.msra.mxu0 0.0
        %1830 = vmatpush.msra.mxu0 0.0
        %1831 = vmatpush.msra.mxu0 0.0
        %1832 = vmatpush.msra.mxu0 0.0
        %1833 = vmatpush.msra.mxu0 0.0
        %1834 = vmatpush.msra.mxu0 0.0
        %1835 = vmatpush.msra.mxu0 0.0
        %1836 = vmatpush.msra.mxu0 %v1807
        %1837 = vmatpush.msra.mxu0 %v1805
        %1838 = vmatpush.msra.mxu0 %v1803
        %1839 = vmatpush.msra.mxu0 %v1801
        %1840 = vmatmul.f32.gmra.mxu0 %v1813
        %v1841 = vpop.f32.mrf.mxu0
        %v1842 = vadd.f32 0.0, %v1841
        %1843 = vmatmul.f32.gmra.mxu0 %v1816
        %v1844 = vpop.f32.mrf.mxu0
        %v1845 = vadd.f32 0.0, %v1844
        %1846 = vmatmul.f32.gmra.mxu0 %v1819
        %v1847 = vpop.f32.mrf.mxu0
        %v1848 = vadd.f32 0.0, %v1847
        %1849 = vmatmul.f32.gmra.mxu0 %v1822
        %v1850 = vpop.f32.mrf.mxu0
        %v1851 = vadd.f32 0.0, %v1850
        %1852 = vdwg.mxu0
        %v1854 = vsel %vm1544, %v1789, 0
        %v1857 = vsel %vm1544, %v1792, 0
        %v1860 = vsel %vm1544, %v1795, 0
        %v1863 = vsel %vm1544, %v1798, 0
        %1865 = vmatpush.msra.mxu0 0.0
        %1866 = vmatpush.msra.mxu0 0.0
        %1867 = vmatpush.msra.mxu0 0.0
        %1868 = vmatpush.msra.mxu0 0.0
        %1869 = vmatpush.msra.mxu0 0.0
        %1870 = vmatpush.msra.mxu0 0.0
        %1871 = vmatpush.msra.mxu0 0.0
        %1872 = vmatpush.msra.mxu0 0.0
        %1873 = vmatpush.msra.mxu0 0.0
        %1874 = vmatpush.msra.mxu0 0.0
        %1875 = vmatpush.msra.mxu0 0.0
        %1876 = vmatpush.msra.mxu0 0.0
        %1877 = vmatpush.msra.mxu0 0.0
        %1878 = vmatpush.msra.mxu0 0.0
        %1879 = vmatpush.msra.mxu0 %v1413
        %1880 = vmatpush.msra.mxu0 %v1412
        %1881 = vmatmul.f32.gmra.mxu0 %v1854
        %v1882 = vpop.f32.mrf.mxu0
        %v1883 = vadd.f32 0.0, %v1882
        %1884 = vmatmul.f32.gmra.mxu0 %v1857
        %v1885 = vpop.f32.mrf.mxu0
        %v1886 = vadd.f32 0.0, %v1885
        %1887 = vmatmul.f32.gmra.mxu0 %v1860
        %v1888 = vpop.f32.mrf.mxu0
        %v1889 = vadd.f32 0.0, %v1888
        %1890 = vmatmul.f32.gmra.mxu0 %v1863
        %v1891 = vpop.f32.mrf.mxu0
        %v1892 = vadd.f32 0.0, %v1891
        %1893 = vdwg.mxu0
        %v1895 = vsel %vm1544, %v1842, 0
        %v1898 = vsel %vm1544, %v1845, 0
        %v1901 = vsel %vm1544, %v1848, 0
        %v1904 = vsel %vm1544, %v1851, 0
        %1906 = vmatpush.msra.mxu0 0.0
        %1907 = vmatpush.msra.mxu0 0.0
        %1908 = vmatpush.msra.mxu0 0.0
        %1909 = vmatpush.msra.mxu0 0.0
        %1910 = vmatpush.msra.mxu0 0.0
        %1911 = vmatpush.msra.mxu0 0.0
        %1912 = vmatpush.msra.mxu0 0.0
        %1913 = vmatpush.msra.mxu0 0.0
        %1914 = vmatpush.msra.mxu0 0.0
        %1915 = vmatpush.msra.mxu0 0.0
        %1916 = vmatpush.msra.mxu0 0.0
        %1917 = vmatpush.msra.mxu0 0.0
        %1918 = vmatpush.msra.mxu0 0.0
        %1919 = vmatpush.msra.mxu0 0.0
        %1920 = vmatpush.msra.mxu0 %v1415
        %1921 = vmatpush.msra.mxu0 %v1414
        %1922 = vmatmul.f32.gmra.mxu0 %v1895
        %v1923 = vpop.f32.mrf.mxu0
        %v1924 = vadd.f32 0.0, %v1923
        %1925 = vmatmul.f32.gmra.mxu0 %v1898
        %v1926 = vpop.f32.mrf.mxu0
        %v1927 = vadd.f32 0.0, %v1926
        %1928 = vmatmul.f32.gmra.mxu0 %v1901
        %v1929 = vpop.f32.mrf.mxu0
        %v1930 = vadd.f32 0.0, %v1929
        %1931 = vmatmul.f32.gmra.mxu0 %v1904
        %v1932 = vpop.f32.mrf.mxu0
        %v1933 = vadd.f32 0.0, %v1932
        %1934 = vdwg.mxu0
        %v1935 = vsel %vm1235, %v1883, 0.0
        %v1936 = vsel %vm1235, %v1924, 0.0
        %v1937 = vadd.f32 %v1935, %v1936
        %v1938 = vsel %vm1235, %v1886, 0.0
        %v1939 = vsel %vm1235, %v1927, 0.0
        %v1940 = vadd.f32 %v1938, %v1939
        %v1941 = vsel %vm1235, %v1889, 0.0
        %v1942 = vsel %vm1235, %v1930, 0.0
        %v1943 = vadd.f32 %v1941, %v1942
        %v1944 = vsel %vm1235, %v1892, 0.0
        %v1945 = vsel %vm1235, %v1933, 0.0
        %v1946 = vadd.f32 %v1944, %v1945
        %v1947 = vld [vmem:[#allocation7] sm:$0x1]
        %v1949 = vperm.slane %v1947, 0
        %v1951 = vadd.f32 %v1937, %v1949
        %v1952 = vadd.f32 %v1940, %v1949
        %v1953 = vadd.f32 %v1943, %v1949
        %v1954 = vadd.f32 %v1946, %v1949
        %v1955 = vadd.f32 %v1281, %v1951
        %v1956 = vadd.f32 %v1282, %v1952
        %v1957 = vadd.f32 %v1283, %v1953
        %v1958 = vadd.f32 %v1284, %v1954
        %v1959 = vld [vmem:[%s33] sm:$0x1]
        %v1960 = vld [vmem:[%s31] sm:$0x1]
        %v1961 = vsel %vm1235, %v1955, 0.0
        %1962 = vadd.xlane.f32.xlu0 %v1961
        %v1963 = vpop.xlane.xlu0 %1962
        %v1964 = vsel %vm1235, %v1956, 0.0
        %1965 = vadd.xlane.f32.xlu0 %v1964
        %v1966 = vpop.xlane.xlu0 %1965
        %v1967 = vsel %vm1235, %v1957, 0.0
        %1968 = vadd.xlane.f32.xlu0 %v1967
        %v1969 = vpop.xlane.xlu0 %1968
        %v1970 = vsel %vm1235, %v1958, 0.0
        %1971 = vadd.xlane.f32.xlu0 %v1970
        %v1972 = vpop.xlane.xlu0 %1971
        %v1973 = vmul.f32 %v1963, %v1305
        %v1974 = vmul.f32 %v1966, %v1305
        %v1975 = vmul.f32 %v1969, %v1305
        %v1976 = vmul.f32 %v1972, %v1305
        %v1977 = vsub.f32 %v1955, %v1973
        %v1978 = vsub.f32 %v1956, %v1974
        %v1979 = vsub.f32 %v1957, %v1975
        %v1980 = vsub.f32 %v1958, %v1976
        %v1981 = vmul.f32 %v1977, %v1977
        %v1982 = vmul.f32 %v1978, %v1978
        %v1983 = vmul.f32 %v1979, %v1979
        %v1984 = vmul.f32 %v1980, %v1980
        %v1985 = vsel %vm1235, %v1981, 0.0
        %1986 = vadd.xlane.f32.xlu0 %v1985
        %v1987 = vpop.xlane.xlu0 %1986
        %v1988 = vsel %vm1235, %v1982, 0.0
        %1989 = vadd.xlane.f32.xlu0 %v1988
        %v1990 = vpop.xlane.xlu0 %1989
        %v1991 = vsel %vm1235, %v1983, 0.0
        %1992 = vadd.xlane.f32.xlu0 %v1991
        %v1993 = vpop.xlane.xlu0 %1992
        %v1994 = vsel %vm1235, %v1984, 0.0
        %1995 = vadd.xlane.f32.xlu0 %v1994
        %v1996 = vpop.xlane.xlu0 %1995
        %v1997 = vmul.f32 %v1987, %v1305
        %v1998 = vmul.f32 %v1990, %v1305
        %v1999 = vmul.f32 %v1993, %v1305
        %v2000 = vmul.f32 %v1996, %v1305
        %v2001 = vadd.f32 %v1997, 1e-05
        %v2002 = vadd.f32 %v1998, 1e-05
        %v2003 = vadd.f32 %v1999, 1e-05
        %v2004 = vadd.f32 %v2000, 1e-05
        %v2005 = vrsqrt.pop %v2001
        %v2006 = vmul.f32 %v2005, %v2001
        %v2007 = vmul.f32 %v2006, %v2005
        %v2008 = vmul.f32 0.5, %v2007
        %v2009 = vsub.f32 1.5, %v2008
        %v2010 = vmul.f32 %v2005, %v2009
        %vm2011 = vweird.f32 %v2001
        %vm2012 = vweird.f32 %v2005
        %vm2013 = vmor %vm2011, %vm2012
        %v2014 = vsel %vm2013, %v2005, %v2010
        %v2015 = vrsqrt.pop %v2002
        %v2016 = vmul.f32 %v2015, %v2002
        %v2017 = vmul.f32 %v2016, %v2015
        %v2018 = vmul.f32 0.5, %v2017
        %v2019 = vsub.f32 1.5, %v2018
        %v2020 = vmul.f32 %v2015, %v2019
        %vm2021 = vweird.f32 %v2002
        %vm2022 = vweird.f32 %v2015
        %vm2023 = vmor %vm2021, %vm2022
        %v2024 = vsel %vm2023, %v2015, %v2020
        %v2025 = vrsqrt.pop %v2003
        %v2026 = vmul.f32 %v2025, %v2003
        %v2027 = vmul.f32 %v2026, %v2025
        %v2028 = vmul.f32 0.5, %v2027
        %v2029 = vsub.f32 1.5, %v2028
        %v2030 = vmul.f32 %v2025, %v2029
        %vm2031 = vweird.f32 %v2003
        %vm2032 = vweird.f32 %v2025
        %vm2033 = vmor %vm2031, %vm2032
        %v2034 = vsel %vm2033, %v2025, %v2030
        %v2035 = vrsqrt.pop %v2004
        %v2036 = vmul.f32 %v2035, %v2004
        %v2037 = vmul.f32 %v2036, %v2035
        %v2038 = vmul.f32 0.5, %v2037
        %v2039 = vsub.f32 1.5, %v2038
        %v2040 = vmul.f32 %v2035, %v2039
        %vm2041 = vweird.f32 %v2004
        %vm2042 = vweird.f32 %v2035
        %vm2043 = vmor %vm2041, %vm2042
        %v2044 = vsel %vm2043, %v2035, %v2040
        %v2045 = vmul.f32 %v1977, %v2014
        %v2046 = vmul.f32 %v1978, %v2024
        %v2047 = vmul.f32 %v1979, %v2034
        %v2048 = vmul.f32 %v1980, %v2044
        %v2050 = vperm.slane %v1959, 0
        %v2052 = vmul.f32 %v2045, %v2050
        %v2053 = vmul.f32 %v2046, %v2050
        %v2054 = vmul.f32 %v2047, %v2050
        %v2055 = vmul.f32 %v2048, %v2050
        %v2057 = vperm.slane %v1960, 0
        %v2059 = vadd.f32 %v2052, %v2057
        %v2060 = vadd.f32 %v2053, %v2057
        %v2061 = vadd.f32 %v2054, %v2057
        %v2062 = vadd.f32 %v2055, %v2057
        %v2063 = vld [vmem:[%s35] sm:$0xff]
        %v2064 = vld [vmem:[%s35 + $0x8] sm:$0xff]
        %v2065 = vld [vmem:[%s35 + $0x10] sm:$0xff]
        %v2066 = vld [vmem:[%s35 + $0x18] sm:$0xff]
        %v2067 = vld [vmem:[%s23] sm:$0x1]
        %v2069 = vperm.slane %v2067, 0
        %v2072 = vsel %vm1235, %v2059, 0
        %v2075 = vsel %vm1235, %v2060, 0
        %v2078 = vsel %vm1235, %v2061, 0
        %v2081 = vsel %vm1235, %v2062, 0
        %2083 = vmatpush.msra.mxu0 0.0
        %2084 = vmatpush.msra.mxu0 0.0
        %2085 = vmatpush.msra.mxu0 0.0
        %2086 = vmatpush.msra.mxu0 0.0
        %2087 = vmatpush.msra.mxu0 0.0
        %2088 = vmatpush.msra.mxu0 0.0
        %2089 = vmatpush.msra.mxu0 0.0
        %2090 = vmatpush.msra.mxu0 0.0
        %2091 = vmatpush.msra.mxu0 0.0
        %2092 = vmatpush.msra.mxu0 0.0
        %2093 = vmatpush.msra.mxu0 0.0
        %2094 = vmatpush.msra.mxu0 0.0
        %2095 = vmatpush.msra.mxu0 %v2066
        %2096 = vmatpush.msra.mxu0 %v2065
        %2097 = vmatpush.msra.mxu0 %v2064
        %2098 = vmatpush.msra.mxu0 %v2063
        %2099 = vmatmul.f32.gmra.mxu0 %v2072
        %v2100 = vpop.f32.mrf.mxu0
        %v2101 = vadd.f32 %v2069, %v2100
        %2102 = vmatmul.f32.gmra.mxu0 %v2075
        %v2103 = vpop.f32.mrf.mxu0
        %v2104 = vadd.f32 %v2069, %v2103
        %2105 = vmatmul.f32.gmra.mxu0 %v2078
        %v2106 = vpop.f32.mrf.mxu0
        %v2107 = vadd.f32 %v2069, %v2106
        %2108 = vmatmul.f32.gmra.mxu0 %v2081
        %v2109 = vpop.f32.mrf.mxu0
        %v2110 = vadd.f32 %v2069, %v2109
        %2111 = vdwg.mxu0
        %v2112 = vmul.f32 %v2101, 0.5
        %v2113 = vmul.f32 %v2104, 0.5
        %v2114 = vmul.f32 %v2107, 0.5
        %v2115 = vmul.f32 %v2110, 0.5
        %v2116 = vmul.f32 %v2101, 0.70710677
        %v2117 = vmul.f32 %v2104, 0.70710677
        %v2118 = vmul.f32 %v2107, 0.70710677
        %v2119 = vmul.f32 %v2110, 0.70710677
        %v2120 = vand.u32 2147483647, %v2116
        %v2121 = vand.u32 2147483647, %v2117
        %v2122 = vand.u32 2147483647, %v2118
        %v2123 = vand.u32 2147483647, %v2119
        %v2124 = vmul.f32 %v2120, 0.3275911
        %v2125 = vmul.f32 %v2121, 0.3275911
        %v2126 = vmul.f32 %v2122, 0.3275911
        %v2127 = vmul.f32 %v2123, 0.3275911
        %v2128 = vadd.f32 %v2124, 1.0
        %v2129 = vadd.f32 %v2125, 1.0
        %v2130 = vadd.f32 %v2126, 1.0
        %v2131 = vadd.f32 %v2127, 1.0
        %v2132 = vrcp.pop %v2128
        %v2133 = vmul.f32 %v2128, %v2132
        %v2134 = vsub.f32 1.0, %v2133
        %v2135 = vmul.f32 %v2132, %v2134
        %v2136 = vadd.f32 %v2132, %v2135
        %vm2137 = vweird.f32 %v2128
        %vm2138 = vweird.f32 %v2132
        %vm2139 = vmor %vm2137, %vm2138
        %v2140 = vsel %vm2139, %v2132, %v2136
        %v2141 = vand.u32 2147483647, %v2128
        %vm2142 = vcmp.eq.f32.partialorder %v2141, 8.507059e+37
        %v2143 = vand.u32 %v2128, 2147483648
        %v2144 = vor.u32 1.1754944e-38, %v2143
        %v2145 = vsel %vm2142, %v2144, %v2140
        %v2146 = vmul.f32 1.0, %v2145
        %v2147 = vrcp.pop %v2129
        %v2148 = vmul.f32 %v2129, %v2147
        %v2149 = vsub.f32 1.0, %v2148
        %v2150 = vmul.f32 %v2147, %v2149
        %v2151 = vadd.f32 %v2147, %v2150
        %vm2152 = vweird.f32 %v2129
        %vm2153 = vweird.f32 %v2147
        %vm2154 = vmor %vm2152, %vm2153
        %v2155 = vsel %vm2154, %v2147, %v2151
        %v2156 = vand.u32 2147483647, %v2129
        %vm2157 = vcmp.eq.f32.partialorder %v2156, 8.507059e+37
        %v2158 = vand.u32 %v2129, 2147483648
        %v2159 = vor.u32 1.1754944e-38, %v2158
        %v2160 = vsel %vm2157, %v2159, %v2155
        %v2161 = vmul.f32 1.0, %v2160
        %v2162 = vrcp.pop %v2130
        %v2163 = vmul.f32 %v2130, %v2162
        %v2164 = vsub.f32 1.0, %v2163
        %v2165 = vmul.f32 %v2162, %v2164
        %v2166 = vadd.f32 %v2162, %v2165
        %vm2167 = vweird.f32 %v2130
        %vm2168 = vweird.f32 %v2162
        %vm2169 = vmor %vm2167, %vm2168
        %v2170 = vsel %vm2169, %v2162, %v2166
        %v2171 = vand.u32 2147483647, %v2130
        %vm2172 = vcmp.eq.f32.partialorder %v2171, 8.507059e+37
        %v2173 = vand.u32 %v2130, 2147483648
        %v2174 = vor.u32 1.1754944e-38, %v2173
        %v2175 = vsel %vm2172, %v2174, %v2170
        %v2176 = vmul.f32 1.0, %v2175
        %v2177 = vrcp.pop %v2131
        %v2178 = vmul.f32 %v2131, %v2177
        %v2179 = vsub.f32 1.0, %v2178
        %v2180 = vmul.f32 %v2177, %v2179
        %v2181 = vadd.f32 %v2177, %v2180
        %vm2182 = vweird.f32 %v2131
        %vm2183 = vweird.f32 %v2177
        %vm2184 = vmor %vm2182, %vm2183
        %v2185 = vsel %vm2184, %v2177, %v2181
        %v2186 = vand.u32 2147483647, %v2131
        %vm2187 = vcmp.eq.f32.partialorder %v2186, 8.507059e+37
        %v2188 = vand.u32 %v2131, 2147483648
        %v2189 = vor.u32 1.1754944e-38, %v2188
        %v2190 = vsel %vm2187, %v2189, %v2185
        %v2191 = vmul.f32 1.0, %v2190
        %v2192 = vmul.f32 %v2146, 1.0614054
        %v2193 = vmul.f32 %v2161, 1.0614054
        %v2194 = vmul.f32 %v2176, 1.0614054
        %v2195 = vmul.f32 %v2191, 1.0614054
        %v2196 = vadd.f32 %v2192, -1.4531521
        %v2197 = vadd.f32 %v2193, -1.4531521
        %v2198 = vadd.f32 %v2194, -1.4531521
        %v2199 = vadd.f32 %v2195, -1.4531521
        %v2200 = vmul.f32 %v2196, %v2146
        %v2201 = vmul.f32 %v2197, %v2161
        %v2202 = vmul.f32 %v2198, %v2176
        %v2203 = vmul.f32 %v2199, %v2191
        %v2204 = vadd.f32 %v2200, 1.4214138
        %v2205 = vadd.f32 %v2201, 1.4214138
        %v2206 = vadd.f32 %v2202, 1.4214138
        %v2207 = vadd.f32 %v2203, 1.4214138
        %v2208 = vmul.f32 %v2204, %v2146
        %v2209 = vmul.f32 %v2205, %v2161
        %v2210 = vmul.f32 %v2206, %v2176
        %v2211 = vmul.f32 %v2207, %v2191
        %v2212 = vadd.f32 %v2208, -0.28449672
        %v2213 = vadd.f32 %v2209, -0.28449672
        %v2214 = vadd.f32 %v2210, -0.28449672
        %v2215 = vadd.f32 %v2211, -0.28449672
        %v2216 = vmul.f32 %v2212, %v2146
        %v2217 = vmul.f32 %v2213, %v2161
        %v2218 = vmul.f32 %v2214, %v2176
        %v2219 = vmul.f32 %v2215, %v2191
        %v2220 = vadd.f32 %v2216, 0.2548296
        %v2221 = vadd.f32 %v2217, 0.2548296
        %v2222 = vadd.f32 %v2218, 0.2548296
        %v2223 = vadd.f32 %v2219, 0.2548296
        %v2224 = vmul.f32 %v2220, %v2146
        %v2225 = vmul.f32 %v2221, %v2161
        %v2226 = vmul.f32 %v2222, %v2176
        %v2227 = vmul.f32 %v2223, %v2191
        %v2228 = vmul.f32 %v2120, %v2120
        %v2229 = vmul.f32 %v2121, %v2121
        %v2230 = vmul.f32 %v2122, %v2122
        %v2231 = vmul.f32 %v2123, %v2123
        %v2232 = vsub.f32 0.0, %v2228
        %v2233 = vsub.f32 0.0, %v2229
        %v2234 = vsub.f32 0.0, %v2230
        %v2235 = vsub.f32 0.0, %v2231
        %v2236 = vmul.f32 %v2232, 1.442695
        %v2237 = vpow.pop %v2236
        %v2238 = vmul.f32 %v2233, 1.442695
        %v2239 = vpow.pop %v2238
        %v2240 = vmul.f32 %v2234, 1.442695
        %v2241 = vpow.pop %v2240
        %v2242 = vmul.f32 %v2235, 1.442695
        %v2243 = vpow.pop %v2242
        %v2244 = vmul.f32 %v2224, %v2237
        %v2245 = vmul.f32 %v2225, %v2239
        %v2246 = vmul.f32 %v2226, %v2241
        %v2247 = vmul.f32 %v2227, %v2243
        %v2248 = vsub.f32 1.0, %v2244
        %v2249 = vsub.f32 1.0, %v2245
        %v2250 = vsub.f32 1.0, %v2246
        %v2251 = vsub.f32 1.0, %v2247
        %vm2252 = vcmp.lt.f32.partialorder %v2116, 0.0
        %vm2253 = vcmp.lt.f32.partialorder %v2117, 0.0
        %vm2254 = vcmp.lt.f32.partialorder %v2118, 0.0
        %vm2255 = vcmp.lt.f32.partialorder %v2119, 0.0
        %v2256 = vsub.f32 0.0, %v2248
        %v2257 = vsub.f32 0.0, %v2249
        %v2258 = vsub.f32 0.0, %v2250
        %v2259 = vsub.f32 0.0, %v2251
        %v2260 = vsel %vm2252, %v2256, %v2248
        %v2261 = vsel %vm2253, %v2257, %v2249
        %v2262 = vsel %vm2254, %v2258, %v2250
        %v2263 = vsel %vm2255, %v2259, %v2251
        %v2264 = vadd.f32 %v2260, 1.0
        %v2265 = vadd.f32 %v2261, 1.0
        %v2266 = vadd.f32 %v2262, 1.0
        %v2267 = vadd.f32 %v2263, 1.0
        %v2268 = vmul.f32 %v2112, %v2264
        %v2269 = vmul.f32 %v2113, %v2265
        %v2270 = vmul.f32 %v2114, %v2266
        %v2271 = vmul.f32 %v2115, %v2267
        %v2272 = vld [vmem:[%s37] sm:$0xff]
        %v2273 = vld [vmem:[%s37 + $0x8] sm:$0xff]
        %v2274 = vld [vmem:[%s37 + $0x10] sm:$0xff]
        %v2275 = vld [vmem:[%s37 + $0x18] sm:$0xff]
        %v2276 = vld [vmem:[%s37 + $0x20] sm:$0xff]
        %v2277 = vld [vmem:[%s37 + $0x28] sm:$0xff]
        %v2278 = vld [vmem:[%s37 + $0x30] sm:$0xff]
        %v2279 = vld [vmem:[%s37 + $0x38] sm:$0xff]
        %v2280 = vld [vmem:[%s25] sm:$0x1]
        %v2282 = vperm.slane %v2280, 0
        %vm2284 = vcmask 523264
        %v2286 = vsel %vm2284, %v2268, 0
        %v2289 = vsel %vm2284, %v2269, 0
        %v2292 = vsel %vm2284, %v2270, 0
        %v2295 = vsel %vm2284, %v2271, 0
        %2297 = vmatpush.msra.mxu0 0.0
        %2298 = vmatpush.msra.mxu0 0.0
        %2299 = vmatpush.msra.mxu0 0.0
        %2300 = vmatpush.msra.mxu0 0.0
        %2301 = vmatpush.msra.mxu0 0.0
        %2302 = vmatpush.msra.mxu0 0.0
        %2303 = vmatpush.msra.mxu0 0.0
        %2304 = vmatpush.msra.mxu0 0.0
        %2305 = vmatpush.msra.mxu0 %v2279
        %2306 = vmatpush.msra.mxu0 %v2278
        %2307 = vmatpush.msra.mxu0 %v2277
        %2308 = vmatpush.msra.mxu0 %v2276
        %2309 = vmatpush.msra.mxu0 %v2275
        %2310 = vmatpush.msra.mxu0 %v2274
        %2311 = vmatpush.msra.mxu0 %v2273
        %2312 = vmatpush.msra.mxu0 %v2272
        %2313 = vmatmul.f32.gmra.mxu0 %v2286
        %v2314 = vpop.f32.mrf.mxu0
        %v2315 = vadd.f32 %v2282, %v2314
        %2316 = vmatmul.f32.gmra.mxu0 %v2289
        %v2317 = vpop.f32.mrf.mxu0
        %v2318 = vadd.f32 %v2282, %v2317
        %2319 = vmatmul.f32.gmra.mxu0 %v2292
        %v2320 = vpop.f32.mrf.mxu0
        %v2321 = vadd.f32 %v2282, %v2320
        %2322 = vmatmul.f32.gmra.mxu0 %v2295
        %v2323 = vpop.f32.mrf.mxu0
        %v2324 = vadd.f32 %v2282, %v2323
        %2325 = vdwg.mxu0
        %v2326 = vadd.f32 %v1955, %v2315
        %v2327 = vadd.f32 %v1956, %v2318
        %v2328 = vadd.f32 %v1957, %v2321
        %v2329 = vadd.f32 %v1958, %v2324
        %v2330 = vld [vmem:[%s53] sm:$0x1]
        %v2331 = vld [vmem:[%s51] sm:$0x1]
        %v2332 = vsel %vm1235, %v2326, 0.0
        %2333 = vadd.xlane.f32.xlu0 %v2332
        %v2334 = vpop.xlane.xlu0 %2333
        %v2335 = vsel %vm1235, %v2327, 0.0
        %2336 = vadd.xlane.f32.xlu0 %v2335
        %v2337 = vpop.xlane.xlu0 %2336
        %v2338 = vsel %vm1235, %v2328, 0.0
        %2339 = vadd.xlane.f32.xlu0 %v2338
        %v2340 = vpop.xlane.xlu0 %2339
        %v2341 = vsel %vm1235, %v2329, 0.0
        %2342 = vadd.xlane.f32.xlu0 %v2341
        %v2343 = vpop.xlane.xlu0 %2342
        %v2344 = vmul.f32 %v2334, %v1305
        %v2345 = vmul.f32 %v2337, %v1305
        %v2346 = vmul.f32 %v2340, %v1305
        %v2347 = vmul.f32 %v2343, %v1305
        %v2348 = vsub.f32 %v2326, %v2344
        %v2349 = vsub.f32 %v2327, %v2345
        %v2350 = vsub.f32 %v2328, %v2346
        %v2351 = vsub.f32 %v2329, %v2347
        %v2352 = vmul.f32 %v2348, %v2348
        %v2353 = vmul.f32 %v2349, %v2349
        %v2354 = vmul.f32 %v2350, %v2350
        %v2355 = vmul.f32 %v2351, %v2351
        %v2356 = vsel %vm1235, %v2352, 0.0
        %2357 = vadd.xlane.f32.xlu0 %v2356
        %v2358 = vpop.xlane.xlu0 %2357
        %v2359 = vsel %vm1235, %v2353, 0.0
        %2360 = vadd.xlane.f32.xlu0 %v2359
        %v2361 = vpop.xlane.xlu0 %2360
        %v2362 = vsel %vm1235, %v2354, 0.0
        %2363 = vadd.xlane.f32.xlu0 %v2362
        %v2364 = vpop.xlane.xlu0 %2363
        %v2365 = vsel %vm1235, %v2355, 0.0
        %2366 = vadd.xlane.f32.xlu0 %v2365
        %v2367 = vpop.xlane.xlu0 %2366
        %v2368 = vmul.f32 %v2358, %v1305
        %v2369 = vmul.f32 %v2361, %v1305
        %v2370 = vmul.f32 %v2364, %v1305
        %v2371 = vmul.f32 %v2367, %v1305
        %v2372 = vadd.f32 %v2368, 1e-05
        %v2373 = vadd.f32 %v2369, 1e-05
        %v2374 = vadd.f32 %v2370, 1e-05
        %v2375 = vadd.f32 %v2371, 1e-05
        %v2376 = vrsqrt.pop %v2372
        %v2377 = vmul.f32 %v2376, %v2372
        %v2378 = vmul.f32 %v2377, %v2376
        %v2379 = vmul.f32 0.5, %v2378
        %v2380 = vsub.f32 1.5, %v2379
        %v2381 = vmul.f32 %v2376, %v2380
        %vm2382 = vweird.f32 %v2372
        %vm2383 = vweird.f32 %v2376
        %vm2384 = vmor %vm2382, %vm2383
        %v2385 = vsel %vm2384, %v2376, %v2381
        %v2386 = vrsqrt.pop %v2373
        %v2387 = vmul.f32 %v2386, %v2373
        %v2388 = vmul.f32 %v2387, %v2386
        %v2389 = vmul.f32 0.5, %v2388
        %v2390 = vsub.f32 1.5, %v2389
        %v2391 = vmul.f32 %v2386, %v2390
        %vm2392 = vweird.f32 %v2373
        %vm2393 = vweird.f32 %v2386
        %vm2394 = vmor %vm2392, %vm2393
        %v2395 = vsel %vm2394, %v2386, %v2391
        %v2396 = vrsqrt.pop %v2374
        %v2397 = vmul.f32 %v2396, %v2374
        %v2398 = vmul.f32 %v2397, %v2396
        %v2399 = vmul.f32 0.5, %v2398
        %v2400 = vsub.f32 1.5, %v2399
        %v2401 = vmul.f32 %v2396, %v2400
        %vm2402 = vweird.f32 %v2374
        %vm2403 = vweird.f32 %v2396
        %vm2404 = vmor %vm2402, %vm2403
        %v2405 = vsel %vm2404, %v2396, %v2401
        %v2406 = vrsqrt.pop %v2375
        %v2407 = vmul.f32 %v2406, %v2375
        %v2408 = vmul.f32 %v2407, %v2406
        %v2409 = vmul.f32 0.5, %v2408
        %v2410 = vsub.f32 1.5, %v2409
        %v2411 = vmul.f32 %v2406, %v2410
        %vm2412 = vweird.f32 %v2375
        %vm2413 = vweird.f32 %v2406
        %vm2414 = vmor %vm2412, %vm2413
        %v2415 = vsel %vm2414, %v2406, %v2411
        %v2416 = vmul.f32 %v2348, %v2385
        %v2417 = vmul.f32 %v2349, %v2395
        %v2418 = vmul.f32 %v2350, %v2405
        %v2419 = vmul.f32 %v2351, %v2415
        %v2421 = vperm.slane %v2330, 0
        %v2423 = vmul.f32 %v2416, %v2421
        %v2424 = vmul.f32 %v2417, %v2421
        %v2425 = vmul.f32 %v2418, %v2421
        %v2426 = vmul.f32 %v2419, %v2421
        %v2428 = vperm.slane %v2331, 0
        %v2430 = vadd.f32 %v2423, %v2428
        %v2431 = vadd.f32 %v2424, %v2428
        %v2432 = vadd.f32 %v2425, %v2428
        %v2433 = vadd.f32 %v2426, %v2428
        %v2434 = vld [vmem:[%s45] sm:$0xff]
        %v2435 = vld [vmem:[%s45 + $0x8] sm:$0xff]
        %v2436 = vld [vmem:[%s45 + $0x10] sm:$0xff]
        %v2437 = vld [vmem:[%s45 + $0x18] sm:$0xff]
        %v2438 = vld [vmem:[%s45 + $0x20] sm:$0xff]
        %v2439 = vld [vmem:[%s45 + $0x28] sm:$0xff]
        %v2440 = vld [vmem:[%s45 + $0x30] sm:$0xff]
        %v2441 = vld [vmem:[%s45 + $0x38] sm:$0xff]
        %v2442 = vld [vmem:[%s45 + $0x40] sm:$0xff]
        %v2443 = vld [vmem:[%s45 + $0x48] sm:$0xff]
        %v2444 = vld [vmem:[%s45 + $0x50] sm:$0xff]
        %v2445 = vld [vmem:[%s45 + $0x58] sm:$0xff]
        %v2446 = vld [vmem:[%s45 + $0x60] sm:$0xff]
        %v2447 = vld [vmem:[%s45 + $0x68] sm:$0xff]
        %v2448 = vld [vmem:[%s45 + $0x70] sm:$0xff]
        %v2449 = vld [vmem:[%s45 + $0x78] sm:$0xff]
        %v2450 = vld [vmem:[%s41] sm:$0xff]
        %v2451 = vld [vmem:[%s41 + $0x8] sm:$0xff]
        %v2452 = vld [vmem:[%s41 + $0x10] sm:$0xff]
        %v2453 = vld [vmem:[%s41 + $0x18] sm:$0xff]
        %v2454 = vld [vmem:[%s41 + $0x20] sm:$0xff]
        %v2455 = vld [vmem:[%s41 + $0x28] sm:$0xff]
        %v2456 = vld [vmem:[%s41 + $0x30] sm:$0xff]
        %v2457 = vld [vmem:[%s41 + $0x38] sm:$0xff]
        %v2458 = vld [vmem:[%s41 + $0x40] sm:$0xff]
        %v2459 = vld [vmem:[%s41 + $0x48] sm:$0xff]
        %v2460 = vld [vmem:[%s41 + $0x50] sm:$0xff]
        %v2461 = vld [vmem:[%s41 + $0x58] sm:$0xff]
        %v2462 = vld [vmem:[%s41 + $0x60] sm:$0xff]
        %v2463 = vld [vmem:[%s41 + $0x68] sm:$0xff]
        %v2464 = vld [vmem:[%s41 + $0x70] sm:$0xff]
        %v2465 = vld [vmem:[%s41 + $0x78] sm:$0xff]
        %v2466 = vld [vmem:[%s43] sm:$0xff]
        %v2467 = vld [vmem:[%s43 + $0x8] sm:$0xff]
        %v2468 = vld [vmem:[%s43 + $0x10] sm:$0xff]
        %v2469 = vld [vmem:[%s43 + $0x18] sm:$0xff]
        %v2470 = vld [vmem:[%s43 + $0x20] sm:$0xff]
        %v2471 = vld [vmem:[%s43 + $0x28] sm:$0xff]
        %v2472 = vld [vmem:[%s43 + $0x30] sm:$0xff]
        %v2473 = vld [vmem:[%s43 + $0x38] sm:$0xff]
        %v2475 = vsel %vm1235, %v2430, 0
        %v2478 = vsel %vm1235, %v2431, 0
        %v2481 = vsel %vm1235, %v2432, 0
        %v2484 = vsel %vm1235, %v2433, 0
        %2486 = vmatpush.msra.mxu0 0.0
        %2487 = vmatpush.msra.mxu0 0.0
        %2488 = vmatpush.msra.mxu0 0.0
        %2489 = vmatpush.msra.mxu0 0.0
        %2490 = vmatpush.msra.mxu0 0.0
        %2491 = vmatpush.msra.mxu0 0.0
        %2492 = vmatpush.msra.mxu0 0.0
        %2493 = vmatpush.msra.mxu0 0.0
        %2494 = vmatpush.msra.mxu0 0.0
        %2495 = vmatpush.msra.mxu0 0.0
        %2496 = vmatpush.msra.mxu0 0.0
        %2497 = vmatpush.msra.mxu0 0.0
        %2498 = vmatpush.msra.mxu0 %v2437
        %2499 = vmatpush.msra.mxu0 %v2436
        %2500 = vmatpush.msra.mxu0 %v2435
        %2501 = vmatpush.msra.mxu0 %v2434
        %2502 = vmatmul.f32.gmra.mxu0 %v2475
        %v2503 = vpop.f32.mrf.mxu0
        %v2504 = vadd.f32 0.0, %v2503
        %2505 = vmatmul.f32.gmra.mxu0 %v2478
        %v2506 = vpop.f32.mrf.mxu0
        %v2507 = vadd.f32 0.0, %v2506
        %2508 = vmatmul.f32.gmra.mxu0 %v2481
        %v2509 = vpop.f32.mrf.mxu0
        %v2510 = vadd.f32 0.0, %v2509
        %2511 = vmatmul.f32.gmra.mxu0 %v2484
        %v2512 = vpop.f32.mrf.mxu0
        %v2513 = vadd.f32 0.0, %v2512
        %2514 = vdwg.mxu0
        %2515 = vmatpush.msra.mxu0 0.0
        %2516 = vmatpush.msra.mxu0 0.0
        %2517 = vmatpush.msra.mxu0 0.0
        %2518 = vmatpush.msra.mxu0 0.0
        %2519 = vmatpush.msra.mxu0 0.0
        %2520 = vmatpush.msra.mxu0 0.0
        %2521 = vmatpush.msra.mxu0 0.0
        %2522 = vmatpush.msra.mxu0 0.0
        %2523 = vmatpush.msra.mxu0 0.0
        %2524 = vmatpush.msra.mxu0 0.0
        %2525 = vmatpush.msra.mxu0 0.0
        %2526 = vmatpush.msra.mxu0 0.0
        %2527 = vmatpush.msra.mxu0 %v2441
        %2528 = vmatpush.msra.mxu0 %v2440
        %2529 = vmatpush.msra.mxu0 %v2439
        %2530 = vmatpush.msra.mxu0 %v2438
        %2531 = vmatmul.f32.gmra.mxu0 %v2475
        %v2532 = vpop.f32.mrf.mxu0
        %v2533 = vadd.f32 0.0, %v2532
        %2534 = vmatmul.f32.gmra.mxu0 %v2478
        %v2535 = vpop.f32.mrf.mxu0
        %v2536 = vadd.f32 0.0, %v2535
        %2537 = vmatmul.f32.gmra.mxu0 %v2481
        %v2538 = vpop.f32.mrf.mxu0
        %v2539 = vadd.f32 0.0, %v2538
        %2540 = vmatmul.f32.gmra.mxu0 %v2484
        %v2541 = vpop.f32.mrf.mxu0
        %v2542 = vadd.f32 0.0, %v2541
        %2543 = vdwg.mxu0
        %2544 = vmatpush.msra.mxu0 0.0
        %2545 = vmatpush.msra.mxu0 0.0
        %2546 = vmatpush.msra.mxu0 0.0
        %2547 = vmatpush.msra.mxu0 0.0
        %2548 = vmatpush.msra.mxu0 0.0
        %2549 = vmatpush.msra.mxu0 0.0
        %2550 = vmatpush.msra.mxu0 0.0
        %2551 = vmatpush.msra.mxu0 0.0
        %2552 = vmatpush.msra.mxu0 0.0
        %2553 = vmatpush.msra.mxu0 0.0
        %2554 = vmatpush.msra.mxu0 0.0
        %2555 = vmatpush.msra.mxu0 0.0
        %2556 = vmatpush.msra.mxu0 %v2445
        %2557 = vmatpush.msra.mxu0 %v2444
        %2558 = vmatpush.msra.mxu0 %v2443
        %2559 = vmatpush.msra.mxu0 %v2442
        %2560 = vmatmul.f32.gmra.mxu0 %v2475
        %v2561 = vpop.f32.mrf.mxu0
        %v2562 = vadd.f32 0.0, %v2561
        %2563 = vmatmul.f32.gmra.mxu0 %v2478
        %v2564 = vpop.f32.mrf.mxu0
        %v2565 = vadd.f32 0.0, %v2564
        %2566 = vmatmul.f32.gmra.mxu0 %v2481
        %v2567 = vpop.f32.mrf.mxu0
        %v2568 = vadd.f32 0.0, %v2567
        %2569 = vmatmul.f32.gmra.mxu0 %v2484
        %v2570 = vpop.f32.mrf.mxu0
        %v2571 = vadd.f32 0.0, %v2570
        %2572 = vdwg.mxu0
        %2573 = vmatpush.msra.mxu0 0.0
        %2574 = vmatpush.msra.mxu0 0.0
        %2575 = vmatpush.msra.mxu0 0.0
        %2576 = vmatpush.msra.mxu0 0.0
        %2577 = vmatpush.msra.mxu0 0.0
        %2578 = vmatpush.msra.mxu0 0.0
        %2579 = vmatpush.msra.mxu0 0.0
        %2580 = vmatpush.msra.mxu0 0.0
        %2581 = vmatpush.msra.mxu0 0.0
        %2582 = vmatpush.msra.mxu0 0.0
        %2583 = vmatpush.msra.mxu0 0.0
        %2584 = vmatpush.msra.mxu0 0.0
        %2585 = vmatpush.msra.mxu0 %v2449
        %2586 = vmatpush.msra.mxu0 %v2448
        %2587 = vmatpush.msra.mxu0 %v2447
        %2588 = vmatpush.msra.mxu0 %v2446
        %2589 = vmatmul.f32.gmra.mxu0 %v2475
        %v2590 = vpop.f32.mrf.mxu0
        %v2591 = vadd.f32 0.0, %v2590
        %2592 = vmatmul.f32.gmra.mxu0 %v2478
        %v2593 = vpop.f32.mrf.mxu0
        %v2594 = vadd.f32 0.0, %v2593
        %2595 = vmatmul.f32.gmra.mxu0 %v2481
        %v2596 = vpop.f32.mrf.mxu0
        %v2597 = vadd.f32 0.0, %v2596
        %2598 = vmatmul.f32.gmra.mxu0 %v2484
        %v2599 = vpop.f32.mrf.mxu0
        %v2600 = vadd.f32 0.0, %v2599
        %2601 = vdwg.mxu0
        %2602 = vmatpush.msra.mxu0 0.0
        %2603 = vmatpush.msra.mxu0 0.0
        %2604 = vmatpush.msra.mxu0 0.0
        %2605 = vmatpush.msra.mxu0 0.0
        %2606 = vmatpush.msra.mxu0 0.0
        %2607 = vmatpush.msra.mxu0 0.0
        %2608 = vmatpush.msra.mxu0 0.0
        %2609 = vmatpush.msra.mxu0 0.0
        %2610 = vmatpush.msra.mxu0 0.0
        %2611 = vmatpush.msra.mxu0 0.0
        %2612 = vmatpush.msra.mxu0 0.0
        %2613 = vmatpush.msra.mxu0 0.0
        %2614 = vmatpush.msra.mxu0 %v2453
        %2615 = vmatpush.msra.mxu0 %v2452
        %2616 = vmatpush.msra.mxu0 %v2451
        %2617 = vmatpush.msra.mxu0 %v2450
        %2618 = vmatmul.f32.gmra.mxu0 %v2475
        %v2619 = vpop.f32.mrf.mxu0
        %v2620 = vadd.f32 0.0, %v2619
        %2621 = vmatmul.f32.gmra.mxu0 %v2478
        %v2622 = vpop.f32.mrf.mxu0
        %v2623 = vadd.f32 0.0, %v2622
        %2624 = vmatmul.f32.gmra.mxu0 %v2481
        %v2625 = vpop.f32.mrf.mxu0
        %v2626 = vadd.f32 0.0, %v2625
        %2627 = vmatmul.f32.gmra.mxu0 %v2484
        %v2628 = vpop.f32.mrf.mxu0
        %v2629 = vadd.f32 0.0, %v2628
        %2630 = vdwg.mxu0
        %2631 = vmatpush.msra.mxu0 0.0
        %2632 = vmatpush.msra.mxu0 0.0
        %2633 = vmatpush.msra.mxu0 0.0
        %2634 = vmatpush.msra.mxu0 0.0
        %2635 = vmatpush.msra.mxu0 0.0
        %2636 = vmatpush.msra.mxu0 0.0
        %2637 = vmatpush.msra.mxu0 0.0
        %2638 = vmatpush.msra.mxu0 0.0
        %2639 = vmatpush.msra.mxu0 0.0
        %2640 = vmatpush.msra.mxu0 0.0
        %2641 = vmatpush.msra.mxu0 0.0
        %2642 = vmatpush.msra.mxu0 0.0
        %2643 = vmatpush.msra.mxu0 %v2457
        %2644 = vmatpush.msra.mxu0 %v2456
        %2645 = vmatpush.msra.mxu0 %v2455
        %2646 = vmatpush.msra.mxu0 %v2454
        %2647 = vmatmul.f32.gmra.mxu0 %v2475
        %v2648 = vpop.f32.mrf.mxu0
        %v2649 = vadd.f32 0.0, %v2648
        %2650 = vmatmul.f32.gmra.mxu0 %v2478
        %v2651 = vpop.f32.mrf.mxu0
        %v2652 = vadd.f32 0.0, %v2651
        %2653 = vmatmul.f32.gmra.mxu0 %v2481
        %v2654 = vpop.f32.mrf.mxu0
        %v2655 = vadd.f32 0.0, %v2654
        %2656 = vmatmul.f32.gmra.mxu0 %v2484
        %v2657 = vpop.f32.mrf.mxu0
        %v2658 = vadd.f32 0.0, %v2657
        %2659 = vdwg.mxu0
        %2660 = vmatpush.msra.mxu0 0.0
        %2661 = vmatpush.msra.mxu0 0.0
        %2662 = vmatpush.msra.mxu0 0.0
        %2663 = vmatpush.msra.mxu0 0.0
        %2664 = vmatpush.msra.mxu0 0.0
        %2665 = vmatpush.msra.mxu0 0.0
        %2666 = vmatpush.msra.mxu0 0.0
        %2667 = vmatpush.msra.mxu0 0.0
        %2668 = vmatpush.msra.mxu0 0.0
        %2669 = vmatpush.msra.mxu0 0.0
        %2670 = vmatpush.msra.mxu0 0.0
        %2671 = vmatpush.msra.mxu0 0.0
        %2672 = vmatpush.msra.mxu0 %v2461
        %2673 = vmatpush.msra.mxu0 %v2460
        %2674 = vmatpush.msra.mxu0 %v2459
        %2675 = vmatpush.msra.mxu0 %v2458
        %2676 = vmatmul.f32.gmra.mxu0 %v2475
        %v2677 = vpop.f32.mrf.mxu0
        %v2678 = vadd.f32 0.0, %v2677
        %2679 = vmatmul.f32.gmra.mxu0 %v2478
        %v2680 = vpop.f32.mrf.mxu0
        %v2681 = vadd.f32 0.0, %v2680
        %2682 = vmatmul.f32.gmra.mxu0 %v2481
        %v2683 = vpop.f32.mrf.mxu0
        %v2684 = vadd.f32 0.0, %v2683
        %2685 = vmatmul.f32.gmra.mxu0 %v2484
        %v2686 = vpop.f32.mrf.mxu0
        %v2687 = vadd.f32 0.0, %v2686
        %2688 = vdwg.mxu0
        %2689 = vmatpush.msra.mxu0 0.0
        %2690 = vmatpush.msra.mxu0 0.0
        %2691 = vmatpush.msra.mxu0 0.0
        %2692 = vmatpush.msra.mxu0 0.0
        %2693 = vmatpush.msra.mxu0 0.0
        %2694 = vmatpush.msra.mxu0 0.0
        %2695 = vmatpush.msra.mxu0 0.0
        %2696 = vmatpush.msra.mxu0 0.0
        %2697 = vmatpush.msra.mxu0 0.0
        %2698 = vmatpush.msra.mxu0 0.0
        %2699 = vmatpush.msra.mxu0 0.0
        %2700 = vmatpush.msra.mxu0 0.0
        %2701 = vmatpush.msra.mxu0 %v2465
        %2702 = vmatpush.msra.mxu0 %v2464
        %2703 = vmatpush.msra.mxu0 %v2463
        %2704 = vmatpush.msra.mxu0 %v2462
        %2705 = vmatmul.f32.gmra.mxu0 %v2475
        %v2706 = vpop.f32.mrf.mxu0
        %v2707 = vadd.f32 0.0, %v2706
        %2708 = vmatmul.f32.gmra.mxu0 %v2478
        %v2709 = vpop.f32.mrf.mxu0
        %v2710 = vadd.f32 0.0, %v2709
        %2711 = vmatmul.f32.gmra.mxu0 %v2481
        %v2712 = vpop.f32.mrf.mxu0
        %v2713 = vadd.f32 0.0, %v2712
        %2714 = vmatmul.f32.gmra.mxu0 %v2484
        %v2715 = vpop.f32.mrf.mxu0
        %v2716 = vadd.f32 0.0, %v2715
        %2717 = vdwg.mxu0
        %v2719 = vsel %vm1544, %v2504, 0
        %v2722 = vsel %vm1544, %v2507, 0
        %v2725 = vsel %vm1544, %v2510, 0
        %v2728 = vsel %vm1544, %v2513, 0
        %v2731 = vsel %vm1544, %v2620, 0
        %v2734 = vsel %vm1544, %v2623, 0
        %v2737 = vsel %vm1544, %v2626, 0
        %v2740 = vsel %vm1544, %v2629, 0
        %2742 = vmatpush.xpose.msra.mxu0 0.0
        %2743 = vmatpush.xpose.msra.mxu0 0.0
        %2744 = vmatpush.xpose.msra.mxu0 0.0
        %2745 = vmatpush.xpose.msra.mxu0 0.0
        %2746 = vmatpush.xpose.msra.mxu0 0.0
        %2747 = vmatpush.xpose.msra.mxu0 0.0
        %2748 = vmatpush.xpose.msra.mxu0 0.0
        %2749 = vmatpush.xpose.msra.mxu0 0.0
        %2750 = vmatpush.xpose.msra.mxu0 0.0
        %2751 = vmatpush.xpose.msra.mxu0 0.0
        %2752 = vmatpush.xpose.msra.mxu0 0.0
        %2753 = vmatpush.xpose.msra.mxu0 0.0
        %2754 = vmatpush.xpose.msra.mxu0 %v2740
        %2755 = vmatpush.xpose.msra.mxu0 %v2737
        %2756 = vmatpush.xpose.msra.mxu0 %v2734
        %2757 = vmatpush.xpose.msra.mxu0 %v2731
        %2758 = vmatmul.f32.gmra.mxu0 %v2719
        %v2759 = vpop.f32.mrf.mxu0
        %v2760 = vadd.f32 0.0, %v2759
        %2761 = vmatmul.f32.gmra.mxu0 %v2722
        %v2762 = vpop.f32.mrf.mxu0
        %v2763 = vadd.f32 0.0, %v2762
        %2764 = vmatmul.f32.gmra.mxu0 %v2725
        %v2765 = vpop.f32.mrf.mxu0
        %v2766 = vadd.f32 0.0, %v2765
        %2767 = vmatmul.f32.gmra.mxu0 %v2728
        %v2768 = vpop.f32.mrf.mxu0
        %v2769 = vadd.f32 0.0, %v2768
        %2770 = vdwg.mxu0
        %v2772 = vsel %vm1544, %v2533, 0
        %v2775 = vsel %vm1544, %v2536, 0
        %v2778 = vsel %vm1544, %v2539, 0
        %v2781 = vsel %vm1544, %v2542, 0
        %v2784 = vsel %vm1544, %v2649, 0
        %v2787 = vsel %vm1544, %v2652, 0
        %v2790 = vsel %vm1544, %v2655, 0
        %v2793 = vsel %vm1544, %v2658, 0
        %2795 = vmatpush.xpose.msra.mxu0 0.0
        %2796 = vmatpush.xpose.msra.mxu0 0.0
        %2797 = vmatpush.xpose.msra.mxu0 0.0
        %2798 = vmatpush.xpose.msra.mxu0 0.0
        %2799 = vmatpush.xpose.msra.mxu0 0.0
        %2800 = vmatpush.xpose.msra.mxu0 0.0
        %2801 = vmatpush.xpose.msra.mxu0 0.0
        %2802 = vmatpush.xpose.msra.mxu0 0.0
        %2803 = vmatpush.xpose.msra.mxu0 0.0
        %2804 = vmatpush.xpose.msra.mxu0 0.0
        %2805 = vmatpush.xpose.msra.mxu0 0.0
        %2806 = vmatpush.xpose.msra.mxu0 0.0
        %2807 = vmatpush.xpose.msra.mxu0 %v2793
        %2808 = vmatpush.xpose.msra.mxu0 %v2790
        %2809 = vmatpush.xpose.msra.mxu0 %v2787
        %2810 = vmatpush.xpose.msra.mxu0 %v2784
        %2811 = vmatmul.f32.gmra.mxu0 %v2772
        %v2812 = vpop.f32.mrf.mxu0
        %v2813 = vadd.f32 0.0, %v2812
        %2814 = vmatmul.f32.gmra.mxu0 %v2775
        %v2815 = vpop.f32.mrf.mxu0
        %v2816 = vadd.f32 0.0, %v2815
        %2817 = vmatmul.f32.gmra.mxu0 %v2778
        %v2818 = vpop.f32.mrf.mxu0
        %v2819 = vadd.f32 0.0, %v2818
        %2820 = vmatmul.f32.gmra.mxu0 %v2781
        %v2821 = vpop.f32.mrf.mxu0
        %v2822 = vadd.f32 0.0, %v2821
        %2823 = vdwg.mxu0
        %v2825 = vsel %vm1544, %v2562, 0
        %v2828 = vsel %vm1544, %v2565, 0
        %v2831 = vsel %vm1544, %v2568, 0
        %v2834 = vsel %vm1544, %v2571, 0
        %v2837 = vsel %vm1544, %v2678, 0
        %v2840 = vsel %vm1544, %v2681, 0
        %v2843 = vsel %vm1544, %v2684, 0
        %v2846 = vsel %vm1544, %v2687, 0
        %2848 = vmatpush.xpose.msra.mxu0 0.0
        %2849 = vmatpush.xpose.msra.mxu0 0.0
        %2850 = vmatpush.xpose.msra.mxu0 0.0
        %2851 = vmatpush.xpose.msra.mxu0 0.0
        %2852 = vmatpush.xpose.msra.mxu0 0.0
        %2853 = vmatpush.xpose.msra.mxu0 0.0
        %2854 = vmatpush.xpose.msra.mxu0 0.0
        %2855 = vmatpush.xpose.msra.mxu0 0.0
        %2856 = vmatpush.xpose.msra.mxu0 0.0
        %2857 = vmatpush.xpose.msra.mxu0 0.0
        %2858 = vmatpush.xpose.msra.mxu0 0.0
        %2859 = vmatpush.xpose.msra.mxu0 0.0
        %2860 = vmatpush.xpose.msra.mxu0 %v2846
        %2861 = vmatpush.xpose.msra.mxu0 %v2843
        %2862 = vmatpush.xpose.msra.mxu0 %v2840
        %2863 = vmatpush.xpose.msra.mxu0 %v2837
        %2864 = vmatmul.f32.gmra.mxu0 %v2825
        %v2865 = vpop.f32.mrf.mxu0
        %v2866 = vadd.f32 0.0, %v2865
        %2867 = vmatmul.f32.gmra.mxu0 %v2828
        %v2868 = vpop.f32.mrf.mxu0
        %v2869 = vadd.f32 0.0, %v2868
        %2870 = vmatmul.f32.gmra.mxu0 %v2831
        %v2871 = vpop.f32.mrf.mxu0
        %v2872 = vadd.f32 0.0, %v2871
        %2873 = vmatmul.f32.gmra.mxu0 %v2834
        %v2874 = vpop.f32.mrf.mxu0
        %v2875 = vadd.f32 0.0, %v2874
        %2876 = vdwg.mxu0
        %v2878 = vsel %vm1544, %v2591, 0
        %v2881 = vsel %vm1544, %v2594, 0
        %v2884 = vsel %vm1544, %v2597, 0
        %v2887 = vsel %vm1544, %v2600, 0
        %v2890 = vsel %vm1544, %v2707, 0
        %v2893 = vsel %vm1544, %v2710, 0
        %v2896 = vsel %vm1544, %v2713, 0
        %v2899 = vsel %vm1544, %v2716, 0
        %2901 = vmatpush.xpose.msra.mxu0 0.0
        %2902 = vmatpush.xpose.msra.mxu0 0.0
        %2903 = vmatpush.xpose.msra.mxu0 0.0
        %2904 = vmatpush.xpose.msra.mxu0 0.0
        %2905 = vmatpush.xpose.msra.mxu0 0.0
        %2906 = vmatpush.xpose.msra.mxu0 0.0
        %2907 = vmatpush.xpose.msra.mxu0 0.0
        %2908 = vmatpush.xpose.msra.mxu0 0.0
        %2909 = vmatpush.xpose.msra.mxu0 0.0
        %2910 = vmatpush.xpose.msra.mxu0 0.0
        %2911 = vmatpush.xpose.msra.mxu0 0.0
        %2912 = vmatpush.xpose.msra.mxu0 0.0
        %2913 = vmatpush.xpose.msra.mxu0 %v2899
        %2914 = vmatpush.xpose.msra.mxu0 %v2896
        %2915 = vmatpush.xpose.msra.mxu0 %v2893
        %2916 = vmatpush.xpose.msra.mxu0 %v2890
        %2917 = vmatmul.f32.gmra.mxu0 %v2878
        %v2918 = vpop.f32.mrf.mxu0
        %v2919 = vadd.f32 0.0, %v2918
        %2920 = vmatmul.f32.gmra.mxu0 %v2881
        %v2921 = vpop.f32.mrf.mxu0
        %v2922 = vadd.f32 0.0, %v2921
        %2923 = vmatmul.f32.gmra.mxu0 %v2884
        %v2924 = vpop.f32.mrf.mxu0
        %v2925 = vadd.f32 0.0, %v2924
        %2926 = vmatmul.f32.gmra.mxu0 %v2887
        %v2927 = vpop.f32.mrf.mxu0
        %v2928 = vadd.f32 0.0, %v2927
        %2929 = vdwg.mxu0
        %v2930 = vmul.f32 %v2760, 0.25
        %v2931 = vmul.f32 %v2763, 0.25
        %v2932 = vmul.f32 %v2766, 0.25
        %v2933 = vmul.f32 %v2769, 0.25
        %v2934 = vmul.f32 %v2813, 0.25
        %v2935 = vmul.f32 %v2816, 0.25
        %v2936 = vmul.f32 %v2819, 0.25
        %v2937 = vmul.f32 %v2822, 0.25
        %v2938 = vmul.f32 %v2866, 0.25
        %v2939 = vmul.f32 %v2869, 0.25
        %v2940 = vmul.f32 %v2872, 0.25
        %v2941 = vmul.f32 %v2875, 0.25
        %v2942 = vmul.f32 %v2919, 0.25
        %v2943 = vmul.f32 %v2922, 0.25
        %v2944 = vmul.f32 %v2925, 0.25
        %v2945 = vmul.f32 %v2928, 0.25
        %v2946 = vsel %vm1235, %v2930, -inf
        %2947 = vmax.xlane.f32.xlu0 %v2946
        %v2948 = vpop.xlane.xlu0 %2947
        %v2949 = vsel %vm1235, %v2931, -inf
        %2950 = vmax.xlane.f32.xlu0 %v2949
        %v2951 = vpop.xlane.xlu0 %2950
        %v2952 = vsel %vm1235, %v2932, -inf
        %2953 = vmax.xlane.f32.xlu0 %v2952
        %v2954 = vpop.xlane.xlu0 %2953
        %v2955 = vsel %vm1235, %v2933, -inf
        %2956 = vmax.xlane.f32.xlu0 %v2955
        %v2957 = vpop.xlane.xlu0 %2956
        %v2958 = vsel %vm1235, %v2934, -inf
        %2959 = vmax.xlane.f32.xlu0 %v2958
        %v2960 = vpop.xlane.xlu0 %2959
        %v2961 = vsel %vm1235, %v2935, -inf
        %2962 = vmax.xlane.f32.xlu0 %v2961
        %v2963 = vpop.xlane.xlu0 %2962
        %v2964 = vsel %vm1235, %v2936, -inf
        %2965 = vmax.xlane.f32.xlu0 %v2964
        %v2966 = vpop.xlane.xlu0 %2965
        %v2967 = vsel %vm1235, %v2937, -inf
        %2968 = vmax.xlane.f32.xlu0 %v2967
        %v2969 = vpop.xlane.xlu0 %2968
        %v2970 = vsel %vm1235, %v2938, -inf
        %2971 = vmax.xlane.f32.xlu0 %v2970
        %v2972 = vpop.xlane.xlu0 %2971
        %v2973 = vsel %vm1235, %v2939, -inf
        %2974 = vmax.xlane.f32.xlu0 %v2973
        %v2975 = vpop.xlane.xlu0 %2974
        %v2976 = vsel %vm1235, %v2940, -inf
        %2977 = vmax.xlane.f32.xlu0 %v2976
        %v2978 = vpop.xlane.xlu0 %2977
        %v2979 = vsel %vm1235, %v2941, -inf
        %2980 = vmax.xlane.f32.xlu0 %v2979
        %v2981 = vpop.xlane.xlu0 %2980
        %v2982 = vsel %vm1235, %v2942, -inf
        %2983 = vmax.xlane.f32.xlu0 %v2982
        %v2984 = vpop.xlane.xlu0 %2983
        %v2985 = vsel %vm1235, %v2943, -inf
        %2986 = vmax.xlane.f32.xlu0 %v2985
        %v2987 = vpop.xlane.xlu0 %2986
        %v2988 = vsel %vm1235, %v2944, -inf
        %2989 = vmax.xlane.f32.xlu0 %v2988
        %v2990 = vpop.xlane.xlu0 %2989
        %v2991 = vsel %vm1235, %v2945, -inf
        %2992 = vmax.xlane.f32.xlu0 %v2991
        %v2993 = vpop.xlane.xlu0 %2992
        %v2994 = vsub.f32 %v2930, %v2948
        %v2995 = vsub.f32 %v2931, %v2951
        %v2996 = vsub.f32 %v2932, %v2954
        %v2997 = vsub.f32 %v2933, %v2957
        %v2998 = vsub.f32 %v2934, %v2960
        %v2999 = vsub.f32 %v2935, %v2963
        %v3000 = vsub.f32 %v2936, %v2966
        %v3001 = vsub.f32 %v2937, %v2969
        %v3002 = vsub.f32 %v2938, %v2972
        %v3003 = vsub.f32 %v2939, %v2975
        %v3004 = vsub.f32 %v2940, %v2978
        %v3005 = vsub.f32 %v2941, %v2981
        %v3006 = vsub.f32 %v2942, %v2984
        %v3007 = vsub.f32 %v2943, %v2987
        %v3008 = vsub.f32 %v2944, %v2990
        %v3009 = vsub.f32 %v2945, %v2993
        %v3010 = vmul.f32 %v2994, 1.442695
        %v3011 = vpow.pop %v3010
        %v3012 = vmul.f32 %v2995, 1.442695
        %v3013 = vpow.pop %v3012
        %v3014 = vmul.f32 %v2996, 1.442695
        %v3015 = vpow.pop %v3014
        %v3016 = vmul.f32 %v2997, 1.442695
        %v3017 = vpow.pop %v3016
        %v3018 = vmul.f32 %v2998, 1.442695
        %v3019 = vpow.pop %v3018
        %v3020 = vmul.f32 %v2999, 1.442695
        %v3021 = vpow.pop %v3020
        %v3022 = vmul.f32 %v3000, 1.442695
        %v3023 = vpow.pop %v3022
        %v3024 = vmul.f32 %v3001, 1.442695
        %v3025 = vpow.pop %v3024
        %v3026 = vmul.f32 %v3002, 1.442695
        %v3027 = vpow.pop %v3026
        %v3028 = vmul.f32 %v3003, 1.442695
        %v3029 = vpow.pop %v3028
        %v3030 = vmul.f32 %v3004, 1.442695
        %v3031 = vpow.pop %v3030
        %v3032 = vmul.f32 %v3005, 1.442695
        %v3033 = vpow.pop %v3032
        %v3034 = vmul.f32 %v3006, 1.442695
        %v3035 = vpow.pop %v3034
        %v3036 = vmul.f32 %v3007, 1.442695
        %v3037 = vpow.pop %v3036
        %v3038 = vmul.f32 %v3008, 1.442695
        %v3039 = vpow.pop %v3038
        %v3040 = vmul.f32 %v3009, 1.442695
        %v3041 = vpow.pop %v3040
        %v3042 = vsel %vm1235, %v3011, 0.0
        %3043 = vadd.xlane.f32.xlu0 %v3042
        %v3044 = vpop.xlane.xlu0 %3043
        %v3045 = vsel %vm1235, %v3013, 0.0
        %3046 = vadd.xlane.f32.xlu0 %v3045
        %v3047 = vpop.xlane.xlu0 %3046
        %v3048 = vsel %vm1235, %v3015, 0.0
        %3049 = vadd.xlane.f32.xlu0 %v3048
        %v3050 = vpop.xlane.xlu0 %3049
        %v3051 = vsel %vm1235, %v3017, 0.0
        %3052 = vadd.xlane.f32.xlu0 %v3051
        %v3053 = vpop.xlane.xlu0 %3052
        %v3054 = vsel %vm1235, %v3019, 0.0
        %3055 = vadd.xlane.f32.xlu0 %v3054
        %v3056 = vpop.xlane.xlu0 %3055
        %v3057 = vsel %vm1235, %v3021, 0.0
        %3058 = vadd.xlane.f32.xlu0 %v3057
        %v3059 = vpop.xlane.xlu0 %3058
        %v3060 = vsel %vm1235, %v3023, 0.0
        %3061 = vadd.xlane.f32.xlu0 %v3060
        %v3062 = vpop.xlane.xlu0 %3061
        %v3063 = vsel %vm1235, %v3025, 0.0
        %3064 = vadd.xlane.f32.xlu0 %v3063
        %v3065 = vpop.xlane.xlu0 %3064
        %v3066 = vsel %vm1235, %v3027, 0.0
        %3067 = vadd.xlane.f32.xlu0 %v3066
        %v3068 = vpop.xlane.xlu0 %3067
        %v3069 = vsel %vm1235, %v3029, 0.0
        %3070 = vadd.xlane.f32.xlu0 %v3069
        %v3071 = vpop.xlane.xlu0 %3070
        %v3072 = vsel %vm1235, %v3031, 0.0
        %3073 = vadd.xlane.f32.xlu0 %v3072
        %v3074 = vpop.xlane.xlu0 %3073
        %v3075 = vsel %vm1235, %v3033, 0.0
        %3076 = vadd.xlane.f32.xlu0 %v3075
        %v3077 = vpop.xlane.xlu0 %3076
        %v3078 = vsel %vm1235, %v3035, 0.0
        %3079 = vadd.xlane.f32.xlu0 %v3078
        %v3080 = vpop.xlane.xlu0 %3079
        %v3081 = vsel %vm1235, %v3037, 0.0
        %3082 = vadd.xlane.f32.xlu0 %v3081
        %v3083 = vpop.xlane.xlu0 %3082
        %v3084 = vsel %vm1235, %v3039, 0.0
        %3085 = vadd.xlane.f32.xlu0 %v3084
        %v3086 = vpop.xlane.xlu0 %3085
        %v3087 = vsel %vm1235, %v3041, 0.0
        %3088 = vadd.xlane.f32.xlu0 %v3087
        %v3089 = vpop.xlane.xlu0 %3088
        %v3090 = vrcp.pop %v3044
        %v3091 = vrcp.pop %v3047
        %v3092 = vrcp.pop %v3050
        %v3093 = vrcp.pop %v3053
        %v3094 = vrcp.pop %v3056
        %v3095 = vrcp.pop %v3059
        %v3096 = vrcp.pop %v3062
        %v3097 = vrcp.pop %v3065
        %v3098 = vrcp.pop %v3068
        %v3099 = vrcp.pop %v3071
        %v3100 = vrcp.pop %v3074
        %v3101 = vrcp.pop %v3077
        %v3102 = vrcp.pop %v3080
        %v3103 = vrcp.pop %v3083
        %v3104 = vrcp.pop %v3086
        %v3105 = vrcp.pop %v3089
        %v3106 = vmul.f32 %v3011, %v3090
        %v3107 = vmul.f32 %v3013, %v3091
        %v3108 = vmul.f32 %v3015, %v3092
        %v3109 = vmul.f32 %v3017, %v3093
        %v3110 = vmul.f32 %v3019, %v3094
        %v3111 = vmul.f32 %v3021, %v3095
        %v3112 = vmul.f32 %v3023, %v3096
        %v3113 = vmul.f32 %v3025, %v3097
        %v3114 = vmul.f32 %v3027, %v3098
        %v3115 = vmul.f32 %v3029, %v3099
        %v3116 = vmul.f32 %v3031, %v3100
        %v3117 = vmul.f32 %v3033, %v3101
        %v3118 = vmul.f32 %v3035, %v3102
        %v3119 = vmul.f32 %v3037, %v3103
        %v3120 = vmul.f32 %v3039, %v3104
        %v3121 = vmul.f32 %v3041, %v3105
        %3122 = vrot.lane.b32.xlu0 %v2620, 112
        %v3123 = vpop.permute.xlu0 %3122
        %3124 = vrot.lane.b32.xlu0 %v2623, 112
        %v3125 = vpop.permute.xlu0 %3124
        %3126 = vrot.lane.b32.xlu0 %v2626, 112
        %v3127 = vpop.permute.xlu0 %3126
        %3128 = vrot.lane.b32.xlu0 %v2629, 112
        %v3129 = vpop.permute.xlu0 %3128
        %v3135 = vsel %vm1235, %v3106, 0
        %v3138 = vsel %vm1235, %v3107, 0
        %v3141 = vsel %vm1235, %v3108, 0
        %v3144 = vsel %vm1235, %v3109, 0
        %3146 = vmatpush.msra.mxu0 0.0
        %3147 = vmatpush.msra.mxu0 0.0
        %3148 = vmatpush.msra.mxu0 0.0
        %3149 = vmatpush.msra.mxu0 0.0
        %3150 = vmatpush.msra.mxu0 0.0
        %3151 = vmatpush.msra.mxu0 0.0
        %3152 = vmatpush.msra.mxu0 0.0
        %3153 = vmatpush.msra.mxu0 0.0
        %3154 = vmatpush.msra.mxu0 0.0
        %3155 = vmatpush.msra.mxu0 0.0
        %3156 = vmatpush.msra.mxu0 0.0
        %3157 = vmatpush.msra.mxu0 0.0
        %3158 = vmatpush.msra.mxu0 %v3129
        %3159 = vmatpush.msra.mxu0 %v3127
        %3160 = vmatpush.msra.mxu0 %v3125
        %3161 = vmatpush.msra.mxu0 %v3123
        %3162 = vmatmul.f32.gmra.mxu0 %v3135
        %v3163 = vpop.f32.mrf.mxu0
        %v3164 = vadd.f32 0.0, %v3163
        %3165 = vmatmul.f32.gmra.mxu0 %v3138
        %v3166 = vpop.f32.mrf.mxu0
        %v3167 = vadd.f32 0.0, %v3166
        %3168 = vmatmul.f32.gmra.mxu0 %v3141
        %v3169 = vpop.f32.mrf.mxu0
        %v3170 = vadd.f32 0.0, %v3169
        %3171 = vmatmul.f32.gmra.mxu0 %v3144
        %v3172 = vpop.f32.mrf.mxu0
        %v3173 = vadd.f32 0.0, %v3172
        %3174 = vdwg.mxu0
        %3175 = vrot.lane.b32.xlu0 %v2649, 112
        %v3176 = vpop.permute.xlu0 %3175
        %3177 = vrot.lane.b32.xlu0 %v2652, 112
        %v3178 = vpop.permute.xlu0 %3177
        %3179 = vrot.lane.b32.xlu0 %v2655, 112
        %v3180 = vpop.permute.xlu0 %3179
        %3181 = vrot.lane.b32.xlu0 %v2658, 112
        %v3182 = vpop.permute.xlu0 %3181
        %v3188 = vsel %vm1235, %v3110, 0
        %v3191 = vsel %vm1235, %v3111, 0
        %v3194 = vsel %vm1235, %v3112, 0
        %v3197 = vsel %vm1235, %v3113, 0
        %3199 = vmatpush.msra.mxu0 0.0
        %3200 = vmatpush.msra.mxu0 0.0
        %3201 = vmatpush.msra.mxu0 0.0
        %3202 = vmatpush.msra.mxu0 0.0
        %3203 = vmatpush.msra.mxu0 0.0
        %3204 = vmatpush.msra.mxu0 0.0
        %3205 = vmatpush.msra.mxu0 0.0
        %3206 = vmatpush.msra.mxu0 0.0
        %3207 = vmatpush.msra.mxu0 0.0
        %3208 = vmatpush.msra.mxu0 0.0
        %3209 = vmatpush.msra.mxu0 0.0
        %3210 = vmatpush.msra.mxu0 0.0
        %3211 = vmatpush.msra.mxu0 %v3182
        %3212 = vmatpush.msra.mxu0 %v3180
        %3213 = vmatpush.msra.mxu0 %v3178
        %3214 = vmatpush.msra.mxu0 %v3176
        %3215 = vmatmul.f32.gmra.mxu0 %v3188
        %v3216 = vpop.f32.mrf.mxu0
        %v3217 = vadd.f32 0.0, %v3216
        %3218 = vmatmul.f32.gmra.mxu0 %v3191
        %v3219 = vpop.f32.mrf.mxu0
        %v3220 = vadd.f32 0.0, %v3219
        %3221 = vmatmul.f32.gmra.mxu0 %v3194
        %v3222 = vpop.f32.mrf.mxu0
        %v3223 = vadd.f32 0.0, %v3222
        %3224 = vmatmul.f32.gmra.mxu0 %v3197
        %v3225 = vpop.f32.mrf.mxu0
        %v3226 = vadd.f32 0.0, %v3225
        %3227 = vdwg.mxu0
        %3228 = vrot.lane.b32.xlu0 %v2678, 112
        %v3229 = vpop.permute.xlu0 %3228
        %3230 = vrot.lane.b32.xlu0 %v2681, 112
        %v3231 = vpop.permute.xlu0 %3230
        %3232 = vrot.lane.b32.xlu0 %v2684, 112
        %v3233 = vpop.permute.xlu0 %3232
        %3234 = vrot.lane.b32.xlu0 %v2687, 112
        %v3235 = vpop.permute.xlu0 %3234
        %v3241 = vsel %vm1235, %v3114, 0
        %v3244 = vsel %vm1235, %v3115, 0
        %v3247 = vsel %vm1235, %v3116, 0
        %v3250 = vsel %vm1235, %v3117, 0
        %3252 = vmatpush.msra.mxu0 0.0
        %3253 = vmatpush.msra.mxu0 0.0
        %3254 = vmatpush.msra.mxu0 0.0
        %3255 = vmatpush.msra.mxu0 0.0
        %3256 = vmatpush.msra.mxu0 0.0
        %3257 = vmatpush.msra.mxu0 0.0
        %3258 = vmatpush.msra.mxu0 0.0
        %3259 = vmatpush.msra.mxu0 0.0
        %3260 = vmatpush.msra.mxu0 0.0
        %3261 = vmatpush.msra.mxu0 0.0
        %3262 = vmatpush.msra.mxu0 0.0
        %3263 = vmatpush.msra.mxu0 0.0
        %3264 = vmatpush.msra.mxu0 %v3235
        %3265 = vmatpush.msra.mxu0 %v3233
        %3266 = vmatpush.msra.mxu0 %v3231
        %3267 = vmatpush.msra.mxu0 %v3229
        %3268 = vmatmul.f32.gmra.mxu0 %v3241
        %v3269 = vpop.f32.mrf.mxu0
        %v3270 = vadd.f32 0.0, %v3269
        %3271 = vmatmul.f32.gmra.mxu0 %v3244
        %v3272 = vpop.f32.mrf.mxu0
        %v3273 = vadd.f32 0.0, %v3272
        %3274 = vmatmul.f32.gmra.mxu0 %v3247
        %v3275 = vpop.f32.mrf.mxu0
        %v3276 = vadd.f32 0.0, %v3275
        %3277 = vmatmul.f32.gmra.mxu0 %v3250
        %v3278 = vpop.f32.mrf.mxu0
        %v3279 = vadd.f32 0.0, %v3278
        %3280 = vdwg.mxu0
        %3281 = vrot.lane.b32.xlu0 %v2707, 112
        %v3282 = vpop.permute.xlu0 %3281
        %3283 = vrot.lane.b32.xlu0 %v2710, 112
        %v3284 = vpop.permute.xlu0 %3283
        %3285 = vrot.lane.b32.xlu0 %v2713, 112
        %v3286 = vpop.permute.xlu0 %3285
        %3287 = vrot.lane.b32.xlu0 %v2716, 112
        %v3288 = vpop.permute.xlu0 %3287
        %v3294 = vsel %vm1235, %v3118, 0
        %v3297 = vsel %vm1235, %v3119, 0
        %v3300 = vsel %vm1235, %v3120, 0
        %v3303 = vsel %vm1235, %v3121, 0
        %3305 = vmatpush.msra.mxu0 0.0
        %3306 = vmatpush.msra.mxu0 0.0
        %3307 = vmatpush.msra.mxu0 0.0
        %3308 = vmatpush.msra.mxu0 0.0
        %3309 = vmatpush.msra.mxu0 0.0
        %3310 = vmatpush.msra.mxu0 0.0
        %3311 = vmatpush.msra.mxu0 0.0
        %3312 = vmatpush.msra.mxu0 0.0
        %3313 = vmatpush.msra.mxu0 0.0
        %3314 = vmatpush.msra.mxu0 0.0
        %3315 = vmatpush.msra.mxu0 0.0
        %3316 = vmatpush.msra.mxu0 0.0
        %3317 = vmatpush.msra.mxu0 %v3288
        %3318 = vmatpush.msra.mxu0 %v3286
        %3319 = vmatpush.msra.mxu0 %v3284
        %3320 = vmatpush.msra.mxu0 %v3282
        %3321 = vmatmul.f32.gmra.mxu0 %v3294
        %v3322 = vpop.f32.mrf.mxu0
        %v3323 = vadd.f32 0.0, %v3322
        %3324 = vmatmul.f32.gmra.mxu0 %v3297
        %v3325 = vpop.f32.mrf.mxu0
        %v3326 = vadd.f32 0.0, %v3325
        %3327 = vmatmul.f32.gmra.mxu0 %v3300
        %v3328 = vpop.f32.mrf.mxu0
        %v3329 = vadd.f32 0.0, %v3328
        %3330 = vmatmul.f32.gmra.mxu0 %v3303
        %v3331 = vpop.f32.mrf.mxu0
        %v3332 = vadd.f32 0.0, %v3331
        %3333 = vdwg.mxu0
        %v3335 = vsel %vm1544, %v3164, 0
        %v3338 = vsel %vm1544, %v3167, 0
        %v3341 = vsel %vm1544, %v3170, 0
        %v3344 = vsel %vm1544, %v3173, 0
        %3346 = vmatpush.msra.mxu0 0.0
        %3347 = vmatpush.msra.mxu0 0.0
        %3348 = vmatpush.msra.mxu0 0.0
        %3349 = vmatpush.msra.mxu0 0.0
        %3350 = vmatpush.msra.mxu0 0.0
        %3351 = vmatpush.msra.mxu0 0.0
        %3352 = vmatpush.msra.mxu0 0.0
        %3353 = vmatpush.msra.mxu0 0.0
        %3354 = vmatpush.msra.mxu0 0.0
        %3355 = vmatpush.msra.mxu0 0.0
        %3356 = vmatpush.msra.mxu0 0.0
        %3357 = vmatpush.msra.mxu0 0.0
        %3358 = vmatpush.msra.mxu0 0.0
        %3359 = vmatpush.msra.mxu0 0.0
        %3360 = vmatpush.msra.mxu0 %v2467
        %3361 = vmatpush.msra.mxu0 %v2466
        %3362 = vmatmul.f32.gmra.mxu0 %v3335
        %v3363 = vpop.f32.mrf.mxu0
        %v3364 = vadd.f32 0.0, %v3363
        %3365 = vmatmul.f32.gmra.mxu0 %v3338
        %v3366 = vpop.f32.mrf.mxu0
        %v3367 = vadd.f32 0.0, %v3366
        %3368 = vmatmul.f32.gmra.mxu0 %v3341
        %v3369 = vpop.f32.mrf.mxu0
        %v3370 = vadd.f32 0.0, %v3369
        %3371 = vmatmul.f32.gmra.mxu0 %v3344
        %v3372 = vpop.f32.mrf.mxu0
        %v3373 = vadd.f32 0.0, %v3372
        %3374 = vdwg.mxu0
        %v3376 = vsel %vm1544, %v3217, 0
        %v3379 = vsel %vm1544, %v3220, 0
        %v3382 = vsel %vm1544, %v3223, 0
        %v3385 = vsel %vm1544, %v3226, 0
        %3387 = vmatpush.msra.mxu0 0.0
        %3388 = vmatpush.msra.mxu0 0.0
        %3389 = vmatpush.msra.mxu0 0.0
        %3390 = vmatpush.msra.mxu0 0.0
        %3391 = vmatpush.msra.mxu0 0.0
        %3392 = vmatpush.msra.mxu0 0.0
        %3393 = vmatpush.msra.mxu0 0.0
        %3394 = vmatpush.msra.mxu0 0.0
        %3395 = vmatpush.msra.mxu0 0.0
        %3396 = vmatpush.msra.mxu0 0.0
        %3397 = vmatpush.msra.mxu0 0.0
        %3398 = vmatpush.msra.mxu0 0.0
        %3399 = vmatpush.msra.mxu0 0.0
        %3400 = vmatpush.msra.mxu0 0.0
        %3401 = vmatpush.msra.mxu0 %v2469
        %3402 = vmatpush.msra.mxu0 %v2468
        %3403 = vmatmul.f32.gmra.mxu0 %v3376
        %v3404 = vpop.f32.mrf.mxu0
        %v3405 = vadd.f32 0.0, %v3404
        %3406 = vmatmul.f32.gmra.mxu0 %v3379
        %v3407 = vpop.f32.mrf.mxu0
        %v3408 = vadd.f32 0.0, %v3407
        %3409 = vmatmul.f32.gmra.mxu0 %v3382
        %v3410 = vpop.f32.mrf.mxu0
        %v3411 = vadd.f32 0.0, %v3410
        %3412 = vmatmul.f32.gmra.mxu0 %v3385
        %v3413 = vpop.f32.mrf.mxu0
        %v3414 = vadd.f32 0.0, %v3413
        %3415 = vdwg.mxu0
        %v3417 = vsel %vm1544, %v3270, 0
        %v3420 = vsel %vm1544, %v3273, 0
        %v3423 = vsel %vm1544, %v3276, 0
        %v3426 = vsel %vm1544, %v3279, 0
        %3428 = vmatpush.msra.mxu0 0.0
        %3429 = vmatpush.msra.mxu0 0.0
        %3430 = vmatpush.msra.mxu0 0.0
        %3431 = vmatpush.msra.mxu0 0.0
        %3432 = vmatpush.msra.mxu0 0.0
        %3433 = vmatpush.msra.mxu0 0.0
        %3434 = vmatpush.msra.mxu0 0.0
        %3435 = vmatpush.msra.mxu0 0.0
        %3436 = vmatpush.msra.mxu0 0.0
        %3437 = vmatpush.msra.mxu0 0.0
        %3438 = vmatpush.msra.mxu0 0.0
        %3439 = vmatpush.msra.mxu0 0.0
        %3440 = vmatpush.msra.mxu0 0.0
        %3441 = vmatpush.msra.mxu0 0.0
        %3442 = vmatpush.msra.mxu0 %v2471
        %3443 = vmatpush.msra.mxu0 %v2470
        %3444 = vmatmul.f32.gmra.mxu0 %v3417
        %v3445 = vpop.f32.mrf.mxu0
        %v3446 = vadd.f32 0.0, %v3445
        %3447 = vmatmul.f32.gmra.mxu0 %v3420
        %v3448 = vpop.f32.mrf.mxu0
        %v3449 = vadd.f32 0.0, %v3448
        %3450 = vmatmul.f32.gmra.mxu0 %v3423
        %v3451 = vpop.f32.mrf.mxu0
        %v3452 = vadd.f32 0.0, %v3451
        %3453 = vmatmul.f32.gmra.mxu0 %v3426
        %v3454 = vpop.f32.mrf.mxu0
        %v3455 = vadd.f32 0.0, %v3454
        %3456 = vdwg.mxu0
        %v3458 = vsel %vm1544, %v3323, 0
        %v3461 = vsel %vm1544, %v3326, 0
        %v3464 = vsel %vm1544, %v3329, 0
        %v3467 = vsel %vm1544, %v3332, 0
        %3469 = vmatpush.msra.mxu0 0.0
        %3470 = vmatpush.msra.mxu0 0.0
        %3471 = vmatpush.msra.mxu0 0.0
        %3472 = vmatpush.msra.mxu0 0.0
        %3473 = vmatpush.msra.mxu0 0.0
        %3474 = vmatpush.msra.mxu0 0.0
        %3475 = vmatpush.msra.mxu0 0.0
        %3476 = vmatpush.msra.mxu0 0.0
        %3477 = vmatpush.msra.mxu0 0.0
        %3478 = vmatpush.msra.mxu0 0.0
        %3479 = vmatpush.msra.mxu0 0.0
        %3480 = vmatpush.msra.mxu0 0.0
        %3481 = vmatpush.msra.mxu0 0.0
        %3482 = vmatpush.msra.mxu0 0.0
        %3483 = vmatpush.msra.mxu0 %v2473
        %3484 = vmatpush.msra.mxu0 %v2472
        %3485 = vmatmul.f32.gmra.mxu0 %v3458
        %v3486 = vpop.f32.mrf.mxu0
        %v3487 = vadd.f32 0.0, %v3486
        %3488 = vmatmul.f32.gmra.mxu0 %v3461
        %v3489 = vpop.f32.mrf.mxu0
        %v3490 = vadd.f32 0.0, %v3489
        %3491 = vmatmul.f32.gmra.mxu0 %v3464
        %v3492 = vpop.f32.mrf.mxu0
        %v3493 = vadd.f32 0.0, %v3492
        %3494 = vmatmul.f32.gmra.mxu0 %v3467
        %v3495 = vpop.f32.mrf.mxu0
        %v3496 = vadd.f32 0.0, %v3495
        %3497 = vdwg.mxu0
        %v3498 = vsel %vm1235, %v3364, 0.0
        %v3499 = vsel %vm1235, %v3405, 0.0
        %v3500 = vadd.f32 %v3498, %v3499
        %v3501 = vsel %vm1235, %v3446, 0.0
        %v3502 = vadd.f32 %v3500, %v3501
        %v3503 = vsel %vm1235, %v3487, 0.0
        %v3504 = vadd.f32 %v3502, %v3503
        %v3505 = vsel %vm1235, %v3367, 0.0
        %v3506 = vsel %vm1235, %v3408, 0.0
        %v3507 = vadd.f32 %v3505, %v3506
        %v3508 = vsel %vm1235, %v3449, 0.0
        %v3509 = vadd.f32 %v3507, %v3508
        %v3510 = vsel %vm1235, %v3490, 0.0
        %v3511 = vadd.f32 %v3509, %v3510
        %v3512 = vsel %vm1235, %v3370, 0.0
        %v3513 = vsel %vm1235, %v3411, 0.0
        %v3514 = vadd.f32 %v3512, %v3513
        %v3515 = vsel %vm1235, %v3452, 0.0
        %v3516 = vadd.f32 %v3514, %v3515
        %v3517 = vsel %vm1235, %v3493, 0.0
        %v3518 = vadd.f32 %v3516, %v3517
        %v3519 = vsel %vm1235, %v3373, 0.0
        %v3520 = vsel %vm1235, %v3414, 0.0
        %v3521 = vadd.f32 %v3519, %v3520
        %v3522 = vsel %vm1235, %v3455, 0.0
        %v3523 = vadd.f32 %v3521, %v3522
        %v3524 = vsel %vm1235, %v3496, 0.0
        %v3525 = vadd.f32 %v3523, %v3524
        %v3526 = vld [vmem:[%s39] sm:$0x1]
        %v3528 = vperm.slane %v3526, 0
        %v3530 = vadd.f32 %v3504, %v3528
        %v3531 = vadd.f32 %v3511, %v3528
        %v3532 = vadd.f32 %v3518, %v3528
        %v3533 = vadd.f32 %v3525, %v3528
        %v3534 = vadd.f32 %v2326, %v3530
        %v3535 = vadd.f32 %v2327, %v3531
        %v3536 = vadd.f32 %v2328, %v3532
        %v3537 = vadd.f32 %v2329, %v3533
        %v3538 = vld [vmem:[%s57] sm:$0x1]
        %v3539 = vld [vmem:[%s55] sm:$0x1]
        %v3540 = vsel %vm1235, %v3534, 0.0
        %3541 = vadd.xlane.f32.xlu0 %v3540
        %v3542 = vpop.xlane.xlu0 %3541
        %v3543 = vsel %vm1235, %v3535, 0.0
        %3544 = vadd.xlane.f32.xlu0 %v3543
        %v3545 = vpop.xlane.xlu0 %3544
        %v3546 = vsel %vm1235, %v3536, 0.0
        %3547 = vadd.xlane.f32.xlu0 %v3546
        %v3548 = vpop.xlane.xlu0 %3547
        %v3549 = vsel %vm1235, %v3537, 0.0
        %3550 = vadd.xlane.f32.xlu0 %v3549
        %v3551 = vpop.xlane.xlu0 %3550
        %v3552 = vmul.f32 %v3542, %v1305
        %v3553 = vmul.f32 %v3545, %v1305
        %v3554 = vmul.f32 %v3548, %v1305
        %v3555 = vmul.f32 %v3551, %v1305
        %v3556 = vsub.f32 %v3534, %v3552
        %v3557 = vsub.f32 %v3535, %v3553
        %v3558 = vsub.f32 %v3536, %v3554
        %v3559 = vsub.f32 %v3537, %v3555
        %v3560 = vmul.f32 %v3556, %v3556
        %v3561 = vmul.f32 %v3557, %v3557
        %v3562 = vmul.f32 %v3558, %v3558
        %v3563 = vmul.f32 %v3559, %v3559
        %v3564 = vsel %vm1235, %v3560, 0.0
        %3565 = vadd.xlane.f32.xlu0 %v3564
        %v3566 = vpop.xlane.xlu0 %3565
        %v3567 = vsel %vm1235, %v3561, 0.0
        %3568 = vadd.xlane.f32.xlu0 %v3567
        %v3569 = vpop.xlane.xlu0 %3568
        %v3570 = vsel %vm1235, %v3562, 0.0
        %3571 = vadd.xlane.f32.xlu0 %v3570
        %v3572 = vpop.xlane.xlu0 %3571
        %v3573 = vsel %vm1235, %v3563, 0.0
        %3574 = vadd.xlane.f32.xlu0 %v3573
        %v3575 = vpop.xlane.xlu0 %3574
        %v3576 = vmul.f32 %v3566, %v1305
        %v3577 = vmul.f32 %v3569, %v1305
        %v3578 = vmul.f32 %v3572, %v1305
        %v3579 = vmul.f32 %v3575, %v1305
        %v3580 = vadd.f32 %v3576, 1e-05
        %v3581 = vadd.f32 %v3577, 1e-05
        %v3582 = vadd.f32 %v3578, 1e-05
        %v3583 = vadd.f32 %v3579, 1e-05
        %v3584 = vrsqrt.pop %v3580
        %v3585 = vmul.f32 %v3584, %v3580
        %v3586 = vmul.f32 %v3585, %v3584
        %v3587 = vmul.f32 0.5, %v3586
        %v3588 = vsub.f32 1.5, %v3587
        %v3589 = vmul.f32 %v3584, %v3588
        %vm3590 = vweird.f32 %v3580
        %vm3591 = vweird.f32 %v3584
        %vm3592 = vmor %vm3590, %vm3591
        %v3593 = vsel %vm3592, %v3584, %v3589
        %v3594 = vrsqrt.pop %v3581
        %v3595 = vmul.f32 %v3594, %v3581
        %v3596 = vmul.f32 %v3595, %v3594
        %v3597 = vmul.f32 0.5, %v3596
        %v3598 = vsub.f32 1.5, %v3597
        %v3599 = vmul.f32 %v3594, %v3598
        %vm3600 = vweird.f32 %v3581
        %vm3601 = vweird.f32 %v3594
        %vm3602 = vmor %vm3600, %vm3601
        %v3603 = vsel %vm3602, %v3594, %v3599
        %v3604 = vrsqrt.pop %v3582
        %v3605 = vmul.f32 %v3604, %v3582
        %v3606 = vmul.f32 %v3605, %v3604
        %v3607 = vmul.f32 0.5, %v3606
        %v3608 = vsub.f32 1.5, %v3607
        %v3609 = vmul.f32 %v3604, %v3608
        %vm3610 = vweird.f32 %v3582
        %vm3611 = vweird.f32 %v3604
        %vm3612 = vmor %vm3610, %vm3611
        %v3613 = vsel %vm3612, %v3604, %v3609
        %v3614 = vrsqrt.pop %v3583
        %v3615 = vmul.f32 %v3614, %v3583
        %v3616 = vmul.f32 %v3615, %v3614
        %v3617 = vmul.f32 0.5, %v3616
        %v3618 = vsub.f32 1.5, %v3617
        %v3619 = vmul.f32 %v3614, %v3618
        %vm3620 = vweird.f32 %v3583
        %vm3621 = vweird.f32 %v3614
        %vm3622 = vmor %vm3620, %vm3621
        %v3623 = vsel %vm3622, %v3614, %v3619
        %v3624 = vmul.f32 %v3556, %v3593
        %v3625 = vmul.f32 %v3557, %v3603
        %v3626 = vmul.f32 %v3558, %v3613
        %v3627 = vmul.f32 %v3559, %v3623
        %v3629 = vperm.slane %v3538, 0
        %v3631 = vmul.f32 %v3624, %v3629
        %v3632 = vmul.f32 %v3625, %v3629
        %v3633 = vmul.f32 %v3626, %v3629
        %v3634 = vmul.f32 %v3627, %v3629
        %v3636 = vperm.slane %v3539, 0
        %v3638 = vadd.f32 %v3631, %v3636
        %v3639 = vadd.f32 %v3632, %v3636
        %v3640 = vadd.f32 %v3633, %v3636
        %v3641 = vadd.f32 %v3634, %v3636
        %v3642 = vld [vmem:[%s59] sm:$0xff]
        %v3643 = vld [vmem:[%s59 + $0x8] sm:$0xff]
        %v3644 = vld [vmem:[%s59 + $0x10] sm:$0xff]
        %v3645 = vld [vmem:[%s59 + $0x18] sm:$0xff]
        %v3646 = vld [vmem:[%s47] sm:$0x1]
        %v3648 = vperm.slane %v3646, 0
        %v3651 = vsel %vm1235, %v3638, 0
        %v3654 = vsel %vm1235, %v3639, 0
        %v3657 = vsel %vm1235, %v3640, 0
        %v3660 = vsel %vm1235, %v3641, 0
        %3662 = vmatpush.msra.mxu0 0.0
        %3663 = vmatpush.msra.mxu0 0.0
        %3664 = vmatpush.msra.mxu0 0.0
        %3665 = vmatpush.msra.mxu0 0.0
        %3666 = vmatpush.msra.mxu0 0.0
        %3667 = vmatpush.msra.mxu0 0.0
        %3668 = vmatpush.msra.mxu0 0.0
        %3669 = vmatpush.msra.mxu0 0.0
        %3670 = vmatpush.msra.mxu0 0.0
        %3671 = vmatpush.msra.mxu0 0.0
        %3672 = vmatpush.msra.mxu0 0.0
        %3673 = vmatpush.msra.mxu0 0.0
        %3674 = vmatpush.msra.mxu0 %v3645
        %3675 = vmatpush.msra.mxu0 %v3644
        %3676 = vmatpush.msra.mxu0 %v3643
        %3677 = vmatpush.msra.mxu0 %v3642
        %3678 = vmatmul.f32.gmra.mxu0 %v3651
        %v3679 = vpop.f32.mrf.mxu0
        %v3680 = vadd.f32 %v3648, %v3679
        %3681 = vmatmul.f32.gmra.mxu0 %v3654
        %v3682 = vpop.f32.mrf.mxu0
        %v3683 = vadd.f32 %v3648, %v3682
        %3684 = vmatmul.f32.gmra.mxu0 %v3657
        %v3685 = vpop.f32.mrf.mxu0
        %v3686 = vadd.f32 %v3648, %v3685
        %3687 = vmatmul.f32.gmra.mxu0 %v3660
        %v3688 = vpop.f32.mrf.mxu0
        %v3689 = vadd.f32 %v3648, %v3688
        %3690 = vdwg.mxu0
        %v3691 = vmul.f32 %v3680, 0.5
        %v3692 = vmul.f32 %v3683, 0.5
        %v3693 = vmul.f32 %v3686, 0.5
        %v3694 = vmul.f32 %v3689, 0.5
        %v3695 = vmul.f32 %v3680, 0.70710677
        %v3696 = vmul.f32 %v3683, 0.70710677
        %v3697 = vmul.f32 %v3686, 0.70710677
        %v3698 = vmul.f32 %v3689, 0.70710677
        %v3699 = vand.u32 2147483647, %v3695
        %v3700 = vand.u32 2147483647, %v3696
        %v3701 = vand.u32 2147483647, %v3697
        %v3702 = vand.u32 2147483647, %v3698
        %v3703 = vmul.f32 %v3699, 0.3275911
        %v3704 = vmul.f32 %v3700, 0.3275911
        %v3705 = vmul.f32 %v3701, 0.3275911
        %v3706 = vmul.f32 %v3702, 0.3275911
        %v3707 = vadd.f32 %v3703, 1.0
        %v3708 = vadd.f32 %v3704, 1.0
        %v3709 = vadd.f32 %v3705, 1.0
        %v3710 = vadd.f32 %v3706, 1.0
        %v3711 = vrcp.pop %v3707
        %v3712 = vmul.f32 %v3707, %v3711
        %v3713 = vsub.f32 1.0, %v3712
        %v3714 = vmul.f32 %v3711, %v3713
        %v3715 = vadd.f32 %v3711, %v3714
        %vm3716 = vweird.f32 %v3707
        %vm3717 = vweird.f32 %v3711
        %vm3718 = vmor %vm3716, %vm3717
        %v3719 = vsel %vm3718, %v3711, %v3715
        %v3720 = vand.u32 2147483647, %v3707
        %vm3721 = vcmp.eq.f32.partialorder %v3720, 8.507059e+37
        %v3722 = vand.u32 %v3707, 2147483648
        %v3723 = vor.u32 1.1754944e-38, %v3722
        %v3724 = vsel %vm3721, %v3723, %v3719
        %v3725 = vmul.f32 1.0, %v3724
        %v3726 = vrcp.pop %v3708
        %v3727 = vmul.f32 %v3708, %v3726
        %v3728 = vsub.f32 1.0, %v3727
        %v3729 = vmul.f32 %v3726, %v3728
        %v3730 = vadd.f32 %v3726, %v3729
        %vm3731 = vweird.f32 %v3708
        %vm3732 = vweird.f32 %v3726
        %vm3733 = vmor %vm3731, %vm3732
        %v3734 = vsel %vm3733, %v3726, %v3730
        %v3735 = vand.u32 2147483647, %v3708
        %vm3736 = vcmp.eq.f32.partialorder %v3735, 8.507059e+37
        %v3737 = vand.u32 %v3708, 2147483648
        %v3738 = vor.u32 1.1754944e-38, %v3737
        %v3739 = vsel %vm3736, %v3738, %v3734
        %v3740 = vmul.f32 1.0, %v3739
        %v3741 = vrcp.pop %v3709
        %v3742 = vmul.f32 %v3709, %v3741
        %v3743 = vsub.f32 1.0, %v3742
        %v3744 = vmul.f32 %v3741, %v3743
        %v3745 = vadd.f32 %v3741, %v3744
        %vm3746 = vweird.f32 %v3709
        %vm3747 = vweird.f32 %v3741
        %vm3748 = vmor %vm3746, %vm3747
        %v3749 = vsel %vm3748, %v3741, %v3745
        %v3750 = vand.u32 2147483647, %v3709
        %vm3751 = vcmp.eq.f32.partialorder %v3750, 8.507059e+37
        %v3752 = vand.u32 %v3709, 2147483648
        %v3753 = vor.u32 1.1754944e-38, %v3752
        %v3754 = vsel %vm3751, %v3753, %v3749
        %v3755 = vmul.f32 1.0, %v3754
        %v3756 = vrcp.pop %v3710
        %v3757 = vmul.f32 %v3710, %v3756
        %v3758 = vsub.f32 1.0, %v3757
        %v3759 = vmul.f32 %v3756, %v3758
        %v3760 = vadd.f32 %v3756, %v3759
        %vm3761 = vweird.f32 %v3710
        %vm3762 = vweird.f32 %v3756
        %vm3763 = vmor %vm3761, %vm3762
        %v3764 = vsel %vm3763, %v3756, %v3760
        %v3765 = vand.u32 2147483647, %v3710
        %vm3766 = vcmp.eq.f32.partialorder %v3765, 8.507059e+37
        %v3767 = vand.u32 %v3710, 2147483648
        %v3768 = vor.u32 1.1754944e-38, %v3767
        %v3769 = vsel %vm3766, %v3768, %v3764
        %v3770 = vmul.f32 1.0, %v3769
        %v3771 = vmul.f32 %v3725, 1.0614054
        %v3772 = vmul.f32 %v3740, 1.0614054
        %v3773 = vmul.f32 %v3755, 1.0614054
        %v3774 = vmul.f32 %v3770, 1.0614054
        %v3775 = vadd.f32 %v3771, -1.4531521
        %v3776 = vadd.f32 %v3772, -1.4531521
        %v3777 = vadd.f32 %v3773, -1.4531521
        %v3778 = vadd.f32 %v3774, -1.4531521
        %v3779 = vmul.f32 %v3775, %v3725
        %v3780 = vmul.f32 %v3776, %v3740
        %v3781 = vmul.f32 %v3777, %v3755
        %v3782 = vmul.f32 %v3778, %v3770
        %v3783 = vadd.f32 %v3779, 1.4214138
        %v3784 = vadd.f32 %v3780, 1.4214138
        %v3785 = vadd.f32 %v3781, 1.4214138
        %v3786 = vadd.f32 %v3782, 1.4214138
        %v3787 = vmul.f32 %v3783, %v3725
        %v3788 = vmul.f32 %v3784, %v3740
        %v3789 = vmul.f32 %v3785, %v3755
        %v3790 = vmul.f32 %v3786, %v3770
        %v3791 = vadd.f32 %v3787, -0.28449672
        %v3792 = vadd.f32 %v3788, -0.28449672
        %v3793 = vadd.f32 %v3789, -0.28449672
        %v3794 = vadd.f32 %v3790, -0.28449672
        %v3795 = vmul.f32 %v3791, %v3725
        %v3796 = vmul.f32 %v3792, %v3740
        %v3797 = vmul.f32 %v3793, %v3755
        %v3798 = vmul.f32 %v3794, %v3770
        %v3799 = vadd.f32 %v3795, 0.2548296
        %v3800 = vadd.f32 %v3796, 0.2548296
        %v3801 = vadd.f32 %v3797, 0.2548296
        %v3802 = vadd.f32 %v3798, 0.2548296
        %v3803 = vmul.f32 %v3799, %v3725
        %v3804 = vmul.f32 %v3800, %v3740
        %v3805 = vmul.f32 %v3801, %v3755
        %v3806 = vmul.f32 %v3802, %v3770
        %v3807 = vmul.f32 %v3699, %v3699
        %v3808 = vmul.f32 %v3700, %v3700
        %v3809 = vmul.f32 %v3701, %v3701
        %v3810 = vmul.f32 %v3702, %v3702
        %v3811 = vsub.f32 0.0, %v3807
        %v3812 = vsub.f32 0.0, %v3808
        %v3813 = vsub.f32 0.0, %v3809
        %v3814 = vsub.f32 0.0, %v3810
        %v3815 = vmul.f32 %v3811, 1.442695
        %v3816 = vpow.pop %v3815
        %v3817 = vmul.f32 %v3812, 1.442695
        %v3818 = vpow.pop %v3817
        %v3819 = vmul.f32 %v3813, 1.442695
        %v3820 = vpow.pop %v3819
        %v3821 = vmul.f32 %v3814, 1.442695
        %v3822 = vpow.pop %v3821
        %v3823 = vmul.f32 %v3803, %v3816
        %v3824 = vmul.f32 %v3804, %v3818
        %v3825 = vmul.f32 %v3805, %v3820
        %v3826 = vmul.f32 %v3806, %v3822
        %v3827 = vsub.f32 1.0, %v3823
        %v3828 = vsub.f32 1.0, %v3824
        %v3829 = vsub.f32 1.0, %v3825
        %v3830 = vsub.f32 1.0, %v3826
        %vm3831 = vcmp.lt.f32.partialorder %v3695, 0.0
        %vm3832 = vcmp.lt.f32.partialorder %v3696, 0.0
        %vm3833 = vcmp.lt.f32.partialorder %v3697, 0.0
        %vm3834 = vcmp.lt.f32.partialorder %v3698, 0.0
        %v3835 = vsub.f32 0.0, %v3827
        %v3836 = vsub.f32 0.0, %v3828
        %v3837 = vsub.f32 0.0, %v3829
        %v3838 = vsub.f32 0.0, %v3830
        %v3839 = vsel %vm3831, %v3835, %v3827
        %v3840 = vsel %vm3832, %v3836, %v3828
        %v3841 = vsel %vm3833, %v3837, %v3829
        %v3842 = vsel %vm3834, %v3838, %v3830
        %v3843 = vadd.f32 %v3839, 1.0
        %v3844 = vadd.f32 %v3840, 1.0
        %v3845 = vadd.f32 %v3841, 1.0
        %v3846 = vadd.f32 %v3842, 1.0
        %v3847 = vmul.f32 %v3691, %v3843
        %v3848 = vmul.f32 %v3692, %v3844
        %v3849 = vmul.f32 %v3693, %v3845
        %v3850 = vmul.f32 %v3694, %v3846
        %v3851 = vld [vmem:[%s61] sm:$0xff]
        %v3852 = vld [vmem:[%s61 + $0x8] sm:$0xff]
        %v3853 = vld [vmem:[%s61 + $0x10] sm:$0xff]
        %v3854 = vld [vmem:[%s61 + $0x18] sm:$0xff]
        %v3855 = vld [vmem:[%s61 + $0x20] sm:$0xff]
        %v3856 = vld [vmem:[%s61 + $0x28] sm:$0xff]
        %v3857 = vld [vmem:[%s61 + $0x30] sm:$0xff]
        %v3858 = vld [vmem:[%s61 + $0x38] sm:$0xff]
        %v3859 = vld [vmem:[%s49] sm:$0x1]
        %v3861 = vperm.slane %v3859, 0
        %v3864 = vsel %vm2284, %v3847, 0
        %v3867 = vsel %vm2284, %v3848, 0
        %v3870 = vsel %vm2284, %v3849, 0
        %v3873 = vsel %vm2284, %v3850, 0
        %3875 = vmatpush.msra.mxu0 0.0
        %3876 = vmatpush.msra.mxu0 0.0
        %3877 = vmatpush.msra.mxu0 0.0
        %3878 = vmatpush.msra.mxu0 0.0
        %3879 = vmatpush.msra.mxu0 0.0
        %3880 = vmatpush.msra.mxu0 0.0
        %3881 = vmatpush.msra.mxu0 0.0
        %3882 = vmatpush.msra.mxu0 0.0
        %3883 = vmatpush.msra.mxu0 %v3858
        %3884 = vmatpush.msra.mxu0 %v3857
        %3885 = vmatpush.msra.mxu0 %v3856
        %3886 = vmatpush.msra.mxu0 %v3855
        %3887 = vmatpush.msra.mxu0 %v3854
        %3888 = vmatpush.msra.mxu0 %v3853
        %3889 = vmatpush.msra.mxu0 %v3852
        %3890 = vmatpush.msra.mxu0 %v3851
        %3891 = vmatmul.f32.gmra.mxu0 %v3864
        %v3892 = vpop.f32.mrf.mxu0
        %v3893 = vadd.f32 %v3861, %v3892
        %3894 = vmatmul.f32.gmra.mxu0 %v3867
        %v3895 = vpop.f32.mrf.mxu0
        %v3896 = vadd.f32 %v3861, %v3895
        %3897 = vmatmul.f32.gmra.mxu0 %v3870
        %v3898 = vpop.f32.mrf.mxu0
        %v3899 = vadd.f32 %v3861, %v3898
        %3900 = vmatmul.f32.gmra.mxu0 %v3873
        %v3901 = vpop.f32.mrf.mxu0
        %v3902 = vadd.f32 %v3861, %v3901
        %3903 = vdwg.mxu0
        %v3904 = vadd.f32 %v3534, %v3893
        %v3905 = vadd.f32 %v3535, %v3896
        %v3906 = vadd.f32 %v3536, %v3899
        %v3907 = vadd.f32 %v3537, %v3902
        %v3908 = vld [vmem:[%s65] sm:$0x1]
        %v3909 = vld [vmem:[%s63] sm:$0x1]
        %v3910 = vsel %vm1235, %v3904, 0.0
        %3911 = vadd.xlane.f32.xlu0 %v3910
        %v3912 = vpop.xlane.xlu0 %3911
        %v3913 = vsel %vm1235, %v3905, 0.0
        %3914 = vadd.xlane.f32.xlu0 %v3913
        %v3915 = vpop.xlane.xlu0 %3914
        %v3916 = vsel %vm1235, %v3906, 0.0
        %3917 = vadd.xlane.f32.xlu0 %v3916
        %v3918 = vpop.xlane.xlu0 %3917
        %v3919 = vsel %vm1235, %v3907, 0.0
        %3920 = vadd.xlane.f32.xlu0 %v3919
        %v3921 = vpop.xlane.xlu0 %3920
        %v3922 = vmul.f32 %v3912, %v1305
        %v3923 = vmul.f32 %v3915, %v1305
        %v3924 = vmul.f32 %v3918, %v1305
        %v3925 = vmul.f32 %v3921, %v1305
        %v3926 = vsub.f32 %v3904, %v3922
        %v3927 = vsub.f32 %v3905, %v3923
        %v3928 = vsub.f32 %v3906, %v3924
        %v3929 = vsub.f32 %v3907, %v3925
        %v3930 = vmul.f32 %v3926, %v3926
        %v3931 = vmul.f32 %v3927, %v3927
        %v3932 = vmul.f32 %v3928, %v3928
        %v3933 = vmul.f32 %v3929, %v3929
        %v3934 = vsel %vm1235, %v3930, 0.0
        %3935 = vadd.xlane.f32.xlu0 %v3934
        %v3936 = vpop.xlane.xlu0 %3935
        %v3937 = vsel %vm1235, %v3931, 0.0
        %3938 = vadd.xlane.f32.xlu0 %v3937
        %v3939 = vpop.xlane.xlu0 %3938
        %v3940 = vsel %vm1235, %v3932, 0.0
        %3941 = vadd.xlane.f32.xlu0 %v3940
        %v3942 = vpop.xlane.xlu0 %3941
        %v3943 = vsel %vm1235, %v3933, 0.0
        %3944 = vadd.xlane.f32.xlu0 %v3943
        %v3945 = vpop.xlane.xlu0 %3944
        %v3946 = vmul.f32 %v3936, %v1305
        %v3947 = vmul.f32 %v3939, %v1305
        %v3948 = vmul.f32 %v3942, %v1305
        %v3949 = vmul.f32 %v3945, %v1305
        %v3950 = vadd.f32 %v3946, 1e-05
        %v3951 = vadd.f32 %v3947, 1e-05
        %v3952 = vadd.f32 %v3948, 1e-05
        %v3953 = vadd.f32 %v3949, 1e-05
        %v3954 = vrsqrt.pop %v3950
        %v3955 = vmul.f32 %v3954, %v3950
        %v3956 = vmul.f32 %v3955, %v3954
        %v3957 = vmul.f32 0.5, %v3956
        %v3958 = vsub.f32 1.5, %v3957
        %v3959 = vmul.f32 %v3954, %v3958
        %vm3960 = vweird.f32 %v3950
        %vm3961 = vweird.f32 %v3954
        %vm3962 = vmor %vm3960, %vm3961
        %v3963 = vsel %vm3962, %v3954, %v3959
        %v3964 = vrsqrt.pop %v3951
        %v3965 = vmul.f32 %v3964, %v3951
        %v3966 = vmul.f32 %v3965, %v3964
        %v3967 = vmul.f32 0.5, %v3966
        %v3968 = vsub.f32 1.5, %v3967
        %v3969 = vmul.f32 %v3964, %v3968
        %vm3970 = vweird.f32 %v3951
        %vm3971 = vweird.f32 %v3964
        %vm3972 = vmor %vm3970, %vm3971
        %v3973 = vsel %vm3972, %v3964, %v3969
        %v3974 = vrsqrt.pop %v3952
        %v3975 = vmul.f32 %v3974, %v3952
        %v3976 = vmul.f32 %v3975, %v3974
        %v3977 = vmul.f32 0.5, %v3976
        %v3978 = vsub.f32 1.5, %v3977
        %v3979 = vmul.f32 %v3974, %v3978
        %vm3980 = vweird.f32 %v3952
        %vm3981 = vweird.f32 %v3974
        %vm3982 = vmor %vm3980, %vm3981
        %v3983 = vsel %vm3982, %v3974, %v3979
        %v3984 = vrsqrt.pop %v3953
        %v3985 = vmul.f32 %v3984, %v3953
        %v3986 = vmul.f32 %v3985, %v3984
        %v3987 = vmul.f32 0.5, %v3986
        %v3988 = vsub.f32 1.5, %v3987
        %v3989 = vmul.f32 %v3984, %v3988
        %vm3990 = vweird.f32 %v3953
        %vm3991 = vweird.f32 %v3984
        %vm3992 = vmor %vm3990, %vm3991
        %v3993 = vsel %vm3992, %v3984, %v3989
        %v3994 = vmul.f32 %v3926, %v3963
        %v3995 = vmul.f32 %v3927, %v3973
        %v3996 = vmul.f32 %v3928, %v3983
        %v3997 = vmul.f32 %v3929, %v3993
        %v3999 = vperm.slane %v3908, 0
        %v4001 = vmul.f32 %v3994, %v3999
        %v4002 = vmul.f32 %v3995, %v3999
        %v4003 = vmul.f32 %v3996, %v3999
        %v4004 = vmul.f32 %v3997, %v3999
        %v4006 = vperm.slane %v3909, 0
        %v4008 = vadd.f32 %v4001, %v4006
        %v4009 = vadd.f32 %v4002, %v4006
        %v4010 = vadd.f32 %v4003, %v4006
        %v4011 = vadd.f32 %v4004, %v4006
        %v4012 = vld [vmem:[#allocation6] sm:$0x1]
        %v4013 = vld [vmem:[#allocation4] sm:$0x1]
        %v4014 = vsel %vm1235, %v4008, 0.0
        %4015 = vadd.xlane.f32.xlu0 %v4014
        %v4016 = vpop.xlane.xlu0 %4015
        %v4017 = vsel %vm1235, %v4009, 0.0
        %4018 = vadd.xlane.f32.xlu0 %v4017
        %v4019 = vpop.xlane.xlu0 %4018
        %v4020 = vsel %vm1235, %v4010, 0.0
        %4021 = vadd.xlane.f32.xlu0 %v4020
        %v4022 = vpop.xlane.xlu0 %4021
        %v4023 = vsel %vm1235, %v4011, 0.0
        %4024 = vadd.xlane.f32.xlu0 %v4023
        %v4025 = vpop.xlane.xlu0 %4024
        %v4026 = vmul.f32 %v4016, %v1305
        %v4027 = vmul.f32 %v4019, %v1305
        %v4028 = vmul.f32 %v4022, %v1305
        %v4029 = vmul.f32 %v4025, %v1305
        %v4030 = vsub.f32 %v4008, %v4026
        %v4031 = vsub.f32 %v4009, %v4027
        %v4032 = vsub.f32 %v4010, %v4028
        %v4033 = vsub.f32 %v4011, %v4029
        %v4034 = vmul.f32 %v4030, %v4030
        %v4035 = vmul.f32 %v4031, %v4031
        %v4036 = vmul.f32 %v4032, %v4032
        %v4037 = vmul.f32 %v4033, %v4033
        %v4038 = vsel %vm1235, %v4034, 0.0
        %4039 = vadd.xlane.f32.xlu0 %v4038
        %v4040 = vpop.xlane.xlu0 %4039
        %v4041 = vsel %vm1235, %v4035, 0.0
        %4042 = vadd.xlane.f32.xlu0 %v4041
        %v4043 = vpop.xlane.xlu0 %4042
        %v4044 = vsel %vm1235, %v4036, 0.0
        %4045 = vadd.xlane.f32.xlu0 %v4044
        %v4046 = vpop.xlane.xlu0 %4045
        %v4047 = vsel %vm1235, %v4037, 0.0
        %4048 = vadd.xlane.f32.xlu0 %v4047
        %v4049 = vpop.xlane.xlu0 %4048
        %v4050 = vmul.f32 %v4040, %v1305
        %v4051 = vmul.f32 %v4043, %v1305
        %v4052 = vmul.f32 %v4046, %v1305
        %v4053 = vmul.f32 %v4049, %v1305
        %v4054 = vadd.f32 %v4050, 1e-05
        %v4055 = vadd.f32 %v4051, 1e-05
        %v4056 = vadd.f32 %v4052, 1e-05
        %v4057 = vadd.f32 %v4053, 1e-05
        %v4058 = vrsqrt.pop %v4054
        %v4059 = vmul.f32 %v4058, %v4054
        %v4060 = vmul.f32 %v4059, %v4058
        %v4061 = vmul.f32 0.5, %v4060
        %v4062 = vsub.f32 1.5, %v4061
        %v4063 = vmul.f32 %v4058, %v4062
        %vm4064 = vweird.f32 %v4054
        %vm4065 = vweird.f32 %v4058
        %vm4066 = vmor %vm4064, %vm4065
        %v4067 = vsel %vm4066, %v4058, %v4063
        %v4068 = vrsqrt.pop %v4055
        %v4069 = vmul.f32 %v4068, %v4055
        %v4070 = vmul.f32 %v4069, %v4068
        %v4071 = vmul.f32 0.5, %v4070
        %v4072 = vsub.f32 1.5, %v4071
        %v4073 = vmul.f32 %v4068, %v4072
        %vm4074 = vweird.f32 %v4055
        %vm4075 = vweird.f32 %v4068
        %vm4076 = vmor %vm4074, %vm4075
        %v4077 = vsel %vm4076, %v4068, %v4073
        %v4078 = vrsqrt.pop %v4056
        %v4079 = vmul.f32 %v4078, %v4056
        %v4080 = vmul.f32 %v4079, %v4078
        %v4081 = vmul.f32 0.5, %v4080
        %v4082 = vsub.f32 1.5, %v4081
        %v4083 = vmul.f32 %v4078, %v4082
        %vm4084 = vweird.f32 %v4056
        %vm4085 = vweird.f32 %v4078
        %vm4086 = vmor %vm4084, %vm4085
        %v4087 = vsel %vm4086, %v4078, %v4083
        %v4088 = vrsqrt.pop %v4057
        %v4089 = vmul.f32 %v4088, %v4057
        %v4090 = vmul.f32 %v4089, %v4088
        %v4091 = vmul.f32 0.5, %v4090
        %v4092 = vsub.f32 1.5, %v4091
        %v4093 = vmul.f32 %v4088, %v4092
        %vm4094 = vweird.f32 %v4057
        %vm4095 = vweird.f32 %v4088
        %vm4096 = vmor %vm4094, %vm4095
        %v4097 = vsel %vm4096, %v4088, %v4093
        %v4098 = vmul.f32 %v4030, %v4067
        %v4099 = vmul.f32 %v4031, %v4077
        %v4100 = vmul.f32 %v4032, %v4087
        %v4101 = vmul.f32 %v4033, %v4097
        %v4103 = vperm.slane %v4012, 0
        %v4105 = vmul.f32 %v4098, %v4103
        %v4106 = vmul.f32 %v4099, %v4103
        %v4107 = vmul.f32 %v4100, %v4103
        %v4108 = vmul.f32 %v4101, %v4103
        %v4110 = vperm.slane %v4013, 0
        %v4112 = vadd.f32 %v4105, %v4110
        %v4113 = vadd.f32 %v4106, %v4110
        %v4114 = vadd.f32 %v4107, %v4110
        %v4115 = vadd.f32 %v4108, %v4110
        %v4116 = vld [vmem:[%s9] sm:$0xff]
        %v4117 = vld [vmem:[%s9 + $0x8] sm:$0xff]
        %v4118 = vld [vmem:[%s9 + $0x10] sm:$0xff]
        %v4119 = vld [vmem:[%s9 + $0x18] sm:$0xff]
        %v4120 = vld [vmem:[%s9 + $0x20] sm:$0xff]
        %v4121 = vld [vmem:[%s9 + $0x28] sm:$0xff]
        %v4122 = vld [vmem:[%s9 + $0x30] sm:$0xff]
        %v4123 = vld [vmem:[%s9 + $0x38] sm:$0xff]
        %v4124 = vld [vmem:[%s9 + $0x40] sm:$0xff]
        %v4125 = vld [vmem:[%s9 + $0x48] sm:$0xff]
        %v4126 = vld [vmem:[%s9 + $0x50] sm:$0xff]
        %v4127 = vld [vmem:[%s9 + $0x58] sm:$0xff]
        %v4128 = vld [vmem:[%s9 + $0x60] sm:$0xff]
        %v4129 = vld [vmem:[%s9 + $0x68] sm:$0xff]
        %v4130 = vld [vmem:[%s9 + $0x70] sm:$0xff]
        %v4131 = vld [vmem:[%s9 + $0x78] sm:$0xff]
        %v4132 = vld [vmem:[%s5] sm:$0xff]
        %v4133 = vld [vmem:[%s5 + $0x8] sm:$0xff]
        %v4134 = vld [vmem:[%s5 + $0x10] sm:$0xff]
        %v4135 = vld [vmem:[%s5 + $0x18] sm:$0xff]
        %v4136 = vld [vmem:[%s5 + $0x20] sm:$0xff]
        %v4137 = vld [vmem:[%s5 + $0x28] sm:$0xff]
        %v4138 = vld [vmem:[%s5 + $0x30] sm:$0xff]
        %v4139 = vld [vmem:[%s5 + $0x38] sm:$0xff]
        %v4140 = vld [vmem:[%s5 + $0x40] sm:$0xff]
        %v4141 = vld [vmem:[%s5 + $0x48] sm:$0xff]
        %v4142 = vld [vmem:[%s5 + $0x50] sm:$0xff]
        %v4143 = vld [vmem:[%s5 + $0x58] sm:$0xff]
        %v4144 = vld [vmem:[%s5 + $0x60] sm:$0xff]
        %v4145 = vld [vmem:[%s5 + $0x68] sm:$0xff]
        %v4146 = vld [vmem:[%s5 + $0x70] sm:$0xff]
        %v4147 = vld [vmem:[%s5 + $0x78] sm:$0xff]
        %v4148 = vld [vmem:[%s7] sm:$0xff]
        %v4149 = vld [vmem:[%s7 + $0x8] sm:$0xff]
        %v4150 = vld [vmem:[%s7 + $0x10] sm:$0xff]
        %v4151 = vld [vmem:[%s7 + $0x18] sm:$0xff]
        %v4152 = vld [vmem:[%s7 + $0x20] sm:$0xff]
        %v4153 = vld [vmem:[%s7 + $0x28] sm:$0xff]
        %v4154 = vld [vmem:[%s7 + $0x30] sm:$0xff]
        %v4155 = vld [vmem:[%s7 + $0x38] sm:$0xff]
        %v4157 = vsel %vm1235, %v4112, 0
        %v4160 = vsel %vm1235, %v4113, 0
        %v4163 = vsel %vm1235, %v4114, 0
        %v4166 = vsel %vm1235, %v4115, 0
        %4168 = vmatpush.msra.mxu0 0.0
        %4169 = vmatpush.msra.mxu0 0.0
        %4170 = vmatpush.msra.mxu0 0.0
        %4171 = vmatpush.msra.mxu0 0.0
        %4172 = vmatpush.msra.mxu0 0.0
        %4173 = vmatpush.msra.mxu0 0.0
        %4174 = vmatpush.msra.mxu0 0.0
        %4175 = vmatpush.msra.mxu0 0.0
        %4176 = vmatpush.msra.mxu0 0.0
        %4177 = vmatpush.msra.mxu0 0.0
        %4178 = vmatpush.msra.mxu0 0.0
        %4179 = vmatpush.msra.mxu0 0.0
        %4180 = vmatpush.msra.mxu0 %v4119
        %4181 = vmatpush.msra.mxu0 %v4118
        %4182 = vmatpush.msra.mxu0 %v4117
        %4183 = vmatpush.msra.mxu0 %v4116
        %4184 = vmatmul.f32.gmra.mxu0 %v4157
        %v4185 = vpop.f32.mrf.mxu0
        %v4186 = vadd.f32 0.0, %v4185
        %4187 = vmatmul.f32.gmra.mxu0 %v4160
        %v4188 = vpop.f32.mrf.mxu0
        %v4189 = vadd.f32 0.0, %v4188
        %4190 = vmatmul.f32.gmra.mxu0 %v4163
        %v4191 = vpop.f32.mrf.mxu0
        %v4192 = vadd.f32 0.0, %v4191
        %4193 = vmatmul.f32.gmra.mxu0 %v4166
        %v4194 = vpop.f32.mrf.mxu0
        %v4195 = vadd.f32 0.0, %v4194
        %4196 = vdwg.mxu0
        %4197 = vmatpush.msra.mxu0 0.0
        %4198 = vmatpush.msra.mxu0 0.0
        %4199 = vmatpush.msra.mxu0 0.0
        %4200 = vmatpush.msra.mxu0 0.0
        %4201 = vmatpush.msra.mxu0 0.0
        %4202 = vmatpush.msra.mxu0 0.0
        %4203 = vmatpush.msra.mxu0 0.0
        %4204 = vmatpush.msra.mxu0 0.0
        %4205 = vmatpush.msra.mxu0 0.0
        %4206 = vmatpush.msra.mxu0 0.0
        %4207 = vmatpush.msra.mxu0 0.0
        %4208 = vmatpush.msra.mxu0 0.0
        %4209 = vmatpush.msra.mxu0 %v4123
        %4210 = vmatpush.msra.mxu0 %v4122
        %4211 = vmatpush.msra.mxu0 %v4121
        %4212 = vmatpush.msra.mxu0 %v4120
        %4213 = vmatmul.f32.gmra.mxu0 %v4157
        %v4214 = vpop.f32.mrf.mxu0
        %v4215 = vadd.f32 0.0, %v4214
        %4216 = vmatmul.f32.gmra.mxu0 %v4160
        %v4217 = vpop.f32.mrf.mxu0
        %v4218 = vadd.f32 0.0, %v4217
        %4219 = vmatmul.f32.gmra.mxu0 %v4163
        %v4220 = vpop.f32.mrf.mxu0
        %v4221 = vadd.f32 0.0, %v4220
        %4222 = vmatmul.f32.gmra.mxu0 %v4166
        %v4223 = vpop.f32.mrf.mxu0
        %v4224 = vadd.f32 0.0, %v4223
        %4225 = vdwg.mxu0
        %4226 = vmatpush.msra.mxu0 0.0
        %4227 = vmatpush.msra.mxu0 0.0
        %4228 = vmatpush.msra.mxu0 0.0
        %4229 = vmatpush.msra.mxu0 0.0
        %4230 = vmatpush.msra.mxu0 0.0
        %4231 = vmatpush.msra.mxu0 0.0
        %4232 = vmatpush.msra.mxu0 0.0
        %4233 = vmatpush.msra.mxu0 0.0
        %4234 = vmatpush.msra.mxu0 0.0
        %4235 = vmatpush.msra.mxu0 0.0
        %4236 = vmatpush.msra.mxu0 0.0
        %4237 = vmatpush.msra.mxu0 0.0
        %4238 = vmatpush.msra.mxu0 %v4127
        %4239 = vmatpush.msra.mxu0 %v4126
        %4240 = vmatpush.msra.mxu0 %v4125
        %4241 = vmatpush.msra.mxu0 %v4124
        %4242 = vmatmul.f32.gmra.mxu0 %v4157
        %v4243 = vpop.f32.mrf.mxu0
        %v4244 = vadd.f32 0.0, %v4243
        %4245 = vmatmul.f32.gmra.mxu0 %v4160
        %v4246 = vpop.f32.mrf.mxu0
        %v4247 = vadd.f32 0.0, %v4246
        %4248 = vmatmul.f32.gmra.mxu0 %v4163
        %v4249 = vpop.f32.mrf.mxu0
        %v4250 = vadd.f32 0.0, %v4249
        %4251 = vmatmul.f32.gmra.mxu0 %v4166
        %v4252 = vpop.f32.mrf.mxu0
        %v4253 = vadd.f32 0.0, %v4252
        %4254 = vdwg.mxu0
        %4255 = vmatpush.msra.mxu0 0.0
        %4256 = vmatpush.msra.mxu0 0.0
        %4257 = vmatpush.msra.mxu0 0.0
        %4258 = vmatpush.msra.mxu0 0.0
        %4259 = vmatpush.msra.mxu0 0.0
        %4260 = vmatpush.msra.mxu0 0.0
        %4261 = vmatpush.msra.mxu0 0.0
        %4262 = vmatpush.msra.mxu0 0.0
        %4263 = vmatpush.msra.mxu0 0.0
        %4264 = vmatpush.msra.mxu0 0.0
        %4265 = vmatpush.msra.mxu0 0.0
        %4266 = vmatpush.msra.mxu0 0.0
        %4267 = vmatpush.msra.mxu0 %v4131
        %4268 = vmatpush.msra.mxu0 %v4130
        %4269 = vmatpush.msra.mxu0 %v4129
        %4270 = vmatpush.msra.mxu0 %v4128
        %4271 = vmatmul.f32.gmra.mxu0 %v4157
        %v4272 = vpop.f32.mrf.mxu0
        %v4273 = vadd.f32 0.0, %v4272
        %4274 = vmatmul.f32.gmra.mxu0 %v4160
        %v4275 = vpop.f32.mrf.mxu0
        %v4276 = vadd.f32 0.0, %v4275
        %4277 = vmatmul.f32.gmra.mxu0 %v4163
        %v4278 = vpop.f32.mrf.mxu0
        %v4279 = vadd.f32 0.0, %v4278
        %4280 = vmatmul.f32.gmra.mxu0 %v4166
        %v4281 = vpop.f32.mrf.mxu0
        %v4282 = vadd.f32 0.0, %v4281
        %4283 = vdwg.mxu0
        %v4285 = vsel %vm1235, %v4008, 0
        %v4288 = vsel %vm1235, %v4009, 0
        %v4291 = vsel %vm1235, %v4010, 0
        %v4294 = vsel %vm1235, %v4011, 0
        %4296 = vmatpush.msra.mxu0 0.0
        %4297 = vmatpush.msra.mxu0 0.0
        %4298 = vmatpush.msra.mxu0 0.0
        %4299 = vmatpush.msra.mxu0 0.0
        %4300 = vmatpush.msra.mxu0 0.0
        %4301 = vmatpush.msra.mxu0 0.0
        %4302 = vmatpush.msra.mxu0 0.0
        %4303 = vmatpush.msra.mxu0 0.0
        %4304 = vmatpush.msra.mxu0 0.0
        %4305 = vmatpush.msra.mxu0 0.0
        %4306 = vmatpush.msra.mxu0 0.0
        %4307 = vmatpush.msra.mxu0 0.0
        %4308 = vmatpush.msra.mxu0 %v4135
        %4309 = vmatpush.msra.mxu0 %v4134
        %4310 = vmatpush.msra.mxu0 %v4133
        %4311 = vmatpush.msra.mxu0 %v4132
        %4312 = vmatmul.f32.gmra.mxu0 %v4285
        %v4313 = vpop.f32.mrf.mxu0
        %v4314 = vadd.f32 0.0, %v4313
        %4315 = vmatmul.f32.gmra.mxu0 %v4288
        %v4316 = vpop.f32.mrf.mxu0
        %v4317 = vadd.f32 0.0, %v4316
        %4318 = vmatmul.f32.gmra.mxu0 %v4291
        %v4319 = vpop.f32.mrf.mxu0
        %v4320 = vadd.f32 0.0, %v4319
        %4321 = vmatmul.f32.gmra.mxu0 %v4294
        %v4322 = vpop.f32.mrf.mxu0
        %v4323 = vadd.f32 0.0, %v4322
        %4324 = vdwg.mxu0
        %4325 = vmatpush.msra.mxu0 0.0
        %4326 = vmatpush.msra.mxu0 0.0
        %4327 = vmatpush.msra.mxu0 0.0
        %4328 = vmatpush.msra.mxu0 0.0
        %4329 = vmatpush.msra.mxu0 0.0
        %4330 = vmatpush.msra.mxu0 0.0
        %4331 = vmatpush.msra.mxu0 0.0
        %4332 = vmatpush.msra.mxu0 0.0
        %4333 = vmatpush.msra.mxu0 0.0
        %4334 = vmatpush.msra.mxu0 0.0
        %4335 = vmatpush.msra.mxu0 0.0
        %4336 = vmatpush.msra.mxu0 0.0
        %4337 = vmatpush.msra.mxu0 %v4139
        %4338 = vmatpush.msra.mxu0 %v4138
        %4339 = vmatpush.msra.mxu0 %v4137
        %4340 = vmatpush.msra.mxu0 %v4136
        %4341 = vmatmul.f32.gmra.mxu0 %v4285
        %v4342 = vpop.f32.mrf.mxu0
        %v4343 = vadd.f32 0.0, %v4342
        %4344 = vmatmul.f32.gmra.mxu0 %v4288
        %v4345 = vpop.f32.mrf.mxu0
        %v4346 = vadd.f32 0.0, %v4345
        %4347 = vmatmul.f32.gmra.mxu0 %v4291
        %v4348 = vpop.f32.mrf.mxu0
        %v4349 = vadd.f32 0.0, %v4348
        %4350 = vmatmul.f32.gmra.mxu0 %v4294
        %v4351 = vpop.f32.mrf.mxu0
        %v4352 = vadd.f32 0.0, %v4351
        %4353 = vdwg.mxu0
        %4354 = vmatpush.msra.mxu0 0.0
        %4355 = vmatpush.msra.mxu0 0.0
        %4356 = vmatpush.msra.mxu0 0.0
        %4357 = vmatpush.msra.mxu0 0.0
        %4358 = vmatpush.msra.mxu0 0.0
        %4359 = vmatpush.msra.mxu0 0.0
        %4360 = vmatpush.msra.mxu0 0.0
        %4361 = vmatpush.msra.mxu0 0.0
        %4362 = vmatpush.msra.mxu0 0.0
        %4363 = vmatpush.msra.mxu0 0.0
        %4364 = vmatpush.msra.mxu0 0.0
        %4365 = vmatpush.msra.mxu0 0.0
        %4366 = vmatpush.msra.mxu0 %v4143
        %4367 = vmatpush.msra.mxu0 %v4142
        %4368 = vmatpush.msra.mxu0 %v4141
        %4369 = vmatpush.msra.mxu0 %v4140
        %4370 = vmatmul.f32.gmra.mxu0 %v4285
        %v4371 = vpop.f32.mrf.mxu0
        %v4372 = vadd.f32 0.0, %v4371
        %4373 = vmatmul.f32.gmra.mxu0 %v4288
        %v4374 = vpop.f32.mrf.mxu0
        %v4375 = vadd.f32 0.0, %v4374
        %4376 = vmatmul.f32.gmra.mxu0 %v4291
        %v4377 = vpop.f32.mrf.mxu0
        %v4378 = vadd.f32 0.0, %v4377
        %4379 = vmatmul.f32.gmra.mxu0 %v4294
        %v4380 = vpop.f32.mrf.mxu0
        %v4381 = vadd.f32 0.0, %v4380
        %4382 = vdwg.mxu0
        %4383 = vmatpush.msra.mxu0 0.0
        %4384 = vmatpush.msra.mxu0 0.0
        %4385 = vmatpush.msra.mxu0 0.0
        %4386 = vmatpush.msra.mxu0 0.0
        %4387 = vmatpush.msra.mxu0 0.0
        %4388 = vmatpush.msra.mxu0 0.0
        %4389 = vmatpush.msra.mxu0 0.0
        %4390 = vmatpush.msra.mxu0 0.0
        %4391 = vmatpush.msra.mxu0 0.0
        %4392 = vmatpush.msra.mxu0 0.0
        %4393 = vmatpush.msra.mxu0 0.0
        %4394 = vmatpush.msra.mxu0 0.0
        %4395 = vmatpush.msra.mxu0 %v4147
        %4396 = vmatpush.msra.mxu0 %v4146
        %4397 = vmatpush.msra.mxu0 %v4145
        %4398 = vmatpush.msra.mxu0 %v4144
        %4399 = vmatmul.f32.gmra.mxu0 %v4285
        %v4400 = vpop.f32.mrf.mxu0
        %v4401 = vadd.f32 0.0, %v4400
        %4402 = vmatmul.f32.gmra.mxu0 %v4288
        %v4403 = vpop.f32.mrf.mxu0
        %v4404 = vadd.f32 0.0, %v4403
        %4405 = vmatmul.f32.gmra.mxu0 %v4291
        %v4406 = vpop.f32.mrf.mxu0
        %v4407 = vadd.f32 0.0, %v4406
        %4408 = vmatmul.f32.gmra.mxu0 %v4294
        %v4409 = vpop.f32.mrf.mxu0
        %v4410 = vadd.f32 0.0, %v4409
        %4411 = vdwg.mxu0
        %v4413 = vsel %vm1544, %v4186, 0
        %v4416 = vsel %vm1544, %v4189, 0
        %v4419 = vsel %vm1544, %v4192, 0
        %v4422 = vsel %vm1544, %v4195, 0
        %v4425 = vsel %vm1544, %v4314, 0
        %v4428 = vsel %vm1544, %v4317, 0
        %v4431 = vsel %vm1544, %v4320, 0
        %v4434 = vsel %vm1544, %v4323, 0
        %4436 = vmatpush.xpose.msra.mxu0 0.0
        %4437 = vmatpush.xpose.msra.mxu0 0.0
        %4438 = vmatpush.xpose.msra.mxu0 0.0
        %4439 = vmatpush.xpose.msra.mxu0 0.0
        %4440 = vmatpush.xpose.msra.mxu0 0.0
        %4441 = vmatpush.xpose.msra.mxu0 0.0
        %4442 = vmatpush.xpose.msra.mxu0 0.0
        %4443 = vmatpush.xpose.msra.mxu0 0.0
        %4444 = vmatpush.xpose.msra.mxu0 0.0
        %4445 = vmatpush.xpose.msra.mxu0 0.0
        %4446 = vmatpush.xpose.msra.mxu0 0.0
        %4447 = vmatpush.xpose.msra.mxu0 0.0
        %4448 = vmatpush.xpose.msra.mxu0 %v4434
        %4449 = vmatpush.xpose.msra.mxu0 %v4431
        %4450 = vmatpush.xpose.msra.mxu0 %v4428
        %4451 = vmatpush.xpose.msra.mxu0 %v4425
        %4452 = vmatmul.f32.gmra.mxu0 %v4413
        %v4453 = vpop.f32.mrf.mxu0
        %v4454 = vadd.f32 0.0, %v4453
        %4455 = vmatmul.f32.gmra.mxu0 %v4416
        %v4456 = vpop.f32.mrf.mxu0
        %v4457 = vadd.f32 0.0, %v4456
        %4458 = vmatmul.f32.gmra.mxu0 %v4419
        %v4459 = vpop.f32.mrf.mxu0
        %v4460 = vadd.f32 0.0, %v4459
        %4461 = vmatmul.f32.gmra.mxu0 %v4422
        %v4462 = vpop.f32.mrf.mxu0
        %v4463 = vadd.f32 0.0, %v4462
        %4464 = vdwg.mxu0
        %v4466 = vsel %vm1544, %v4215, 0
        %v4469 = vsel %vm1544, %v4218, 0
        %v4472 = vsel %vm1544, %v4221, 0
        %v4475 = vsel %vm1544, %v4224, 0
        %v4478 = vsel %vm1544, %v4343, 0
        %v4481 = vsel %vm1544, %v4346, 0
        %v4484 = vsel %vm1544, %v4349, 0
        %v4487 = vsel %vm1544, %v4352, 0
        %4489 = vmatpush.xpose.msra.mxu0 0.0
        %4490 = vmatpush.xpose.msra.mxu0 0.0
        %4491 = vmatpush.xpose.msra.mxu0 0.0
        %4492 = vmatpush.xpose.msra.mxu0 0.0
        %4493 = vmatpush.xpose.msra.mxu0 0.0
        %4494 = vmatpush.xpose.msra.mxu0 0.0
        %4495 = vmatpush.xpose.msra.mxu0 0.0
        %4496 = vmatpush.xpose.msra.mxu0 0.0
        %4497 = vmatpush.xpose.msra.mxu0 0.0
        %4498 = vmatpush.xpose.msra.mxu0 0.0
        %4499 = vmatpush.xpose.msra.mxu0 0.0
        %4500 = vmatpush.xpose.msra.mxu0 0.0
        %4501 = vmatpush.xpose.msra.mxu0 %v4487
        %4502 = vmatpush.xpose.msra.mxu0 %v4484
        %4503 = vmatpush.xpose.msra.mxu0 %v4481
        %4504 = vmatpush.xpose.msra.mxu0 %v4478
        %4505 = vmatmul.f32.gmra.mxu0 %v4466
        %v4506 = vpop.f32.mrf.mxu0
        %v4507 = vadd.f32 0.0, %v4506
        %4508 = vmatmul.f32.gmra.mxu0 %v4469
        %v4509 = vpop.f32.mrf.mxu0
        %v4510 = vadd.f32 0.0, %v4509
        %4511 = vmatmul.f32.gmra.mxu0 %v4472
        %v4512 = vpop.f32.mrf.mxu0
        %v4513 = vadd.f32 0.0, %v4512
        %4514 = vmatmul.f32.gmra.mxu0 %v4475
        %v4515 = vpop.f32.mrf.mxu0
        %v4516 = vadd.f32 0.0, %v4515
        %4517 = vdwg.mxu0
        %v4519 = vsel %vm1544, %v4244, 0
        %v4522 = vsel %vm1544, %v4247, 0
        %v4525 = vsel %vm1544, %v4250, 0
        %v4528 = vsel %vm1544, %v4253, 0
        %v4531 = vsel %vm1544, %v4372, 0
        %v4534 = vsel %vm1544, %v4375, 0
        %v4537 = vsel %vm1544, %v4378, 0
        %v4540 = vsel %vm1544, %v4381, 0
        %4542 = vmatpush.xpose.msra.mxu0 0.0
        %4543 = vmatpush.xpose.msra.mxu0 0.0
        %4544 = vmatpush.xpose.msra.mxu0 0.0
        %4545 = vmatpush.xpose.msra.mxu0 0.0
        %4546 = vmatpush.xpose.msra.mxu0 0.0
        %4547 = vmatpush.xpose.msra.mxu0 0.0
        %4548 = vmatpush.xpose.msra.mxu0 0.0
        %4549 = vmatpush.xpose.msra.mxu0 0.0
        %4550 = vmatpush.xpose.msra.mxu0 0.0
        %4551 = vmatpush.xpose.msra.mxu0 0.0
        %4552 = vmatpush.xpose.msra.mxu0 0.0
        %4553 = vmatpush.xpose.msra.mxu0 0.0
        %4554 = vmatpush.xpose.msra.mxu0 %v4540
        %4555 = vmatpush.xpose.msra.mxu0 %v4537
        %4556 = vmatpush.xpose.msra.mxu0 %v4534
        %4557 = vmatpush.xpose.msra.mxu0 %v4531
        %4558 = vmatmul.f32.gmra.mxu0 %v4519
        %v4559 = vpop.f32.mrf.mxu0
        %v4560 = vadd.f32 0.0, %v4559
        %4561 = vmatmul.f32.gmra.mxu0 %v4522
        %v4562 = vpop.f32.mrf.mxu0
        %v4563 = vadd.f32 0.0, %v4562
        %4564 = vmatmul.f32.gmra.mxu0 %v4525
        %v4565 = vpop.f32.mrf.mxu0
        %v4566 = vadd.f32 0.0, %v4565
        %4567 = vmatmul.f32.gmra.mxu0 %v4528
        %v4568 = vpop.f32.mrf.mxu0
        %v4569 = vadd.f32 0.0, %v4568
        %4570 = vdwg.mxu0
        %v4572 = vsel %vm1544, %v4273, 0
        %v4575 = vsel %vm1544, %v4276, 0
        %v4578 = vsel %vm1544, %v4279, 0
        %v4581 = vsel %vm1544, %v4282, 0
        %v4584 = vsel %vm1544, %v4401, 0
        %v4587 = vsel %vm1544, %v4404, 0
        %v4590 = vsel %vm1544, %v4407, 0
        %v4593 = vsel %vm1544, %v4410, 0
        %4595 = vmatpush.xpose.msra.mxu0 0.0
        %4596 = vmatpush.xpose.msra.mxu0 0.0
        %4597 = vmatpush.xpose.msra.mxu0 0.0
        %4598 = vmatpush.xpose.msra.mxu0 0.0
        %4599 = vmatpush.xpose.msra.mxu0 0.0
        %4600 = vmatpush.xpose.msra.mxu0 0.0
        %4601 = vmatpush.xpose.msra.mxu0 0.0
        %4602 = vmatpush.xpose.msra.mxu0 0.0
        %4603 = vmatpush.xpose.msra.mxu0 0.0
        %4604 = vmatpush.xpose.msra.mxu0 0.0
        %4605 = vmatpush.xpose.msra.mxu0 0.0
        %4606 = vmatpush.xpose.msra.mxu0 0.0
        %4607 = vmatpush.xpose.msra.mxu0 %v4593
        %4608 = vmatpush.xpose.msra.mxu0 %v4590
        %4609 = vmatpush.xpose.msra.mxu0 %v4587
        %4610 = vmatpush.xpose.msra.mxu0 %v4584
        %4611 = vmatmul.f32.gmra.mxu0 %v4572
        %v4612 = vpop.f32.mrf.mxu0
        %v4613 = vadd.f32 0.0, %v4612
        %4614 = vmatmul.f32.gmra.mxu0 %v4575
        %v4615 = vpop.f32.mrf.mxu0
        %v4616 = vadd.f32 0.0, %v4615
        %4617 = vmatmul.f32.gmra.mxu0 %v4578
        %v4618 = vpop.f32.mrf.mxu0
        %v4619 = vadd.f32 0.0, %v4618
        %4620 = vmatmul.f32.gmra.mxu0 %v4581
        %v4621 = vpop.f32.mrf.mxu0
        %v4622 = vadd.f32 0.0, %v4621
        %4623 = vdwg.mxu0
        %v4624 = vmul.f32 %v4454, 0.25
        %v4625 = vmul.f32 %v4457, 0.25
        %v4626 = vmul.f32 %v4460, 0.25
        %v4627 = vmul.f32 %v4463, 0.25
        %v4628 = vmul.f32 %v4507, 0.25
        %v4629 = vmul.f32 %v4510, 0.25
        %v4630 = vmul.f32 %v4513, 0.25
        %v4631 = vmul.f32 %v4516, 0.25
        %v4632 = vmul.f32 %v4560, 0.25
        %v4633 = vmul.f32 %v4563, 0.25
        %v4634 = vmul.f32 %v4566, 0.25
        %v4635 = vmul.f32 %v4569, 0.25
        %v4636 = vmul.f32 %v4613, 0.25
        %v4637 = vmul.f32 %v4616, 0.25
        %v4638 = vmul.f32 %v4619, 0.25
        %v4639 = vmul.f32 %v4622, 0.25
        %v4640 = vsel %vm1235, %v4624, -inf
        %4641 = vmax.xlane.f32.xlu0 %v4640
        %v4642 = vpop.xlane.xlu0 %4641
        %v4643 = vsel %vm1235, %v4625, -inf
        %4644 = vmax.xlane.f32.xlu0 %v4643
        %v4645 = vpop.xlane.xlu0 %4644
        %v4646 = vsel %vm1235, %v4626, -inf
        %4647 = vmax.xlane.f32.xlu0 %v4646
        %v4648 = vpop.xlane.xlu0 %4647
        %v4649 = vsel %vm1235, %v4627, -inf
        %4650 = vmax.xlane.f32.xlu0 %v4649
        %v4651 = vpop.xlane.xlu0 %4650
        %v4652 = vsel %vm1235, %v4628, -inf
        %4653 = vmax.xlane.f32.xlu0 %v4652
        %v4654 = vpop.xlane.xlu0 %4653
        %v4655 = vsel %vm1235, %v4629, -inf
        %4656 = vmax.xlane.f32.xlu0 %v4655
        %v4657 = vpop.xlane.xlu0 %4656
        %v4658 = vsel %vm1235, %v4630, -inf
        %4659 = vmax.xlane.f32.xlu0 %v4658
        %v4660 = vpop.xlane.xlu0 %4659
        %v4661 = vsel %vm1235, %v4631, -inf
        %4662 = vmax.xlane.f32.xlu0 %v4661
        %v4663 = vpop.xlane.xlu0 %4662
        %v4664 = vsel %vm1235, %v4632, -inf
        %4665 = vmax.xlane.f32.xlu0 %v4664
        %v4666 = vpop.xlane.xlu0 %4665
        %v4667 = vsel %vm1235, %v4633, -inf
        %4668 = vmax.xlane.f32.xlu0 %v4667
        %v4669 = vpop.xlane.xlu0 %4668
        %v4670 = vsel %vm1235, %v4634, -inf
        %4671 = vmax.xlane.f32.xlu0 %v4670
        %v4672 = vpop.xlane.xlu0 %4671
        %v4673 = vsel %vm1235, %v4635, -inf
        %4674 = vmax.xlane.f32.xlu0 %v4673
        %v4675 = vpop.xlane.xlu0 %4674
        %v4676 = vsel %vm1235, %v4636, -inf
        %4677 = vmax.xlane.f32.xlu0 %v4676
        %v4678 = vpop.xlane.xlu0 %4677
        %v4679 = vsel %vm1235, %v4637, -inf
        %4680 = vmax.xlane.f32.xlu0 %v4679
        %v4681 = vpop.xlane.xlu0 %4680
        %v4682 = vsel %vm1235, %v4638, -inf
        %4683 = vmax.xlane.f32.xlu0 %v4682
        %v4684 = vpop.xlane.xlu0 %4683
        %v4685 = vsel %vm1235, %v4639, -inf
        %4686 = vmax.xlane.f32.xlu0 %v4685
        %v4687 = vpop.xlane.xlu0 %4686
        %v4688 = vsub.f32 %v4624, %v4642
        %v4689 = vsub.f32 %v4625, %v4645
        %v4690 = vsub.f32 %v4626, %v4648
        %v4691 = vsub.f32 %v4627, %v4651
        %v4692 = vsub.f32 %v4628, %v4654
        %v4693 = vsub.f32 %v4629, %v4657
        %v4694 = vsub.f32 %v4630, %v4660
        %v4695 = vsub.f32 %v4631, %v4663
        %v4696 = vsub.f32 %v4632, %v4666
        %v4697 = vsub.f32 %v4633, %v4669
        %v4698 = vsub.f32 %v4634, %v4672
        %v4699 = vsub.f32 %v4635, %v4675
        %v4700 = vsub.f32 %v4636, %v4678
        %v4701 = vsub.f32 %v4637, %v4681
        %v4702 = vsub.f32 %v4638, %v4684
        %v4703 = vsub.f32 %v4639, %v4687
        %v4704 = vmul.f32 %v4688, 1.442695
        %v4705 = vpow.pop %v4704
        %v4706 = vmul.f32 %v4689, 1.442695
        %v4707 = vpow.pop %v4706
        %v4708 = vmul.f32 %v4690, 1.442695
        %v4709 = vpow.pop %v4708
        %v4710 = vmul.f32 %v4691, 1.442695
        %v4711 = vpow.pop %v4710
        %v4712 = vmul.f32 %v4692, 1.442695
        %v4713 = vpow.pop %v4712
        %v4714 = vmul.f32 %v4693, 1.442695
        %v4715 = vpow.pop %v4714
        %v4716 = vmul.f32 %v4694, 1.442695
        %v4717 = vpow.pop %v4716
        %v4718 = vmul.f32 %v4695, 1.442695
        %v4719 = vpow.pop %v4718
        %v4720 = vmul.f32 %v4696, 1.442695
        %v4721 = vpow.pop %v4720
        %v4722 = vmul.f32 %v4697, 1.442695
        %v4723 = vpow.pop %v4722
        %v4724 = vmul.f32 %v4698, 1.442695
        %v4725 = vpow.pop %v4724
        %v4726 = vmul.f32 %v4699, 1.442695
        %v4727 = vpow.pop %v4726
        %v4728 = vmul.f32 %v4700, 1.442695
        %v4729 = vpow.pop %v4728
        %v4730 = vmul.f32 %v4701, 1.442695
        %v4731 = vpow.pop %v4730
        %v4732 = vmul.f32 %v4702, 1.442695
        %v4733 = vpow.pop %v4732
        %v4734 = vmul.f32 %v4703, 1.442695
        %v4735 = vpow.pop %v4734
        %v4736 = vsel %vm1235, %v4705, 0.0
        %4737 = vadd.xlane.f32.xlu0 %v4736
        %v4738 = vpop.xlane.xlu0 %4737
        %v4739 = vsel %vm1235, %v4707, 0.0
        %4740 = vadd.xlane.f32.xlu0 %v4739
        %v4741 = vpop.xlane.xlu0 %4740
        %v4742 = vsel %vm1235, %v4709, 0.0
        %4743 = vadd.xlane.f32.xlu0 %v4742
        %v4744 = vpop.xlane.xlu0 %4743
        %v4745 = vsel %vm1235, %v4711, 0.0
        %4746 = vadd.xlane.f32.xlu0 %v4745
        %v4747 = vpop.xlane.xlu0 %4746
        %v4748 = vsel %vm1235, %v4713, 0.0
        %4749 = vadd.xlane.f32.xlu0 %v4748
        %v4750 = vpop.xlane.xlu0 %4749
        %v4751 = vsel %vm1235, %v4715, 0.0
        %4752 = vadd.xlane.f32.xlu0 %v4751
        %v4753 = vpop.xlane.xlu0 %4752
        %v4754 = vsel %vm1235, %v4717, 0.0
        %4755 = vadd.xlane.f32.xlu0 %v4754
        %v4756 = vpop.xlane.xlu0 %4755
        %v4757 = vsel %vm1235, %v4719, 0.0
        %4758 = vadd.xlane.f32.xlu0 %v4757
        %v4759 = vpop.xlane.xlu0 %4758
        %v4760 = vsel %vm1235, %v4721, 0.0
        %4761 = vadd.xlane.f32.xlu0 %v4760
        %v4762 = vpop.xlane.xlu0 %4761
        %v4763 = vsel %vm1235, %v4723, 0.0
        %4764 = vadd.xlane.f32.xlu0 %v4763
        %v4765 = vpop.xlane.xlu0 %4764
        %v4766 = vsel %vm1235, %v4725, 0.0
        %4767 = vadd.xlane.f32.xlu0 %v4766
        %v4768 = vpop.xlane.xlu0 %4767
        %v4769 = vsel %vm1235, %v4727, 0.0
        %4770 = vadd.xlane.f32.xlu0 %v4769
        %v4771 = vpop.xlane.xlu0 %4770
        %v4772 = vsel %vm1235, %v4729, 0.0
        %4773 = vadd.xlane.f32.xlu0 %v4772
        %v4774 = vpop.xlane.xlu0 %4773
        %v4775 = vsel %vm1235, %v4731, 0.0
        %4776 = vadd.xlane.f32.xlu0 %v4775
        %v4777 = vpop.xlane.xlu0 %4776
        %v4778 = vsel %vm1235, %v4733, 0.0
        %4779 = vadd.xlane.f32.xlu0 %v4778
        %v4780 = vpop.xlane.xlu0 %4779
        %v4781 = vsel %vm1235, %v4735, 0.0
        %4782 = vadd.xlane.f32.xlu0 %v4781
        %v4783 = vpop.xlane.xlu0 %4782
        %v4784 = vrcp.pop %v4738
        %v4785 = vrcp.pop %v4741
        %v4786 = vrcp.pop %v4744
        %v4787 = vrcp.pop %v4747
        %v4788 = vrcp.pop %v4750
        %v4789 = vrcp.pop %v4753
        %v4790 = vrcp.pop %v4756
        %v4791 = vrcp.pop %v4759
        %v4792 = vrcp.pop %v4762
        %v4793 = vrcp.pop %v4765
        %v4794 = vrcp.pop %v4768
        %v4795 = vrcp.pop %v4771
        %v4796 = vrcp.pop %v4774
        %v4797 = vrcp.pop %v4777
        %v4798 = vrcp.pop %v4780
        %v4799 = vrcp.pop %v4783
        %v4800 = vmul.f32 %v4705, %v4784
        %v4801 = vmul.f32 %v4707, %v4785
        %v4802 = vmul.f32 %v4709, %v4786
        %v4803 = vmul.f32 %v4711, %v4787
        %v4804 = vmul.f32 %v4713, %v4788
        %v4805 = vmul.f32 %v4715, %v4789
        %v4806 = vmul.f32 %v4717, %v4790
        %v4807 = vmul.f32 %v4719, %v4791
        %v4808 = vmul.f32 %v4721, %v4792
        %v4809 = vmul.f32 %v4723, %v4793
        %v4810 = vmul.f32 %v4725, %v4794
        %v4811 = vmul.f32 %v4727, %v4795
        %v4812 = vmul.f32 %v4729, %v4796
        %v4813 = vmul.f32 %v4731, %v4797
        %v4814 = vmul.f32 %v4733, %v4798
        %v4815 = vmul.f32 %v4735, %v4799
        %4816 = vrot.lane.b32.xlu0 %v4314, 112
        %v4817 = vpop.permute.xlu0 %4816
        %4818 = vrot.lane.b32.xlu0 %v4317, 112
        %v4819 = vpop.permute.xlu0 %4818
        %4820 = vrot.lane.b32.xlu0 %v4320, 112
        %v4821 = vpop.permute.xlu0 %4820
        %4822 = vrot.lane.b32.xlu0 %v4323, 112
        %v4823 = vpop.permute.xlu0 %4822
        %v4829 = vsel %vm1235, %v4800, 0
        %v4832 = vsel %vm1235, %v4801, 0
        %v4835 = vsel %vm1235, %v4802, 0
        %v4838 = vsel %vm1235, %v4803, 0
        %4840 = vmatpush.msra.mxu0 0.0
        %4841 = vmatpush.msra.mxu0 0.0
        %4842 = vmatpush.msra.mxu0 0.0
        %4843 = vmatpush.msra.mxu0 0.0
        %4844 = vmatpush.msra.mxu0 0.0
        %4845 = vmatpush.msra.mxu0 0.0
        %4846 = vmatpush.msra.mxu0 0.0
        %4847 = vmatpush.msra.mxu0 0.0
        %4848 = vmatpush.msra.mxu0 0.0
        %4849 = vmatpush.msra.mxu0 0.0
        %4850 = vmatpush.msra.mxu0 0.0
        %4851 = vmatpush.msra.mxu0 0.0
        %4852 = vmatpush.msra.mxu0 %v4823
        %4853 = vmatpush.msra.mxu0 %v4821
        %4854 = vmatpush.msra.mxu0 %v4819
        %4855 = vmatpush.msra.mxu0 %v4817
        %4856 = vmatmul.f32.gmra.mxu0 %v4829
        %v4857 = vpop.f32.mrf.mxu0
        %v4858 = vadd.f32 0.0, %v4857
        %4859 = vmatmul.f32.gmra.mxu0 %v4832
        %v4860 = vpop.f32.mrf.mxu0
        %v4861 = vadd.f32 0.0, %v4860
        %4862 = vmatmul.f32.gmra.mxu0 %v4835
        %v4863 = vpop.f32.mrf.mxu0
        %v4864 = vadd.f32 0.0, %v4863
        %4865 = vmatmul.f32.gmra.mxu0 %v4838
        %v4866 = vpop.f32.mrf.mxu0
        %v4867 = vadd.f32 0.0, %v4866
        %4868 = vdwg.mxu0
        %4869 = vrot.lane.b32.xlu0 %v4343, 112
        %v4870 = vpop.permute.xlu0 %4869
        %4871 = vrot.lane.b32.xlu0 %v4346, 112
        %v4872 = vpop.permute.xlu0 %4871
        %4873 = vrot.lane.b32.xlu0 %v4349, 112
        %v4874 = vpop.permute.xlu0 %4873
        %4875 = vrot.lane.b32.xlu0 %v4352, 112
        %v4876 = vpop.permute.xlu0 %4875
        %v4882 = vsel %vm1235, %v4804, 0
        %v4885 = vsel %vm1235, %v4805, 0
        %v4888 = vsel %vm1235, %v4806, 0
        %v4891 = vsel %vm1235, %v4807, 0
        %4893 = vmatpush.msra.mxu0 0.0
        %4894 = vmatpush.msra.mxu0 0.0
        %4895 = vmatpush.msra.mxu0 0.0
        %4896 = vmatpush.msra.mxu0 0.0
        %4897 = vmatpush.msra.mxu0 0.0
        %4898 = vmatpush.msra.mxu0 0.0
        %4899 = vmatpush.msra.mxu0 0.0
        %4900 = vmatpush.msra.mxu0 0.0
        %4901 = vmatpush.msra.mxu0 0.0
        %4902 = vmatpush.msra.mxu0 0.0
        %4903 = vmatpush.msra.mxu0 0.0
        %4904 = vmatpush.msra.mxu0 0.0
        %4905 = vmatpush.msra.mxu0 %v4876
        %4906 = vmatpush.msra.mxu0 %v4874
        %4907 = vmatpush.msra.mxu0 %v4872
        %4908 = vmatpush.msra.mxu0 %v4870
        %4909 = vmatmul.f32.gmra.mxu0 %v4882
        %v4910 = vpop.f32.mrf.mxu0
        %v4911 = vadd.f32 0.0, %v4910
        %4912 = vmatmul.f32.gmra.mxu0 %v4885
        %v4913 = vpop.f32.mrf.mxu0
        %v4914 = vadd.f32 0.0, %v4913
        %4915 = vmatmul.f32.gmra.mxu0 %v4888
        %v4916 = vpop.f32.mrf.mxu0
        %v4917 = vadd.f32 0.0, %v4916
        %4918 = vmatmul.f32.gmra.mxu0 %v4891
        %v4919 = vpop.f32.mrf.mxu0
        %v4920 = vadd.f32 0.0, %v4919
        %4921 = vdwg.mxu0
        %4922 = vrot.lane.b32.xlu0 %v4372, 112
        %v4923 = vpop.permute.xlu0 %4922
        %4924 = vrot.lane.b32.xlu0 %v4375, 112
        %v4925 = vpop.permute.xlu0 %4924
        %4926 = vrot.lane.b32.xlu0 %v4378, 112
        %v4927 = vpop.permute.xlu0 %4926
        %4928 = vrot.lane.b32.xlu0 %v4381, 112
        %v4929 = vpop.permute.xlu0 %4928
        %v4935 = vsel %vm1235, %v4808, 0
        %v4938 = vsel %vm1235, %v4809, 0
        %v4941 = vsel %vm1235, %v4810, 0
        %v4944 = vsel %vm1235, %v4811, 0
        %4946 = vmatpush.msra.mxu0 0.0
        %4947 = vmatpush.msra.mxu0 0.0
        %4948 = vmatpush.msra.mxu0 0.0
        %4949 = vmatpush.msra.mxu0 0.0
        %4950 = vmatpush.msra.mxu0 0.0
        %4951 = vmatpush.msra.mxu0 0.0
        %4952 = vmatpush.msra.mxu0 0.0
        %4953 = vmatpush.msra.mxu0 0.0
        %4954 = vmatpush.msra.mxu0 0.0
        %4955 = vmatpush.msra.mxu0 0.0
        %4956 = vmatpush.msra.mxu0 0.0
        %4957 = vmatpush.msra.mxu0 0.0
        %4958 = vmatpush.msra.mxu0 %v4929
        %4959 = vmatpush.msra.mxu0 %v4927
        %4960 = vmatpush.msra.mxu0 %v4925
        %4961 = vmatpush.msra.mxu0 %v4923
        %4962 = vmatmul.f32.gmra.mxu0 %v4935
        %v4963 = vpop.f32.mrf.mxu0
        %v4964 = vadd.f32 0.0, %v4963
        %4965 = vmatmul.f32.gmra.mxu0 %v4938
        %v4966 = vpop.f32.mrf.mxu0
        %v4967 = vadd.f32 0.0, %v4966
        %4968 = vmatmul.f32.gmra.mxu0 %v4941
        %v4969 = vpop.f32.mrf.mxu0
        %v4970 = vadd.f32 0.0, %v4969
        %4971 = vmatmul.f32.gmra.mxu0 %v4944
        %v4972 = vpop.f32.mrf.mxu0
        %v4973 = vadd.f32 0.0, %v4972
        %4974 = vdwg.mxu0
        %4975 = vrot.lane.b32.xlu0 %v4401, 112
        %v4976 = vpop.permute.xlu0 %4975
        %4977 = vrot.lane.b32.xlu0 %v4404, 112
        %v4978 = vpop.permute.xlu0 %4977
        %4979 = vrot.lane.b32.xlu0 %v4407, 112
        %v4980 = vpop.permute.xlu0 %4979
        %4981 = vrot.lane.b32.xlu0 %v4410, 112
        %v4982 = vpop.permute.xlu0 %4981
        %v4988 = vsel %vm1235, %v4812, 0
        %v4991 = vsel %vm1235, %v4813, 0
        %v4994 = vsel %vm1235, %v4814, 0
        %v4997 = vsel %vm1235, %v4815, 0
        %4999 = vmatpush.msra.mxu0 0.0
        %5000 = vmatpush.msra.mxu0 0.0
        %5001 = vmatpush.msra.mxu0 0.0
        %5002 = vmatpush.msra.mxu0 0.0
        %5003 = vmatpush.msra.mxu0 0.0
        %5004 = vmatpush.msra.mxu0 0.0
        %5005 = vmatpush.msra.mxu0 0.0
        %5006 = vmatpush.msra.mxu0 0.0
        %5007 = vmatpush.msra.mxu0 0.0
        %5008 = vmatpush.msra.mxu0 0.0
        %5009 = vmatpush.msra.mxu0 0.0
        %5010 = vmatpush.msra.mxu0 0.0
        %5011 = vmatpush.msra.mxu0 %v4982
        %5012 = vmatpush.msra.mxu0 %v4980
        %5013 = vmatpush.msra.mxu0 %v4978
        %5014 = vmatpush.msra.mxu0 %v4976
        %5015 = vmatmul.f32.gmra.mxu0 %v4988
        %v5016 = vpop.f32.mrf.mxu0
        %v5017 = vadd.f32 0.0, %v5016
        %5018 = vmatmul.f32.gmra.mxu0 %v4991
        %v5019 = vpop.f32.mrf.mxu0
        %v5020 = vadd.f32 0.0, %v5019
        %5021 = vmatmul.f32.gmra.mxu0 %v4994
        %v5022 = vpop.f32.mrf.mxu0
        %v5023 = vadd.f32 0.0, %v5022
        %5024 = vmatmul.f32.gmra.mxu0 %v4997
        %v5025 = vpop.f32.mrf.mxu0
        %v5026 = vadd.f32 0.0, %v5025
        %5027 = vdwg.mxu0
        %v5029 = vsel %vm1544, %v4858, 0
        %v5032 = vsel %vm1544, %v4861, 0
        %v5035 = vsel %vm1544, %v4864, 0
        %v5038 = vsel %vm1544, %v4867, 0
        %5040 = vmatpush.msra.mxu0 0.0
        %5041 = vmatpush.msra.mxu0 0.0
        %5042 = vmatpush.msra.mxu0 0.0
        %5043 = vmatpush.msra.mxu0 0.0
        %5044 = vmatpush.msra.mxu0 0.0
        %5045 = vmatpush.msra.mxu0 0.0
        %5046 = vmatpush.msra.mxu0 0.0
        %5047 = vmatpush.msra.mxu0 0.0
        %5048 = vmatpush.msra.mxu0 0.0
        %5049 = vmatpush.msra.mxu0 0.0
        %5050 = vmatpush.msra.mxu0 0.0
        %5051 = vmatpush.msra.mxu0 0.0
        %5052 = vmatpush.msra.mxu0 0.0
        %5053 = vmatpush.msra.mxu0 0.0
        %5054 = vmatpush.msra.mxu0 %v4149
        %5055 = vmatpush.msra.mxu0 %v4148
        %5056 = vmatmul.f32.gmra.mxu0 %v5029
        %v5057 = vpop.f32.mrf.mxu0
        %v5058 = vadd.f32 0.0, %v5057
        %5059 = vmatmul.f32.gmra.mxu0 %v5032
        %v5060 = vpop.f32.mrf.mxu0
        %v5061 = vadd.f32 0.0, %v5060
        %5062 = vmatmul.f32.gmra.mxu0 %v5035
        %v5063 = vpop.f32.mrf.mxu0
        %v5064 = vadd.f32 0.0, %v5063
        %5065 = vmatmul.f32.gmra.mxu0 %v5038
        %v5066 = vpop.f32.mrf.mxu0
        %v5067 = vadd.f32 0.0, %v5066
        %5068 = vdwg.mxu0
        %v5070 = vsel %vm1544, %v4911, 0
        %v5073 = vsel %vm1544, %v4914, 0
        %v5076 = vsel %vm1544, %v4917, 0
        %v5079 = vsel %vm1544, %v4920, 0
        %5081 = vmatpush.msra.mxu0 0.0
        %5082 = vmatpush.msra.mxu0 0.0
        %5083 = vmatpush.msra.mxu0 0.0
        %5084 = vmatpush.msra.mxu0 0.0
        %5085 = vmatpush.msra.mxu0 0.0
        %5086 = vmatpush.msra.mxu0 0.0
        %5087 = vmatpush.msra.mxu0 0.0
        %5088 = vmatpush.msra.mxu0 0.0
        %5089 = vmatpush.msra.mxu0 0.0
        %5090 = vmatpush.msra.mxu0 0.0
        %5091 = vmatpush.msra.mxu0 0.0
        %5092 = vmatpush.msra.mxu0 0.0
        %5093 = vmatpush.msra.mxu0 0.0
        %5094 = vmatpush.msra.mxu0 0.0
        %5095 = vmatpush.msra.mxu0 %v4151
        %5096 = vmatpush.msra.mxu0 %v4150
        %5097 = vmatmul.f32.gmra.mxu0 %v5070
        %v5098 = vpop.f32.mrf.mxu0
        %v5099 = vadd.f32 0.0, %v5098
        %5100 = vmatmul.f32.gmra.mxu0 %v5073
        %v5101 = vpop.f32.mrf.mxu0
        %v5102 = vadd.f32 0.0, %v5101
        %5103 = vmatmul.f32.gmra.mxu0 %v5076
        %v5104 = vpop.f32.mrf.mxu0
        %v5105 = vadd.f32 0.0, %v5104
        %5106 = vmatmul.f32.gmra.mxu0 %v5079
        %v5107 = vpop.f32.mrf.mxu0
        %v5108 = vadd.f32 0.0, %v5107
        %5109 = vdwg.mxu0
        %v5111 = vsel %vm1544, %v4964, 0
        %v5114 = vsel %vm1544, %v4967, 0
        %v5117 = vsel %vm1544, %v4970, 0
        %v5120 = vsel %vm1544, %v4973, 0
        %5122 = vmatpush.msra.mxu0 0.0
        %5123 = vmatpush.msra.mxu0 0.0
        %5124 = vmatpush.msra.mxu0 0.0
        %5125 = vmatpush.msra.mxu0 0.0
        %5126 = vmatpush.msra.mxu0 0.0
        %5127 = vmatpush.msra.mxu0 0.0
        %5128 = vmatpush.msra.mxu0 0.0
        %5129 = vmatpush.msra.mxu0 0.0
        %5130 = vmatpush.msra.mxu0 0.0
        %5131 = vmatpush.msra.mxu0 0.0
        %5132 = vmatpush.msra.mxu0 0.0
        %5133 = vmatpush.msra.mxu0 0.0
        %5134 = vmatpush.msra.mxu0 0.0
        %5135 = vmatpush.msra.mxu0 0.0
        %5136 = vmatpush.msra.mxu0 %v4153
        %5137 = vmatpush.msra.mxu0 %v4152
        %5138 = vmatmul.f32.gmra.mxu0 %v5111
        %v5139 = vpop.f32.mrf.mxu0
        %v5140 = vadd.f32 0.0, %v5139
        %5141 = vmatmul.f32.gmra.mxu0 %v5114
        %v5142 = vpop.f32.mrf.mxu0
        %v5143 = vadd.f32 0.0, %v5142
        %5144 = vmatmul.f32.gmra.mxu0 %v5117
        %v5145 = vpop.f32.mrf.mxu0
        %v5146 = vadd.f32 0.0, %v5145
        %5147 = vmatmul.f32.gmra.mxu0 %v5120
        %v5148 = vpop.f32.mrf.mxu0
        %v5149 = vadd.f32 0.0, %v5148
        %5150 = vdwg.mxu0
        %v5152 = vsel %vm1544, %v5017, 0
        %v5155 = vsel %vm1544, %v5020, 0
        %v5158 = vsel %vm1544, %v5023, 0
        %v5161 = vsel %vm1544, %v5026, 0
        %5163 = vmatpush.msra.mxu0 0.0
        %5164 = vmatpush.msra.mxu0 0.0
        %5165 = vmatpush.msra.mxu0 0.0
        %5166 = vmatpush.msra.mxu0 0.0
        %5167 = vmatpush.msra.mxu0 0.0
        %5168 = vmatpush.msra.mxu0 0.0
        %5169 = vmatpush.msra.mxu0 0.0
        %5170 = vmatpush.msra.mxu0 0.0
        %5171 = vmatpush.msra.mxu0 0.0
        %5172 = vmatpush.msra.mxu0 0.0
        %5173 = vmatpush.msra.mxu0 0.0
        %5174 = vmatpush.msra.mxu0 0.0
        %5175 = vmatpush.msra.mxu0 0.0
        %5176 = vmatpush.msra.mxu0 0.0
        %5177 = vmatpush.msra.mxu0 %v4155
        %5178 = vmatpush.msra.mxu0 %v4154
        %5179 = vmatmul.f32.gmra.mxu0 %v5152
        %v5180 = vpop.f32.mrf.mxu0
        %v5181 = vadd.f32 0.0, %v5180
        %5182 = vmatmul.f32.gmra.mxu0 %v5155
        %v5183 = vpop.f32.mrf.mxu0
        %v5184 = vadd.f32 0.0, %v5183
        %5185 = vmatmul.f32.gmra.mxu0 %v5158
        %v5186 = vpop.f32.mrf.mxu0
        %v5187 = vadd.f32 0.0, %v5186
        %5188 = vmatmul.f32.gmra.mxu0 %v5161
        %v5189 = vpop.f32.mrf.mxu0
        %v5190 = vadd.f32 0.0, %v5189
        %5191 = vdwg.mxu0
        %v5192 = vsel %vm1235, %v5058, 0.0
        %v5193 = vsel %vm1235, %v5099, 0.0
        %v5194 = vadd.f32 %v5192, %v5193
        %v5195 = vsel %vm1235, %v5140, 0.0
        %v5196 = vadd.f32 %v5194, %v5195
        %v5197 = vsel %vm1235, %v5181, 0.0
        %v5198 = vadd.f32 %v5196, %v5197
        %v5199 = vsel %vm1235, %v5061, 0.0
        %v5200 = vsel %vm1235, %v5102, 0.0
        %v5201 = vadd.f32 %v5199, %v5200
        %v5202 = vsel %vm1235, %v5143, 0.0
        %v5203 = vadd.f32 %v5201, %v5202
        %v5204 = vsel %vm1235, %v5184, 0.0
        %v5205 = vadd.f32 %v5203, %v5204
        %v5206 = vsel %vm1235, %v5064, 0.0
        %v5207 = vsel %vm1235, %v5105, 0.0
        %v5208 = vadd.f32 %v5206, %v5207
        %v5209 = vsel %vm1235, %v5146, 0.0
        %v5210 = vadd.f32 %v5208, %v5209
        %v5211 = vsel %vm1235, %v5187, 0.0
        %v5212 = vadd.f32 %v5210, %v5211
        %v5213 = vsel %vm1235, %v5067, 0.0
        %v5214 = vsel %vm1235, %v5108, 0.0
        %v5215 = vadd.f32 %v5213, %v5214
        %v5216 = vsel %vm1235, %v5149, 0.0
        %v5217 = vadd.f32 %v5215, %v5216
        %v5218 = vsel %vm1235, %v5190, 0.0
        %v5219 = vadd.f32 %v5217, %v5218
        %v5220 = vld [vmem:[#allocation2] sm:$0x1]
        %v5222 = vperm.slane %v5220, 0
        %v5224 = vadd.f32 %v5198, %v5222
        %v5225 = vadd.f32 %v5205, %v5222
        %v5226 = vadd.f32 %v5212, %v5222
        %v5227 = vadd.f32 %v5219, %v5222
        %v5228 = vadd.f32 %v4008, %v5224
        %v5229 = vadd.f32 %v4009, %v5225
        %v5230 = vadd.f32 %v4010, %v5226
        %v5231 = vadd.f32 %v4011, %v5227
        %v5232 = vadd.f32 %v5228, %v5228
        %v5233 = vadd.f32 %v5229, %v5229
        %v5234 = vadd.f32 %v5230, %v5230
        %v5235 = vadd.f32 %v5231, %v5231
        %5236 = vxpose.xlu0.b32.start [1/16] %v5232, 128
        %5237 = vxpose.xlu0.b32.cont [2/16] %v5233, 128
        %5238 = vxpose.xlu0.b32.cont [3/16] %v5234, 128
        %5239 = vxpose.xlu0.b32.cont [4/16] %v5235, 128
        %5240 = vxpose.xlu0.b32.cont [5/16] 0.0, 128
        %5241 = vxpose.xlu0.b32.cont [6/16] 0.0, 128
        %5242 = vxpose.xlu0.b32.cont [7/16] 0.0, 128
        %5243 = vxpose.xlu0.b32.cont [8/16] 0.0, 128
        %5244 = vxpose.xlu0.b32.cont [9/16] 0.0, 128
        %5245 = vxpose.xlu0.b32.cont [10/16] 0.0, 128
        %5246 = vxpose.xlu0.b32.cont [11/16] 0.0, 128
        %5247 = vxpose.xlu0.b32.cont [12/16] 0.0, 128
        %5248 = vxpose.xlu0.b32.cont [13/16] 0.0, 128
        %5249 = vxpose.xlu0.b32.cont [14/16] 0.0, 128
        %5250 = vxpose.xlu0.b32.cont [15/16] 0.0, 128
        %5251 = vxpose.xlu0.b32.end [16/16] 0.0, 128
        %v5252 = vpop.trf.xlu0
        %v5253 = vpop.trf.xlu0
        %v5254 = vpop.trf.xlu0
        %v5255 = vpop.trf.xlu0
        %v5256 = vpop.trf.xlu0
        %v5257 = vpop.trf.xlu0
        %v5258 = vpop.trf.xlu0
        %v5259 = vpop.trf.xlu0
        %v5260 = vpop.trf.xlu0
        %v5261 = vpop.trf.xlu0
        %v5262 = vpop.trf.xlu0
        %v5263 = vpop.trf.xlu0
        %v5264 = vpop.trf.xlu0
        %v5265 = vpop.trf.xlu0
        %v5266 = vpop.trf.xlu0
        %v5267 = vpop.trf.xlu0
        %5268 = vst.msk [vmem:[%s1190] sm:$0xff] %vm1235, %v5252
        %5269 = vst.msk [vmem:[%s1190 + $0x8] sm:$0xff] %vm1235, %v5253
        %5270 = vst.msk [vmem:[%s1190 + $0x10] sm:$0xff] %vm1235, %v5254
        %5271 = vst.msk [vmem:[%s1190 + $0x18] sm:$0xff] %vm1235, %v5255
        %p5272 = scmp.lt.s32.totalorder %s88, 1
        %s5273 = scalar_select %p5272, %s88, 1
        %s5274 = smul.addr %s5273, 4
        %s5275 = smul.addr %s5274, 8
        %s5276 = scalar_lea.vmem %s73, %s5275
        // Predicated region
        $region189: #{crossvit_forward.1} parent=163 // pred_check
          %p5277 = pneg %p867
        $region190: #{crossvit_forward.1} parent=163 // pred_check_branch
          %5279 = sbr.rel (%p5277) target = $region192
        $region191: #{crossvit_forward.1} parent=163 // pred_region
          _
        $region192: #{crossvit_forward.1} parent=163 // pred_fallthru
          _
      $region164: #{crossvit_forward.1} parent=5 // pred_fallthru
        _
      %p5280 = scmp.le.s32.totalorder 2, %s83
      // Predicated region
      $region193: #{crossvit_forward.1} parent=5 // pred_check
        %p5281 = pneg %p5280
      $region194: #{crossvit_forward.1} parent=5 // pred_check_branch
        %5283 = sbr.rel (%p5281) target = $region196
      $region195: #{crossvit_forward.1} parent=5 // pred_region
        %s5284 = ssub.s32 %s83, 2
        // Predicated region
        $region197: #{crossvit_forward.1} parent=195 // pred_check
          %p5285 = pneg %p873
        $region198: #{crossvit_forward.1} parent=195 // pred_check_branch
          %5287 = sbr.rel (%p5285) target = $region200
        $region199: #{crossvit_forward.1} parent=195 // pred_region
          %p5288 = scmp.lt.s32.totalorder %s89, 1
          %s5289 = scalar_select %p5288, %s89, 1
          %s5290 = smul.addr %s5289, 4
          %s5291 = smul.addr %s5290, 8
          %s5292 = scalar_lea.vmem %s73, %s5291
        $region200: #{crossvit_forward.1} parent=195 // pred_fallthru
          _
      $region196: #{crossvit_forward.1} parent=5 // pred_fallthru
        _
    $region6: #{crossvit_forward.1} parent=1 // loop_footer
      %s87 = sadd.s32 1, %s83
    $region7: #{crossvit_forward.1} parent=1 // loop_footer_branch
      %82 = sbr.rel target = $region3
    $region8: #{crossvit_forward.1} parent=1 // loop_exit
      _
    %5293 = vsyncpa [#allocation3], 1
    %s5294 = scalar_lea.sflag [#allocation3], 1
    %5295 = vsyncpa %s5294, 1
    %5296 = vsyncpa [#allocation5], 1
    %5297 = vsyncpa [#allocation8], 1
    %5298 = vsyncpa [#allocation11], 1

</llo_original>
